<compile_context>
chip_gen: v7x
topology: tpu7x:2x2x1
jax: 0.10.0
libtpu: 0.0.40
codegen_flags: <defaults>
</compile_context>

<pallas_src>
from functools import partial

import jax
import jax.numpy as jnp
from jax import lax
from jax.experimental import pallas as pl
from jax.experimental.pallas import tpu as pltpu


# --------------------------------------------------------------------------
# helpers
# --------------------------------------------------------------------------
def _round_up(x, m):
    return ((x + m - 1) // m) * m


def _choose_tm(M, cap=512):
    """Row tile <= cap; pad M to a tile multiple instead of a full-dim block."""
    if M >= cap:
        tm = cap
    else:
        tm = _round_up(M, 8)
    return tm, _round_up(M, tm)


def _choose_tn(Nout):
    """Lane tile: 256 matches the v6e/v7x MXU; tiny Cout uses the full dim."""
    if Nout % 256 == 0:
        return 256
    if Nout % 128 == 0:
        return 128
    return Nout


# --------------------------------------------------------------------------
# Pallas kernels
# --------------------------------------------------------------------------
def _conv_act_kernel(a_ref, b_ref, o_ref, *, activation):
    """One MXU dot (full K resident) + optional LeakyReLU epilogue."""
    acc = jnp.dot(a_ref[...], b_ref[...], preferred_element_type=jnp.float32)
    if activation == "leaky_relu":
        acc = jnp.where(acc >= 0, acc, 0.2 * acc)
    o_ref[...] = acc.astype(o_ref.dtype)


def _conv_bn_act_kernel(a_ref, b_ref, g_ref, beta_ref, o_ref, *, m_real, eps):
    """Conv + training-mode BatchNorm + LeakyReLU fully fused (whole M in VMEM).

    Zero-padded M rows contribute 0 to sum/sumsq, so dividing by the real row
    count keeps mean/var exact; padded output rows are sliced off outside.
    """
    acc = jnp.dot(a_ref[...], b_ref[...], preferred_element_type=jnp.float32)
    inv_m = 1.0 / float(m_real)
    mean = jnp.sum(acc, axis=0, keepdims=True) * inv_m            # (1, TN)
    ex2 = jnp.sum(acc * acc, axis=0, keepdims=True) * inv_m       # (1, TN)
    var = jnp.maximum(ex2 - mean * mean, 0.0)                     # biased var
    scale = g_ref[...] * lax.rsqrt(var + eps)
    shift = beta_ref[...] - mean * scale
    y = acc * scale + shift
    o_ref[...] = jnp.where(y >= 0, y, 0.2 * y).astype(o_ref.dtype)


def _conv_stats_kernel(a_ref, b_ref, o_ref, stats_ref):
    """Conv + per-(M-block) channel sum/sumsq (general multi-block BN path)."""
    acc = jnp.dot(a_ref[...], b_ref[...], preferred_element_type=jnp.float32)
    o_ref[...] = acc.astype(o_ref.dtype)
    s = jnp.sum(acc, axis=0, keepdims=True)
    sq = jnp.sum(acc * acc, axis=0, keepdims=True)
    stats_ref[...] = jnp.concatenate([s, sq], axis=0)[None]       # (1, 2, TN)


# --------------------------------------------------------------------------
# Pallas wrappers
# --------------------------------------------------------------------------
def conv_act(patches, wm, *, activation):
    """patches:(M,K) bf16, wm:(K,Nout) bf16 -> (M,Nout) bf16."""
    M, K = patches.shape
    Kw, Nout = wm.shape
    assert K == Kw
    TM, M_pad = _choose_tm(M)
    TN = _choose_tn(Nout)
    if M_pad != M:
        patches = jnp.pad(patches, ((0, M_pad - M), (0, 0)))
    nm, nn = M_pad // TM, Nout // TN

    out = pl.pallas_call(
        partial(_conv_act_kernel, activation=activation),
        out_shape=jax.ShapeDtypeStruct((M_pad, Nout), jnp.bfloat16),
        grid=(nm, nn),
        in_specs=[pl.BlockSpec((TM, K), lambda m, n: (m, 0)),
                  pl.BlockSpec((K, TN), lambda m, n: (0, n))],   # resident wgt
        out_specs=pl.BlockSpec((TM, TN), lambda m, n: (m, n)),
        compiler_params=pltpu.CompilerParams(
            dimension_semantics=("parallel", "parallel")),
    )(patches, wm)
    return out[:M] if M_pad != M else out


def conv_bn_act(patches, wm, gamma, beta, *, eps=1e-5):
    """Conv + BatchNorm(batch stats) + LeakyReLU -> (M,Nout) bf16."""
    M, K = patches.shape
    Kw, Nout = wm.shape
    assert K == Kw
    TM, M_pad = _choose_tm(M)
    TN = _choose_tn(Nout)
    if M_pad != M:
        patches = jnp.pad(patches, ((0, M_pad - M), (0, 0)))
    nm, nn = M_pad // TM, Nout // TN

    if nm == 1:
        # Fully fused: whole-layer accumulator lives in VMEM at the epilogue.
        out = pl.pallas_call(
            partial(_conv_bn_act_kernel, m_real=M, eps=eps),
            out_shape=jax.ShapeDtypeStruct((M_pad, Nout), jnp.bfloat16),
            grid=(nn,),
            in_specs=[pl.BlockSpec((TM, K), lambda n: (0, 0)),
                      pl.BlockSpec((K, TN), lambda n: (0, n)),
                      pl.BlockSpec((1, TN), lambda n: (0, n)),
                      pl.BlockSpec((1, TN), lambda n: (0, n))],
            out_specs=pl.BlockSpec((TM, TN), lambda n: (0, n)),
            compiler_params=pltpu.CompilerParams(
                dimension_semantics=("parallel",)),
        )(patches, wm, gamma, beta)
        return out[:M] if M_pad != M else out

    # General path: bf16 conv output + compact f32 stats; BN apply stays in
    # plain JAX so XLA fuses it into the next layer's im2col data movement.
    out, stats = pl.pallas_call(
        _conv_stats_kernel,
        out_shape=(jax.ShapeDtypeStruct((M_pad, Nout), jnp.bfloat16),
                   jax.ShapeDtypeStruct((nm, 2, Nout), jnp.float32)),
        grid=(nm, nn),
        in_specs=[pl.BlockSpec((TM, K), lambda m, n: (m, 0)),
                  pl.BlockSpec((K, TN), lambda m, n: (0, n))],
        out_specs=(pl.BlockSpec((TM, TN), lambda m, n: (m, n)),
                   pl.BlockSpec((1, 2, TN), lambda m, n: (m, 0, n))),
        compiler_params=pltpu.CompilerParams(
            dimension_semantics=("parallel", "parallel")),
    )(patches, wm)
    s = jnp.sum(stats[:, 0, :], axis=0)
    sq = jnp.sum(stats[:, 1, :], axis=0)
    mean = s / M
    var = jnp.maximum(sq / M - mean * mean, 0.0)
    scale = gamma.reshape(-1) * lax.rsqrt(var + eps)
    shift = beta.reshape(-1) - mean * scale
    y = out[:M].astype(jnp.float32) * scale + shift
    return jnp.where(y >= 0, y, 0.2 * y).astype(jnp.bfloat16)


# --------------------------------------------------------------------------
# im2col: pure data movement, plain JAX, bf16 (fuses with the BN fallback)
# --------------------------------------------------------------------------
def im2col(x_nhwc, kh, kw, stride, pad):
    N, H, W, C = x_nhwc.shape
    xp = jnp.pad(x_nhwc, ((0, 0), (pad, pad), (pad, pad), (0, 0)))
    OH = (H + 2 * pad - kh) // stride + 1
    OW = (W + 2 * pad - kw) // stride + 1
    cols = []
    for i in range(kh):
        for j in range(kw):
            cols.append(xp[:, i:i + stride * (OH - 1) + 1:stride,
                              j:j + stride * (OW - 1) + 1:stride, :])
    patches = jnp.concatenate(cols, axis=-1)             # (N, OH, OW, kh*kw*C)
    return patches.reshape(N * OH * OW, kh * kw * C), OH, OW


# --------------------------------------------------------------------------
# Parameter preparation (once, outside the per-forward hot path)
# --------------------------------------------------------------------------
def prepare_params(params):
    prep = {}
    for idx in (1, 2, 3, 4, 5):
        w = params[f"w{idx}"]                            # (Cout, Cin, 4, 4)
        Cout, Cin, KH, KW = w.shape
        wm = jnp.transpose(w, (2, 3, 1, 0)).reshape(KH * KW * Cin, Cout)
        prep[f"w{idx}m"] = wm.astype(jnp.bfloat16 if idx < 5 else jnp.float32)
    for idx in (2, 3, 4):
        prep[f"g{idx}"] = params[f"g{idx}"].reshape(1, -1).astype(jnp.float32)
        prep[f"b{idx}"] = params[f"b{idx}"].reshape(1, -1).astype(jnp.float32)
    return prep


# --------------------------------------------------------------------------
# Discriminator forward
# --------------------------------------------------------------------------
def discriminator_forward(x_nchw, prep):
    x = jnp.transpose(x_nchw, (0, 2, 3, 1)).astype(jnp.bfloat16)   # NCHW->NHWC
    N = x.shape[0]

    # layer 1: Conv(4,2,1) + LeakyReLU(0.2) fused in the matmul epilogue
    patches, OH, OW = im2col(x, 4, 4, 2, 1)
    out = conv_act(patches, prep["w1m"], activation="leaky_relu")
    x = out.reshape(N, OH, OW, -1)

    # layers 2-4: Conv(4,2,1) + BatchNorm(train stats) + LeakyReLU(0.2)
    for li in (2, 3, 4):
        patches, OH, OW = im2col(x, 4, 4, 2, 1)
        out = conv_bn_act(patches, prep[f"w{li}m"],
                          prep[f"g{li}"], prep[f"b{li}"])
        x = out.reshape(N, OH, OW, -1)

    # layer 5: Conv(4,1,0,Cout=1) + Sigmoid.  Tiny 1-lane GEMV -> XLA.
    flat = x.reshape(N, -1).astype(jnp.float32)
    logits = flat @ prep["w5m"]                          # (N, 1)
    return jax.nn.sigmoid(logits).reshape(-1)            # (N,)


def init_params(key, num_channels, disc_dim):
    ks = jax.random.split(key, 5)
    std = 0.02
    return {
        "w1": std * jax.random.normal(ks[0], (disc_dim, num_channels, 4, 4), jnp.float32),
        "w2": std * jax.random.normal(ks[1], (disc_dim * 2, disc_dim, 4, 4), jnp.float32),
        "w3": std * jax.random.normal(ks[2], (disc_dim * 4, disc_dim * 2, 4, 4), jnp.float32),
        "w4": std * jax.random.normal(ks[3], (disc_dim * 8, disc_dim * 4, 4, 4), jnp.float32),
        "w5": std * jax.random.normal(ks[4], (1, disc_dim * 8, 4, 4), jnp.float32),
        # BatchNorm affine params: PyTorch default init (gamma=1, beta=0)
        "g2": jnp.ones((disc_dim * 2,), jnp.float32),
        "b2": jnp.zeros((disc_dim * 2,), jnp.float32),
        "g3": jnp.ones((disc_dim * 4,), jnp.float32),
        "b3": jnp.zeros((disc_dim * 4,), jnp.float32),
        "g4": jnp.ones((disc_dim * 8,), jnp.float32),
        "b4": jnp.zeros((disc_dim * 8,), jnp.float32),
    }


if __name__ == "__main__":
    # Architecture requires spatial 64 (4 stride-2 convs -> 4x4 -> final 4x4 conv -> 1x1).
    batch, num_channels, spatial = 2, 3, 64
    disc_dim = 8

    key = jax.random.PRNGKey(0)
    k_params, k_x = jax.random.split(key)
    params = init_params(k_params, num_channels, disc_dim)
    prep = prepare_params(params)                 # once, outside the hot path
    x = jax.random.normal(k_x, (batch, num_channels, spatial, spatial), jnp.float32)

    fwd = jax.jit(discriminator_forward)
    out = jax.block_until_ready(fwd(x, prep))

    assert out.shape == (batch,), out.shape
    assert bool(jnp.all(jnp.isfinite(out)))
    assert bool(jnp.all((out >= 0.0) & (out <= 1.0)))
    print("KERNEL_OK")
</pallas_src>

<mosaic_0001>
module attributes {stable_mosaic.version = 11 : i64} {
  func.func @_conv_act_kernel(%arg0: i32, %arg1: i32, %arg2: memref<512x48xbf16, #tpu.memory_space<vmem>>, %arg3: memref<48x8xbf16, #tpu.memory_space<vmem>>, %arg4: memref<512x8xbf16, #tpu.memory_space<vmem>>) attributes {dimension_semantics = [#tpu.dimension_semantics<parallel>, #tpu.dimension_semantics<parallel>], iteration_bounds = array<i64: 4, 1>, scalar_prefetch = 0 : i64, scratch_operands = 0 : i64, tpu.core_type = #tpu.core_type<tc>, window_params = [{transform_indices = @transform_0, window_bounds = array<i64: 512, 48>}, {transform_indices = @transform_1, window_bounds = array<i64: 48, 8>}, {transform_indices = @transform_2, window_bounds = array<i64: 512, 8>}]} {
    %c0 = arith.constant 0 : index
    %c0_0 = arith.constant 0 : index
    %0 = vector.load %arg2[%c0, %c0_0] : memref<512x48xbf16, #tpu.memory_space<vmem>>, vector<512x48xbf16>
    %c0_1 = arith.constant 0 : index
    %c0_2 = arith.constant 0 : index
    %1 = vector.load %arg3[%c0_1, %c0_2] : memref<48x8xbf16, #tpu.memory_space<vmem>>, vector<48x8xbf16>
    %cst = arith.constant dense<0.000000e+00> : vector<512x8xf32>
    %2 = tpu.matmul %0, %1, %cst {dimension_numbers = #tpu.dot_dimension_numbers<[1], [0], [0], [1], [0, 0, 1, 1], [], []>} : vector<512x48xbf16>, vector<48x8xbf16>, vector<512x8xf32> -> vector<512x8xf32>
    %cst_3 = arith.constant 0.000000e+00 : f32
    %3 = vector.broadcast %cst_3 : f32 to vector<512x8xf32>
    %4 = arith.cmpf oge, %2, %3 : vector<512x8xf32>
    %cst_4 = arith.constant 2.000000e-01 : f32
    %5 = vector.broadcast %cst_4 : f32 to vector<512x8xf32>
    %6 = arith.mulf %5, %2 : vector<512x8xf32>
    %7 = arith.select %4, %2, %6 : vector<512x8xi1>, vector<512x8xf32>
    %8 = arith.truncf %7 : vector<512x8xf32> to vector<512x8xbf16>
    %c0_5 = arith.constant 0 : index
    %c0_6 = arith.constant 0 : index
    %9 = vector.load %arg4[%c0_5, %c0_6] : memref<512x8xbf16, #tpu.memory_space<vmem>>, vector<512x8xbf16>
    tpu.vector_store %arg4[%c0_5, %c0_6], %8 {strides = array<i32>} : memref<512x8xbf16, #tpu.memory_space<vmem>>, vector<512x8xbf16>,
    return
  }
  func.func @transform_0(%arg0: i32, %arg1: i32) -> (i32, i32) {
    %c0_i32 = arith.constant 0 : i32
    %c0_i32_0 = arith.constant 0 : i32
    return %arg0, %c0_i32 : i32, i32
  }
  func.func @transform_1(%arg0: i32, %arg1: i32) -> (i32, i32) {
    %c0_i32 = arith.constant 0 : i32
    %c0_i32_0 = arith.constant 0 : i32
    return %c0_i32, %arg1 : i32, i32
  }
  func.func @transform_2(%arg0: i32, %arg1: i32) -> (i32, i32) {
    %c0_i32 = arith.constant 0 : i32
    return %arg0, %arg1 : i32, i32
  }
}

module attributes {stable_mosaic.version = 11 : i64} {
  func.func @_conv_bn_act_kernel(%arg0: i32, %arg1: memref<512x128xbf16, #tpu.memory_space<vmem>>, %arg2: memref<128x16xbf16, #tpu.memory_space<vmem>>, %arg3: memref<1x16xf32, #tpu.memory_space<vmem>>, %arg4: memref<1x16xf32, #tpu.memory_space<vmem>>, %arg5: memref<512x16xbf16, #tpu.memory_space<vmem>>) attributes {dimension_semantics = [#tpu.dimension_semantics<parallel>], iteration_bounds = array<i64: 1>, scalar_prefetch = 0 : i64, scratch_operands = 0 : i64, tpu.core_type = #tpu.core_type<tc>, window_params = [{pipeline_mode = #tpu.pipeline_mode<synchronous>, transform_indices = @transform_0, window_bounds = array<i64: 512, 128>}, {transform_indices = @transform_1, window_bounds = array<i64: 128, 16>}, {transform_indices = @transform_2, window_bounds = array<i64: 1, 16>}, {transform_indices = @transform_3, window_bounds = array<i64: 1, 16>}, {transform_indices = @transform_4, window_bounds = array<i64: 512, 16>}]} {
    %c0 = arith.constant 0 : index
    %c0_0 = arith.constant 0 : index
    %0 = vector.load %arg1[%c0, %c0_0] : memref<512x128xbf16, #tpu.memory_space<vmem>>, vector<512x128xbf16>
    %c0_1 = arith.constant 0 : index
    %c0_2 = arith.constant 0 : index
    %1 = vector.load %arg2[%c0_1, %c0_2] : memref<128x16xbf16, #tpu.memory_space<vmem>>, vector<128x16xbf16>
    %cst = arith.constant dense<0.000000e+00> : vector<512x16xf32>
    %2 = tpu.matmul %0, %1, %cst {dimension_numbers = #tpu.dot_dimension_numbers<[1], [0], [0], [1], [0, 0, 1, 1], [], []>} : vector<512x128xbf16>, vector<128x16xbf16>, vector<512x16xf32> -> vector<512x16xf32>
    %cst_3 = arith.constant dense<0.000000e+00> : vector<16xf32>
    %3 = vector.multi_reduction <add>, %2, %cst_3 [0] : vector<512x16xf32> to vector<16xf32>
    %4 = vector.shape_cast %3 : vector<16xf32> to vector<1x16xf32>
    %cst_4 = arith.constant 0.001953125 : f32
    %5 = vector.broadcast %cst_4 : f32 to vector<1x16xf32>
    %6 = arith.mulf %4, %5 : vector<1x16xf32>
    %7 = arith.mulf %2, %2 : vector<512x16xf32>
    %cst_5 = arith.constant dense<0.000000e+00> : vector<16xf32>
    %8 = vector.multi_reduction <add>, %7, %cst_5 [0] : vector<512x16xf32> to vector<16xf32>
    %9 = vector.shape_cast %8 : vector<16xf32> to vector<1x16xf32>
    %cst_6 = arith.constant 0.001953125 : f32
    %10 = vector.broadcast %cst_6 : f32 to vector<1x16xf32>
    %11 = arith.mulf %9, %10 : vector<1x16xf32>
    %12 = arith.mulf %6, %6 : vector<1x16xf32>
    %13 = arith.subf %11, %12 : vector<1x16xf32>
    %cst_7 = arith.constant 0.000000e+00 : f32
    %14 = vector.broadcast %cst_7 : f32 to vector<1x16xf32>
    %15 = arith.maximumf %13, %14 : vector<1x16xf32>
    %c0_8 = arith.constant 0 : index
    %c0_9 = arith.constant 0 : index
    %16 = vector.load %arg3[%c0_8, %c0_9] : memref<1x16xf32, #tpu.memory_space<vmem>>, vector<1x16xf32>
    %cst_10 = arith.constant 9.99999974E-6 : f32
    %17 = vector.broadcast %cst_10 : f32 to vector<1x16xf32>
    %18 = arith.addf %15, %17 : vector<1x16xf32>
    %19 = math.rsqrt %18 : vector<1x16xf32>
    %20 = arith.mulf %16, %19 : vector<1x16xf32>
    %c0_11 = arith.constant 0 : index
    %c0_12 = arith.constant 0 : index
    %21 = vector.load %arg4[%c0_11, %c0_12] : memref<1x16xf32, #tpu.memory_space<vmem>>, vector<1x16xf32>
    %22 = arith.mulf %6, %20 : vector<1x16xf32>
    %23 = arith.subf %21, %22 : vector<1x16xf32>
    %24 = vector.broadcast %20 : vector<1x16xf32> to vector<512x16xf32>
    %25 = arith.mulf %2, %24 : vector<512x16xf32>
    %26 = vector.broadcast %23 : vector<1x16xf32> to vector<512x16xf32>
    %27 = arith.addf %25, %26 : vector<512x16xf32>
    %cst_13 = arith.constant 0.000000e+00 : f32
    %28 = vector.broadcast %cst_13 : f32 to vector<512x16xf32>
    %29 = arith.cmpf oge, %27, %28 : vector<512x16xf32>
    %cst_14 = arith.constant 2.000000e-01 : f32
    %30 = vector.broadcast %cst_14 : f32 to vector<512x16xf32>
    %31 = arith.mulf %30, %27 : vector<512x16xf32>
    %32 = arith.select %29, %27, %31 : vector<512x16xi1>, vector<512x16xf32>
    %33 = arith.truncf %32 : vector<512x16xf32> to vector<512x16xbf16>
    %c0_15 = arith.constant 0 : index
    %c0_16 = arith.constant 0 : index
    %34 = vector.load %arg5[%c0_15, %c0_16] : memref<512x16xbf16, #tpu.memory_space<vmem>>, vector<512x16xbf16>
    tpu.vector_store %arg5[%c0_15, %c0_16], %33 {strides = array<i32>} : memref<512x16xbf16, #tpu.memory_space<vmem>>, vector<512x16xbf16>,
    return
  }
  func.func @transform_0(%arg0: i32) -> (i32, i32) {
    %c0_i32 = arith.constant 0 : i32
    %c0_i32_0 = arith.constant 0 : i32
    %c0_i32_1 = arith.constant 0 : i32
    return %c0_i32, %c0_i32_0 : i32, i32
  }
  func.func @transform_1(%arg0: i32) -> (i32, i32) {
    %c0_i32 = arith.constant 0 : i32
    %c0_i32_0 = arith.constant 0 : i32
    return %c0_i32, %arg0 : i32, i32
  }
  func.func @transform_2(%arg0: i32) -> (i32, i32) {
    %c0_i32 = arith.constant 0 : i32
    %c0_i32_0 = arith.constant 0 : i32
    return %c0_i32, %arg0 : i32, i32
  }
  func.func @transform_3(%arg0: i32) -> (i32, i32) {
    %c0_i32 = arith.constant 0 : i32
    %c0_i32_0 = arith.constant 0 : i32
    return %c0_i32, %arg0 : i32, i32
  }
  func.func @transform_4(%arg0: i32) -> (i32, i32) {
    %c0_i32 = arith.constant 0 : i32
    %c0_i32_0 = arith.constant 0 : i32
    return %c0_i32, %arg0 : i32, i32
  }
}

module attributes {stable_mosaic.version = 11 : i64} {
  func.func @_conv_bn_act_kernel(%arg0: i32, %arg1: memref<128x256xbf16, #tpu.memory_space<vmem>>, %arg2: memref<256x32xbf16, #tpu.memory_space<vmem>>, %arg3: memref<1x32xf32, #tpu.memory_space<vmem>>, %arg4: memref<1x32xf32, #tpu.memory_space<vmem>>, %arg5: memref<128x32xbf16, #tpu.memory_space<vmem>>) attributes {dimension_semantics = [#tpu.dimension_semantics<parallel>], iteration_bounds = array<i64: 1>, scalar_prefetch = 0 : i64, scratch_operands = 0 : i64, tpu.core_type = #tpu.core_type<tc>, window_params = [{pipeline_mode = #tpu.pipeline_mode<synchronous>, transform_indices = @transform_0, window_bounds = array<i64: 128, 256>}, {transform_indices = @transform_1, window_bounds = array<i64: 256, 32>}, {transform_indices = @transform_2, window_bounds = array<i64: 1, 32>}, {transform_indices = @transform_3, window_bounds = array<i64: 1, 32>}, {transform_indices = @transform_4, window_bounds = array<i64: 128, 32>}]} {
    %c0 = arith.constant 0 : index
    %c0_0 = arith.constant 0 : index
    %0 = vector.load %arg1[%c0, %c0_0] : memref<128x256xbf16, #tpu.memory_space<vmem>>, vector<128x256xbf16>
    %c0_1 = arith.constant 0 : index
    %c0_2 = arith.constant 0 : index
    %1 = vector.load %arg2[%c0_1, %c0_2] : memref<256x32xbf16, #tpu.memory_space<vmem>>, vector<256x32xbf16>
    %cst = arith.constant dense<0.000000e+00> : vector<128x32xf32>
    %2 = tpu.matmul %0, %1, %cst {dimension_numbers = #tpu.dot_dimension_numbers<[1], [0], [0], [1], [0, 0, 1, 1], [], []>} : vector<128x256xbf16>, vector<256x32xbf16>, vector<128x32xf32> -> vector<128x32xf32>
    %cst_3 = arith.constant dense<0.000000e+00> : vector<32xf32>
    %3 = vector.multi_reduction <add>, %2, %cst_3 [0] : vector<128x32xf32> to vector<32xf32>
    %4 = vector.shape_cast %3 : vector<32xf32> to vector<1x32xf32>
    %cst_4 = arith.constant 7.812500e-03 : f32
    %5 = vector.broadcast %cst_4 : f32 to vector<1x32xf32>
    %6 = arith.mulf %4, %5 : vector<1x32xf32>
    %7 = arith.mulf %2, %2 : vector<128x32xf32>
    %cst_5 = arith.constant dense<0.000000e+00> : vector<32xf32>
    %8 = vector.multi_reduction <add>, %7, %cst_5 [0] : vector<128x32xf32> to vector<32xf32>
    %9 = vector.shape_cast %8 : vector<32xf32> to vector<1x32xf32>
    %cst_6 = arith.constant 7.812500e-03 : f32
    %10 = vector.broadcast %cst_6 : f32 to vector<1x32xf32>
    %11 = arith.mulf %9, %10 : vector<1x32xf32>
    %12 = arith.mulf %6, %6 : vector<1x32xf32>
    %13 = arith.subf %11, %12 : vector<1x32xf32>
    %cst_7 = arith.constant 0.000000e+00 : f32
    %14 = vector.broadcast %cst_7 : f32 to vector<1x32xf32>
    %15 = arith.maximumf %13, %14 : vector<1x32xf32>
    %c0_8 = arith.constant 0 : index
    %c0_9 = arith.constant 0 : index
    %16 = vector.load %arg3[%c0_8, %c0_9] : memref<1x32xf32, #tpu.memory_space<vmem>>, vector<1x32xf32>
    %cst_10 = arith.constant 9.99999974E-6 : f32
    %17 = vector.broadcast %cst_10 : f32 to vector<1x32xf32>
    %18 = arith.addf %15, %17 : vector<1x32xf32>
    %19 = math.rsqrt %18 : vector<1x32xf32>
    %20 = arith.mulf %16, %19 : vector<1x32xf32>
    %c0_11 = arith.constant 0 : index
    %c0_12 = arith.constant 0 : index
    %21 = vector.load %arg4[%c0_11, %c0_12] : memref<1x32xf32, #tpu.memory_space<vmem>>, vector<1x32xf32>
    %22 = arith.mulf %6, %20 : vector<1x32xf32>
    %23 = arith.subf %21, %22 : vector<1x32xf32>
    %24 = vector.broadcast %20 : vector<1x32xf32> to vector<128x32xf32>
    %25 = arith.mulf %2, %24 : vector<128x32xf32>
    %26 = vector.broadcast %23 : vector<1x32xf32> to vector<128x32xf32>
    %27 = arith.addf %25, %26 : vector<128x32xf32>
    %cst_13 = arith.constant 0.000000e+00 : f32
    %28 = vector.broadcast %cst_13 : f32 to vector<128x32xf32>
    %29 = arith.cmpf oge, %27, %28 : vector<128x32xf32>
    %cst_14 = arith.constant 2.000000e-01 : f32
    %30 = vector.broadcast %cst_14 : f32 to vector<128x32xf32>
    %31 = arith.mulf %30, %27 : vector<128x32xf32>
    %32 = arith.select %29, %27, %31 : vector<128x32xi1>, vector<128x32xf32>
    %33 = arith.truncf %32 : vector<128x32xf32> to vector<128x32xbf16>
    %c0_15 = arith.constant 0 : index
    %c0_16 = arith.constant 0 : index
    %34 = vector.load %arg5[%c0_15, %c0_16] : memref<128x32xbf16, #tpu.memory_space<vmem>>, vector<128x32xbf16>
    tpu.vector_store %arg5[%c0_15, %c0_16], %33 {strides = array<i32>} : memref<128x32xbf16, #tpu.memory_space<vmem>>, vector<128x32xbf16>,
    return
  }
  func.func @transform_0(%arg0: i32) -> (i32, i32) {
    %c0_i32 = arith.constant 0 : i32
    %c0_i32_0 = arith.constant 0 : i32
    %c0_i32_1 = arith.constant 0 : i32
    return %c0_i32, %c0_i32_0 : i32, i32
  }
  func.func @transform_1(%arg0: i32) -> (i32, i32) {
    %c0_i32 = arith.constant 0 : i32
    %c0_i32_0 = arith.constant 0 : i32
    return %c0_i32, %arg0 : i32, i32
  }
  func.func @transform_2(%arg0: i32) -> (i32, i32) {
    %c0_i32 = arith.constant 0 : i32
    %c0_i32_0 = arith.constant 0 : i32
    return %c0_i32, %arg0 : i32, i32
  }
  func.func @transform_3(%arg0: i32) -> (i32, i32) {
    %c0_i32 = arith.constant 0 : i32
    %c0_i32_0 = arith.constant 0 : i32
    return %c0_i32, %arg0 : i32, i32
  }
  func.func @transform_4(%arg0: i32) -> (i32, i32) {
    %c0_i32 = arith.constant 0 : i32
    %c0_i32_0 = arith.constant 0 : i32
    return %c0_i32, %arg0 : i32, i32
  }
}

module attributes {stable_mosaic.version = 11 : i64} {
  func.func @_conv_bn_act_kernel(%arg0: i32, %arg1: memref<32x512xbf16, #tpu.memory_space<vmem>>, %arg2: memref<512x64xbf16, #tpu.memory_space<vmem>>, %arg3: memref<1x64xf32, #tpu.memory_space<vmem>>, %arg4: memref<1x64xf32, #tpu.memory_space<vmem>>, %arg5: memref<32x64xbf16, #tpu.memory_space<vmem>>) attributes {dimension_semantics = [#tpu.dimension_semantics<parallel>], iteration_bounds = array<i64: 1>, scalar_prefetch = 0 : i64, scratch_operands = 0 : i64, tpu.core_type = #tpu.core_type<tc>, window_params = [{pipeline_mode = #tpu.pipeline_mode<synchronous>, transform_indices = @transform_0, window_bounds = array<i64: 32, 512>}, {transform_indices = @transform_1, window_bounds = array<i64: 512, 64>}, {transform_indices = @transform_2, window_bounds = array<i64: 1, 64>}, {transform_indices = @transform_3, window_bounds = array<i64: 1, 64>}, {transform_indices = @transform_4, window_bounds = array<i64: 32, 64>}]} {
    %c0 = arith.constant 0 : index
    %c0_0 = arith.constant 0 : index
    %0 = vector.load %arg1[%c0, %c0_0] : memref<32x512xbf16, #tpu.memory_space<vmem>>, vector<32x512xbf16>
    %c0_1 = arith.constant 0 : index
    %c0_2 = arith.constant 0 : index
    %1 = vector.load %arg2[%c0_1, %c0_2] : memref<512x64xbf16, #tpu.memory_space<vmem>>, vector<512x64xbf16>
    %cst = arith.constant dense<0.000000e+00> : vector<32x64xf32>
    %2 = tpu.matmul %0, %1, %cst {dimension_numbers = #tpu.dot_dimension_numbers<[1], [0], [0], [1], [0, 0, 1, 1], [], []>} : vector<32x512xbf16>, vector<512x64xbf16>, vector<32x64xf32> -> vector<32x64xf32>
    %cst_3 = arith.constant dense<0.000000e+00> : vector<64xf32>
    %3 = vector.multi_reduction <add>, %2, %cst_3 [0] : vector<32x64xf32> to vector<64xf32>
    %4 = vector.shape_cast %3 : vector<64xf32> to vector<1x64xf32>
    %cst_4 = arith.constant 3.125000e-02 : f32
    %5 = vector.broadcast %cst_4 : f32 to vector<1x64xf32>
    %6 = arith.mulf %4, %5 : vector<1x64xf32>
    %7 = arith.mulf %2, %2 : vector<32x64xf32>
    %cst_5 = arith.constant dense<0.000000e+00> : vector<64xf32>
    %8 = vector.multi_reduction <add>, %7, %cst_5 [0] : vector<32x64xf32> to vector<64xf32>
    %9 = vector.shape_cast %8 : vector<64xf32> to vector<1x64xf32>
    %cst_6 = arith.constant 3.125000e-02 : f32
    %10 = vector.broadcast %cst_6 : f32 to vector<1x64xf32>
    %11 = arith.mulf %9, %10 : vector<1x64xf32>
    %12 = arith.mulf %6, %6 : vector<1x64xf32>
    %13 = arith.subf %11, %12 : vector<1x64xf32>
    %cst_7 = arith.constant 0.000000e+00 : f32
    %14 = vector.broadcast %cst_7 : f32 to vector<1x64xf32>
    %15 = arith.maximumf %13, %14 : vector<1x64xf32>
    %c0_8 = arith.constant 0 : index
    %c0_9 = arith.constant 0 : index
    %16 = vector.load %arg3[%c0_8, %c0_9] : memref<1x64xf32, #tpu.memory_space<vmem>>, vector<1x64xf32>
    %cst_10 = arith.constant 9.99999974E-6 : f32
    %17 = vector.broadcast %cst_10 : f32 to vector<1x64xf32>
    %18 = arith.addf %15, %17 : vector<1x64xf32>
    %19 = math.rsqrt %18 : vector<1x64xf32>
    %20 = arith.mulf %16, %19 : vector<1x64xf32>
    %c0_11 = arith.constant 0 : index
    %c0_12 = arith.constant 0 : index
    %21 = vector.load %arg4[%c0_11, %c0_12] : memref<1x64xf32, #tpu.memory_space<vmem>>, vector<1x64xf32>
    %22 = arith.mulf %6, %20 : vector<1x64xf32>
    %23 = arith.subf %21, %22 : vector<1x64xf32>
    %24 = vector.broadcast %20 : vector<1x64xf32> to vector<32x64xf32>
    %25 = arith.mulf %2, %24 : vector<32x64xf32>
    %26 = vector.broadcast %23 : vector<1x64xf32> to vector<32x64xf32>
    %27 = arith.addf %25, %26 : vector<32x64xf32>
    %cst_13 = arith.constant 0.000000e+00 : f32
    %28 = vector.broadcast %cst_13 : f32 to vector<32x64xf32>
    %29 = arith.cmpf oge, %27, %28 : vector<32x64xf32>
    %cst_14 = arith.constant 2.000000e-01 : f32
    %30 = vector.broadcast %cst_14 : f32 to vector<32x64xf32>
    %31 = arith.mulf %30, %27 : vector<32x64xf32>
    %32 = arith.select %29, %27, %31 : vector<32x64xi1>, vector<32x64xf32>
    %33 = arith.truncf %32 : vector<32x64xf32> to vector<32x64xbf16>
    %c0_15 = arith.constant 0 : index
    %c0_16 = arith.constant 0 : index
    %34 = vector.load %arg5[%c0_15, %c0_16] : memref<32x64xbf16, #tpu.memory_space<vmem>>, vector<32x64xbf16>
    tpu.vector_store %arg5[%c0_15, %c0_16], %33 {strides = array<i32>} : memref<32x64xbf16, #tpu.memory_space<vmem>>, vector<32x64xbf16>,
    return
  }
  func.func @transform_0(%arg0: i32) -> (i32, i32) {
    %c0_i32 = arith.constant 0 : i32
    %c0_i32_0 = arith.constant 0 : i32
    %c0_i32_1 = arith.constant 0 : i32
    return %c0_i32, %c0_i32_0 : i32, i32
  }
  func.func @transform_1(%arg0: i32) -> (i32, i32) {
    %c0_i32 = arith.constant 0 : i32
    %c0_i32_0 = arith.constant 0 : i32
    return %c0_i32, %arg0 : i32, i32
  }
  func.func @transform_2(%arg0: i32) -> (i32, i32) {
    %c0_i32 = arith.constant 0 : i32
    %c0_i32_0 = arith.constant 0 : i32
    return %c0_i32, %arg0 : i32, i32
  }
  func.func @transform_3(%arg0: i32) -> (i32, i32) {
    %c0_i32 = arith.constant 0 : i32
    %c0_i32_0 = arith.constant 0 : i32
    return %c0_i32, %arg0 : i32, i32
  }
  func.func @transform_4(%arg0: i32) -> (i32, i32) {
    %c0_i32 = arith.constant 0 : i32
    %c0_i32_0 = arith.constant 0 : i32
    return %c0_i32, %arg0 : i32, i32
  }
}

</mosaic_0001>

<llo_original>
// kernel: discriminator_forward.4
$region0: #{discriminator_forward.4}
  #allocation0 [shape = 'u32[]', space=smem, size = 0x4, offset = 0x4, fixed_abs, tag = 'smem constant byte address 0x4 - core index']
  #allocation1 [shape = 'u32[144,128]{1,0:T(1,128)}', space=vmem, size = 0x12000, scoped, tag = 'internal scratch']
  %s0 = inlined_call_operand.vmem [shape: bf16[2048,48], index: 0, kind: input, shape index: {}]
  %s1 = inlined_call_operand.vmem [shape: bf16[48,8], index: 1, kind: input, shape index: {}]
  %s2 = inlined_call_operand.vmem [shape: bf16[2048,8], index: 2, kind: output, shape index: {}]
  %s3 = sld [smem:[#allocation0]]
  $region41: #{discriminator_forward.4} parent=0
    _
  %s5 = ssub.s32 1, %s3
  %s6 = scalar_select 0, %s5, %s3
  loop: start=0, step=1, limit=6
  $region2: #{discriminator_forward.4} parent=0 // loop_pre_header
    _
  $region3: #{discriminator_forward.4} parent=0 // loop_header
    %s8 = sphi 0, %s12
    %p9 = scmp.ge.s32.totalorder %s8, 6
    %s15 = sphi 0, %s27
    %s16 = sphi 0, %s23
    %s17 = sphi 0, %s15
    %s18 = sphi 0, %s16
    %s19 = sphi 0, %s17
    %s20 = sphi 0, %s18
    %s30 = sphi 0, %s32
    %s33 = sphi 0, %s30
    %s34 = sphi 0, %s33
    %s50 = sphi 0, %s34
    %s56 = sphi 0, %s58
    %s59 = sphi 0, %s56
    %s60 = sphi 0, %s59
    %s76 = sphi 0, %s60
    %s84 = sphi 0, %s86
    %s87 = sphi 0, %s84
    %s88 = sphi 0, %s87
    %s104 = sphi 0, %s88
  $region4: #{discriminator_forward.4} parent=0 // loop_header_branch
    %11 = sbr.rel (%p9) target = $region8
  $region5: #{discriminator_forward.4} parent=0 // loop_body
    %s13 = ssub.s32 %s8, 1
    %s14 = ssub.s32 %s8, 2
    %s21 = sadd.s32 1, %s16
    %p22 = scmp.ge.s32.totalorder %s21, 1
    %s23 = scalar_select %p22, 0, %s21
    %s24 = sadd.s32 1, %s15
    %s25 = scalar_select %p22, %s24, %s15
    %p26 = scmp.ge.s32.totalorder %s25, 4
    %s27 = scalar_select %p26, 0, %s25
    %s28 = ssub.s32 %s15, %s27
    %p29 = scmp.eq.s32.totalorder %s28, 0
    %s31 = sadd.s32 %s30, 1
    %s32 = scalar_select %p29, %s30, %s31
    %p35 = pneg %p29
    %p36 = scmp.eq.s32.totalorder %s8, 3
    %p37 = por %p35, %p36
    %p38 = scmp.ne.s32.totalorder %s30, %s33
    %p39 = scmp.eq.s32.totalorder %s8, 0
    %p40 = por %p38, %p39
    %p41 = scmp.ne.s32.totalorder %s30, %s33
    %p42 = scmp.eq.s32.totalorder %s13, 3
    %p43 = por %p41, %p42
    %p44 = scmp.ne.s32.totalorder %s33, %s34
    %p45 = scmp.eq.s32.totalorder %s13, 0
    %p46 = por %p44, %p45
    %p47 = scmp.ne.s32.totalorder %s33, %s34
    %p48 = scmp.eq.s32.totalorder %s14, 3
    %p49 = por %p47, %p48
    %p51 = scmp.ne.s32.totalorder %s34, %s50
    %p52 = scmp.eq.s32.totalorder %s14, 0
    %p53 = por %p51, %p52
    %s54 = ssub.s32 %s16, %s23
    %p55 = scmp.eq.s32.totalorder %s54, 0
    %s57 = sadd.s32 %s56, 1
    %s58 = scalar_select %p55, %s56, %s57
    %p61 = pneg %p55
    %p62 = scmp.eq.s32.totalorder %s8, 3
    %p63 = por %p61, %p62
    %p64 = scmp.ne.s32.totalorder %s56, %s59
    %p65 = scmp.eq.s32.totalorder %s8, 0
    %p66 = por %p64, %p65
    %p67 = scmp.ne.s32.totalorder %s56, %s59
    %p68 = scmp.eq.s32.totalorder %s13, 3
    %p69 = por %p67, %p68
    %p70 = scmp.ne.s32.totalorder %s59, %s60
    %p71 = scmp.eq.s32.totalorder %s13, 0
    %p72 = por %p70, %p71
    %p73 = scmp.ne.s32.totalorder %s59, %s60
    %p74 = scmp.eq.s32.totalorder %s14, 3
    %p75 = por %p73, %p74
    %p77 = scmp.ne.s32.totalorder %s60, %s76
    %p78 = scmp.eq.s32.totalorder %s14, 0
    %p79 = por %p77, %p78
    %s80 = ssub.s32 %s15, %s27
    %s81 = ssub.s32 %s16, %s23
    %s82 = sor.u32 %s80, %s81
    %p83 = scmp.eq.s32.totalorder %s82, 0
    %s85 = sadd.s32 %s84, 1
    %s86 = scalar_select %p83, %s84, %s85
    %p89 = pneg %p83
    %p90 = scmp.eq.s32.totalorder %s8, 3
    %p91 = por %p89, %p90
    %p92 = scmp.ne.s32.totalorder %s84, %s87
    %p93 = scmp.eq.s32.totalorder %s8, 0
    %p94 = por %p92, %p93
    %p95 = scmp.ne.s32.totalorder %s84, %s87
    %p96 = scmp.eq.s32.totalorder %s13, 3
    %p97 = por %p95, %p96
    %p98 = scmp.ne.s32.totalorder %s87, %s88
    %p99 = scmp.eq.s32.totalorder %s13, 0
    %p100 = por %p98, %p99
    %p101 = scmp.ne.s32.totalorder %s87, %s88
    %p102 = scmp.eq.s32.totalorder %s14, 3
    %p103 = por %p101, %p102
    %p105 = scmp.ne.s32.totalorder %s88, %s104
    %p106 = scmp.eq.s32.totalorder %s14, 0
    %p107 = por %p105, %p106
    %p108 = scmp.le.s32.totalorder 1, %s8
    %p109 = scmp.lt.s32.totalorder %s8, 5
    %p110 = pnand %p108, %p109
    %p111 = pneg %p110
    // Predicated region
    $region9: #{discriminator_forward.4} parent=5 // pred_check
      _
    $region10: #{discriminator_forward.4} parent=5 // pred_check_branch
      %113 = sbr.rel (%p110) target = $region12
    $region11: #{discriminator_forward.4} parent=5 // pred_region
      %s114 = ssub.s32 %s8, 1
      // Predicated region
      $region13: #{discriminator_forward.4} parent=11 // pred_check
        %p115 = pneg %p72
      $region14: #{discriminator_forward.4} parent=11 // pred_check_branch
        %117 = sbr.rel (%p115) target = $region16
      $region15: #{discriminator_forward.4} parent=11 // pred_region
        %p118 = scmp.lt.s32.totalorder %s18, 0
        %s119 = scalar_select %p118, %s18, 0
        %s120 = smul.addr %s119, 4
        %s121 = scalar_lea.vmem %s1, %s120
      $region16: #{discriminator_forward.4} parent=11 // pred_fallthru
        _
    $region12: #{discriminator_forward.4} parent=5 // pred_fallthru
      _
    %p122 = scmp.lt.s32.totalorder %s8, 4
    // Predicated region
    $region17: #{discriminator_forward.4} parent=5 // pred_check
      %p123 = pneg %p122
    $region18: #{discriminator_forward.4} parent=5 // pred_check_branch
      %125 = sbr.rel (%p123) target = $region20
    $region19: #{discriminator_forward.4} parent=5 // pred_region
      // Predicated region
      $region21: #{discriminator_forward.4} parent=19 // pred_check
        %p126 = pneg %p40
      $region22: #{discriminator_forward.4} parent=19 // pred_check_branch
        %128 = sbr.rel (%p126) target = $region24
      $region23: #{discriminator_forward.4} parent=19 // pred_region
        %s129 = smul.u32 64, %s15
        %p130 = scmp.lt.s32.totalorder %s129, 255
        %s131 = scalar_select %p130, %s129, 255
        %s132 = smul.addr %s131, 4
        %s133 = scalar_lea.vmem %s0, %s132
        %s134 = smul.u32 64, %s15
      $region24: #{discriminator_forward.4} parent=19 // pred_fallthru
        _
    $region20: #{discriminator_forward.4} parent=5 // pred_fallthru
      _
    %p135 = scmp.le.s32.totalorder 1, %s8
    %p136 = scmp.lt.s32.totalorder %s8, 5
    %p137 = pnand %p135, %p136
    %p138 = pneg %p137
    // Predicated region
    $region25: #{discriminator_forward.4} parent=5 // pred_check
      _
    $region26: #{discriminator_forward.4} parent=5 // pred_check_branch
      %140 = sbr.rel (%p137) target = $region28
    $region27: #{discriminator_forward.4} parent=5 // pred_region
      %s141 = ssub.s32 %s8, 1
      %s142 = smul.u32 64, %s17
      %p143 = scmp.lt.s32.totalorder %s142, 255
      %s144 = scalar_select %p143, %s142, 255
      %s145 = smul.addr %s144, 4
      %s146 = scalar_lea.vmem %s0, %s145
      %p147 = pneg %p46
      %p148 = pneg %p43
      %p149 = scmp.lt.s32.totalorder %s18, 0
      %s150 = scalar_select %p149, %s18, 0
      %s151 = smul.addr %s150, 4
      %s152 = scalar_lea.vmem %s1, %s151
      %p153 = pneg %p72
      %p154 = pneg %p69
      %p155 = pneg %p100
      %p156 = pneg %p97
      %s157 = smul.u32 64, %s17
      %p158 = scmp.lt.s32.totalorder %s157, 255
      %s159 = scalar_select %p158, %s157, 255
      %p160 = scmp.lt.s32.totalorder %s18, 0
      %s161 = scalar_select %p160, %s18, 0
      %s162 = sadd.s32 %s161, %s159
      %s163 = smul.addr %s162, 4
      %s164 = scalar_lea.vmem %s2, %s163
      %s165 = smul.u32 64, %s17
      %p166 = scmp.lt.s32.totalorder %s165, 255
      %s167 = scalar_select %p166, %s165, 255
      %s168 = smul.addr %s167, 4
      %s169 = scalar_lea.vmem %s0, %s168
      %s170 = smul.u32 64, %s17
      %p171 = scmp.lt.s32.totalorder %s18, 0
      %s172 = scalar_select %p171, %s18, 0
      %s173 = smul.addr %s172, 4
      %s174 = scalar_lea.vmem %s1, %s173
      %s175 = smul.u32 64, %s17
      %p176 = scmp.lt.s32.totalorder %s175, 255
      %s177 = scalar_select %p176, %s175, 255
      %p178 = scmp.lt.s32.totalorder %s18, 0
      %s179 = scalar_select %p178, %s18, 0
      %s180 = sadd.s32 %s179, %s177
      %s181 = smul.addr %s180, 4
      %s182 = scalar_lea.vmem %s2, %s181
      %s183 = smul.u32 64, %s17
      %v185 = vld [vmem:[%s169] sm:$0xf]
      %v186 = vld [vmem:[%s169 + $0x4] sm:$0xf]
      %v187 = vld [vmem:[%s169 + $0x8] sm:$0xf]
      %v188 = vld [vmem:[%s169 + $0xc] sm:$0xf]
      %v189 = vld [vmem:[%s169 + $0x10] sm:$0xf]
      %v190 = vld [vmem:[%s169 + $0x14] sm:$0xf]
      %v191 = vld [vmem:[%s169 + $0x18] sm:$0xf]
      %v192 = vld [vmem:[%s169 + $0x1c] sm:$0xf]
      %v193 = vld [vmem:[%s169 + $0x20] sm:$0xf]
      %v194 = vld [vmem:[%s169 + $0x24] sm:$0xf]
      %v195 = vld [vmem:[%s169 + $0x28] sm:$0xf]
      %v196 = vld [vmem:[%s169 + $0x2c] sm:$0xf]
      %v197 = vld [vmem:[%s169 + $0x30] sm:$0xf]
      %v198 = vld [vmem:[%s169 + $0x34] sm:$0xf]
      %v199 = vld [vmem:[%s169 + $0x38] sm:$0xf]
      %v200 = vld [vmem:[%s169 + $0x3c] sm:$0xf]
      %v201 = vld [vmem:[%s169 + $0x40] sm:$0xf]
      %v202 = vld [vmem:[%s169 + $0x44] sm:$0xf]
      %v203 = vld [vmem:[%s169 + $0x48] sm:$0xf]
      %v204 = vld [vmem:[%s169 + $0x4c] sm:$0xf]
      %v205 = vld [vmem:[%s169 + $0x50] sm:$0xf]
      %v206 = vld [vmem:[%s169 + $0x54] sm:$0xf]
      %v207 = vld [vmem:[%s169 + $0x58] sm:$0xf]
      %v208 = vld [vmem:[%s169 + $0x5c] sm:$0xf]
      %v209 = vld [vmem:[%s169 + $0x60] sm:$0xf]
      %v210 = vld [vmem:[%s169 + $0x64] sm:$0xf]
      %v211 = vld [vmem:[%s169 + $0x68] sm:$0xf]
      %v212 = vld [vmem:[%s169 + $0x6c] sm:$0xf]
      %v213 = vld [vmem:[%s169 + $0x70] sm:$0xf]
      %v214 = vld [vmem:[%s169 + $0x74] sm:$0xf]
      %v215 = vld [vmem:[%s169 + $0x78] sm:$0xf]
      %v216 = vld [vmem:[%s169 + $0x7c] sm:$0xf]
      %v217 = vld [vmem:[%s169 + $0x80] sm:$0xf]
      %v218 = vld [vmem:[%s169 + $0x84] sm:$0xf]
      %v219 = vld [vmem:[%s169 + $0x88] sm:$0xf]
      %v220 = vld [vmem:[%s169 + $0x8c] sm:$0xf]
      %v221 = vld [vmem:[%s169 + $0x90] sm:$0xf]
      %v222 = vld [vmem:[%s169 + $0x94] sm:$0xf]
      %v223 = vld [vmem:[%s169 + $0x98] sm:$0xf]
      %v224 = vld [vmem:[%s169 + $0x9c] sm:$0xf]
      %v225 = vld [vmem:[%s169 + $0xa0] sm:$0xf]
      %v226 = vld [vmem:[%s169 + $0xa4] sm:$0xf]
      %v227 = vld [vmem:[%s169 + $0xa8] sm:$0xf]
      %v228 = vld [vmem:[%s169 + $0xac] sm:$0xf]
      %v229 = vld [vmem:[%s169 + $0xb0] sm:$0xf]
      %v230 = vld [vmem:[%s169 + $0xb4] sm:$0xf]
      %v231 = vld [vmem:[%s169 + $0xb8] sm:$0xf]
      %v232 = vld [vmem:[%s169 + $0xbc] sm:$0xf]
      %v233 = vld [vmem:[%s169 + $0xc0] sm:$0xf]
      %v234 = vld [vmem:[%s169 + $0xc4] sm:$0xf]
      %v235 = vld [vmem:[%s169 + $0xc8] sm:$0xf]
      %v236 = vld [vmem:[%s169 + $0xcc] sm:$0xf]
      %v237 = vld [vmem:[%s169 + $0xd0] sm:$0xf]
      %v238 = vld [vmem:[%s169 + $0xd4] sm:$0xf]
      %v239 = vld [vmem:[%s169 + $0xd8] sm:$0xf]
      %v240 = vld [vmem:[%s169 + $0xdc] sm:$0xf]
      %v241 = vld [vmem:[%s169 + $0xe0] sm:$0xf]
      %v242 = vld [vmem:[%s169 + $0xe4] sm:$0xf]
      %v243 = vld [vmem:[%s169 + $0xe8] sm:$0xf]
      %v244 = vld [vmem:[%s169 + $0xec] sm:$0xf]
      %v245 = vld [vmem:[%s169 + $0xf0] sm:$0xf]
      %v246 = vld [vmem:[%s169 + $0xf4] sm:$0xf]
      %v247 = vld [vmem:[%s169 + $0xf8] sm:$0xf]
      %v248 = vld [vmem:[%s169 + $0xfc] sm:$0xf]
      %v249 = vld [vmem:[%s174] sm:$0xf]
      %v250 = vld [vmem:[%s174 + $0x4] sm:$0xf]
      %v251 = vld [vmem:[%s174 + $0x8] sm:$0xf]
      %v252 = vld [vmem:[%s174 + $0xc] sm:$0xf]
      %v253 = vld [vmem:[%s174 + $0x10] sm:$0xf]
      %v254 = vld [vmem:[%s174 + $0x14] sm:$0xf]
      %v319 = vunpack.c.l.b16 %v185
      %v320 = vunpack.c.l.b16 %v186
      %v321 = vunpack.c.l.b16 %v187
      %v322 = vunpack.c.l.b16 %v188
      %v323 = vunpack.c.l.b16 %v189
      %v324 = vunpack.c.l.b16 %v190
      %v325 = vunpack.c.l.b16 %v191
      %v326 = vunpack.c.l.b16 %v192
      %v327 = vunpack.c.l.b16 %v193
      %v328 = vunpack.c.l.b16 %v194
      %v329 = vunpack.c.l.b16 %v195
      %v330 = vunpack.c.l.b16 %v196
      %v331 = vunpack.c.l.b16 %v197
      %v332 = vunpack.c.l.b16 %v198
      %v333 = vunpack.c.l.b16 %v199
      %v334 = vunpack.c.l.b16 %v200
      %v335 = vunpack.c.l.b16 %v201
      %v336 = vunpack.c.l.b16 %v202
      %v337 = vunpack.c.l.b16 %v203
      %v338 = vunpack.c.l.b16 %v204
      %v339 = vunpack.c.l.b16 %v205
      %v340 = vunpack.c.l.b16 %v206
      %v341 = vunpack.c.l.b16 %v207
      %v342 = vunpack.c.l.b16 %v208
      %v343 = vunpack.c.l.b16 %v209
      %v344 = vunpack.c.l.b16 %v210
      %v345 = vunpack.c.l.b16 %v211
      %v346 = vunpack.c.l.b16 %v212
      %v347 = vunpack.c.l.b16 %v213
      %v348 = vunpack.c.l.b16 %v214
      %v349 = vunpack.c.l.b16 %v215
      %v350 = vunpack.c.l.b16 %v216
      %v351 = vunpack.c.l.b16 %v217
      %v352 = vunpack.c.l.b16 %v218
      %v353 = vunpack.c.l.b16 %v219
      %v354 = vunpack.c.l.b16 %v220
      %v355 = vunpack.c.l.b16 %v221
      %v356 = vunpack.c.l.b16 %v222
      %v357 = vunpack.c.l.b16 %v223
      %v358 = vunpack.c.l.b16 %v224
      %v359 = vunpack.c.l.b16 %v225
      %v360 = vunpack.c.l.b16 %v226
      %v361 = vunpack.c.l.b16 %v227
      %v362 = vunpack.c.l.b16 %v228
      %v363 = vunpack.c.l.b16 %v229
      %v364 = vunpack.c.l.b16 %v230
      %v365 = vunpack.c.l.b16 %v231
      %v366 = vunpack.c.l.b16 %v232
      %v367 = vunpack.c.l.b16 %v233
      %v368 = vunpack.c.l.b16 %v234
      %v369 = vunpack.c.l.b16 %v235
      %v370 = vunpack.c.l.b16 %v236
      %v371 = vunpack.c.l.b16 %v237
      %v372 = vunpack.c.l.b16 %v238
      %v373 = vunpack.c.l.b16 %v239
      %v374 = vunpack.c.l.b16 %v240
      %v375 = vunpack.c.l.b16 %v241
      %v376 = vunpack.c.l.b16 %v242
      %v377 = vunpack.c.l.b16 %v243
      %v378 = vunpack.c.l.b16 %v244
      %v379 = vunpack.c.l.b16 %v245
      %v380 = vunpack.c.l.b16 %v246
      %v381 = vunpack.c.l.b16 %v247
      %v382 = vunpack.c.l.b16 %v248
      %v383 = vpack.c.b16 %v320, %v319
      %v384 = vpack.c.b16 %v322, %v321
      %v385 = vpack.c.b16 %v324, %v323
      %v386 = vpack.c.b16 %v326, %v325
      %v387 = vpack.c.b16 %v328, %v327
      %v388 = vpack.c.b16 %v330, %v329
      %v389 = vpack.c.b16 %v332, %v331
      %v390 = vpack.c.b16 %v334, %v333
      %v391 = vpack.c.b16 %v336, %v335
      %v392 = vpack.c.b16 %v338, %v337
      %v393 = vpack.c.b16 %v340, %v339
      %v394 = vpack.c.b16 %v342, %v341
      %v395 = vpack.c.b16 %v344, %v343
      %v396 = vpack.c.b16 %v346, %v345
      %v397 = vpack.c.b16 %v348, %v347
      %v398 = vpack.c.b16 %v350, %v349
      %v399 = vpack.c.b16 %v352, %v351
      %v400 = vpack.c.b16 %v354, %v353
      %v401 = vpack.c.b16 %v356, %v355
      %v402 = vpack.c.b16 %v358, %v357
      %v403 = vpack.c.b16 %v360, %v359
      %v404 = vpack.c.b16 %v362, %v361
      %v405 = vpack.c.b16 %v364, %v363
      %v406 = vpack.c.b16 %v366, %v365
      %v407 = vpack.c.b16 %v368, %v367
      %v408 = vpack.c.b16 %v370, %v369
      %v409 = vpack.c.b16 %v372, %v371
      %v410 = vpack.c.b16 %v374, %v373
      %v411 = vpack.c.b16 %v376, %v375
      %v412 = vpack.c.b16 %v378, %v377
      %v413 = vpack.c.b16 %v380, %v379
      %v414 = vpack.c.b16 %v382, %v381
      %v421 = vunpack.c.l.b16 %v249
      %v422 = vunpack.c.l.b16 %v250
      %v423 = vunpack.c.l.b16 %v251
      %v424 = vunpack.c.l.b16 %v252
      %v425 = vunpack.c.l.b16 %v253
      %v426 = vunpack.c.l.b16 %v254
      %v427 = vpack.c.b16 %v422, %v421
      %v428 = vpack.c.b16 %v424, %v423
      %v429 = vpack.c.b16 %v426, %v425
      %vm433 = vcmask 392192
      %v435 = vsel %vm433, %v383, 0
      %v438 = vsel %vm433, %v384, 0
      %v441 = vsel %vm433, %v385, 0
      %v444 = vsel %vm433, %v386, 0
      %v447 = vsel %vm433, %v387, 0
      %v450 = vsel %vm433, %v388, 0
      %v453 = vsel %vm433, %v389, 0
      %v456 = vsel %vm433, %v390, 0
      %v459 = vsel %vm433, %v391, 0
      %v462 = vsel %vm433, %v392, 0
      %v465 = vsel %vm433, %v393, 0
      %v468 = vsel %vm433, %v394, 0
      %v471 = vsel %vm433, %v395, 0
      %v474 = vsel %vm433, %v396, 0
      %v477 = vsel %vm433, %v397, 0
      %v480 = vsel %vm433, %v398, 0
      %v483 = vsel %vm433, %v399, 0
      %v486 = vsel %vm433, %v400, 0
      %v489 = vsel %vm433, %v401, 0
      %v492 = vsel %vm433, %v402, 0
      %v495 = vsel %vm433, %v403, 0
      %v498 = vsel %vm433, %v404, 0
      %v501 = vsel %vm433, %v405, 0
      %v504 = vsel %vm433, %v406, 0
      %v507 = vsel %vm433, %v407, 0
      %v510 = vsel %vm433, %v408, 0
      %v513 = vsel %vm433, %v409, 0
      %v516 = vsel %vm433, %v410, 0
      %v519 = vsel %vm433, %v411, 0
      %v522 = vsel %vm433, %v412, 0
      %v525 = vsel %vm433, %v413, 0
      %v528 = vsel %vm433, %v414, 0
      %530 = vmatprep.subr.bf16.mxu0 0
      %531 = vmatpush1.bf16.msra.mxu0 %v427
      %532 = vmatprep.subr.bf16.mxu0 0
      %533 = vmatpush1.bf16.msra.mxu0 %v428
      %534 = vmatprep.subr.bf16.mxu0 0
      %535 = vmatpush1.bf16.msra.mxu0 %v429
      %536 = vmatprep.subr.bf16.mxu0 0
      %537 = vmatpush1.bf16.msra.mxu0 0
      %538 = vmatprep.subr.bf16.mxu0 0
      %539 = vmatpush1.bf16.msra.mxu0 0
      %540 = vmatprep.subr.bf16.mxu0 0
      %541 = vmatpush1.bf16.msra.mxu0 0
      %542 = vmatprep.subr.bf16.mxu0 0
      %543 = vmatpush1.bf16.msra.mxu0 0
      %544 = vmatprep.subr.bf16.mxu0 0
      %545 = vmatpush1.bf16.msra.mxu0 0
      %546 = vmatprep.subr.bf16.mxu0 0
      %547 = vmatpush1.bf16.msra.mxu0 0
      %548 = vmatprep.subr.bf16.mxu0 0
      %549 = vmatpush1.bf16.msra.mxu0 0
      %550 = vmatprep.subr.bf16.mxu0 0
      %551 = vmatpush1.bf16.msra.mxu0 0
      %552 = vmatprep.subr.bf16.mxu0 0
      %553 = vmatpush1.bf16.msra.mxu0 0
      %554 = vmatprep.subr.bf16.mxu0 0
      %555 = vmatpush1.bf16.msra.mxu0 0
      %556 = vmatprep.subr.bf16.mxu0 0
      %557 = vmatpush1.bf16.msra.mxu0 0
      %558 = vmatprep.subr.bf16.mxu0 0
      %559 = vmatpush1.bf16.msra.mxu0 0
      %560 = vmatprep.subr.bf16.mxu0 0
      %561 = vmatpush1.bf16.msra.mxu0 0
      %562 = vmatprep.mubr.bf16.mxu0 0
      %563 = vmatmul.mubr.bf16.gmra.mrb[0].mxu0 %v435
      %v564 = vpop.f32.mrb[0].mxu0
      %v565 = vadd.f32 0.0, %v564
      %v566 = vpop.f32.mrb[0].mxu0
      %v567 = vpop.f32.mrb[0].mxu0
      %v568 = vadd.f32 0.0, %v567
      %v569 = vpop.f32.mrb[0].mxu0
      %570 = vmatprep.mubr.bf16.mxu0 0
      %571 = vmatmul.mubr.bf16.gmra.mrb[0].mxu0 %v438
      %v572 = vpop.f32.mrb[0].mxu0
      %v573 = vadd.f32 0.0, %v572
      %v574 = vpop.f32.mrb[0].mxu0
      %v575 = vpop.f32.mrb[0].mxu0
      %v576 = vadd.f32 0.0, %v575
      %v577 = vpop.f32.mrb[0].mxu0
      %578 = vmatprep.mubr.bf16.mxu0 0
      %579 = vmatmul.mubr.bf16.gmra.mrb[0].mxu0 %v441
      %v580 = vpop.f32.mrb[0].mxu0
      %v581 = vadd.f32 0.0, %v580
      %v582 = vpop.f32.mrb[0].mxu0
      %v583 = vpop.f32.mrb[0].mxu0
      %v584 = vadd.f32 0.0, %v583
      %v585 = vpop.f32.mrb[0].mxu0
      %586 = vmatprep.mubr.bf16.mxu0 0
      %587 = vmatmul.mubr.bf16.gmra.mrb[0].mxu0 %v444
      %v588 = vpop.f32.mrb[0].mxu0
      %v589 = vadd.f32 0.0, %v588
      %v590 = vpop.f32.mrb[0].mxu0
      %v591 = vpop.f32.mrb[0].mxu0
      %v592 = vadd.f32 0.0, %v591
      %v593 = vpop.f32.mrb[0].mxu0
      %594 = vmatprep.mubr.bf16.mxu0 0
      %595 = vmatmul.mubr.bf16.gmra.mrb[0].mxu0 %v447
      %v596 = vpop.f32.mrb[0].mxu0
      %v597 = vadd.f32 0.0, %v596
      %v598 = vpop.f32.mrb[0].mxu0
      %v599 = vpop.f32.mrb[0].mxu0
      %v600 = vadd.f32 0.0, %v599
      %v601 = vpop.f32.mrb[0].mxu0
      %602 = vmatprep.mubr.bf16.mxu0 0
      %603 = vmatmul.mubr.bf16.gmra.mrb[0].mxu0 %v450
      %v604 = vpop.f32.mrb[0].mxu0
      %v605 = vadd.f32 0.0, %v604
      %v606 = vpop.f32.mrb[0].mxu0
      %v607 = vpop.f32.mrb[0].mxu0
      %v608 = vadd.f32 0.0, %v607
      %v609 = vpop.f32.mrb[0].mxu0
      %610 = vmatprep.mubr.bf16.mxu0 0
      %611 = vmatmul.mubr.bf16.gmra.mrb[0].mxu0 %v453
      %v612 = vpop.f32.mrb[0].mxu0
      %v613 = vadd.f32 0.0, %v612
      %v614 = vpop.f32.mrb[0].mxu0
      %v615 = vpop.f32.mrb[0].mxu0
      %v616 = vadd.f32 0.0, %v615
      %v617 = vpop.f32.mrb[0].mxu0
      %618 = vmatprep.mubr.bf16.mxu0 0
      %619 = vmatmul.mubr.bf16.gmra.mrb[0].mxu0 %v456
      %v620 = vpop.f32.mrb[0].mxu0
      %v621 = vadd.f32 0.0, %v620
      %v622 = vpop.f32.mrb[0].mxu0
      %v623 = vpop.f32.mrb[0].mxu0
      %v624 = vadd.f32 0.0, %v623
      %v625 = vpop.f32.mrb[0].mxu0
      %626 = vmatprep.mubr.bf16.mxu0 0
      %627 = vmatmul.mubr.bf16.gmra.mrb[0].mxu0 %v459
      %v628 = vpop.f32.mrb[0].mxu0
      %v629 = vadd.f32 0.0, %v628
      %v630 = vpop.f32.mrb[0].mxu0
      %v631 = vpop.f32.mrb[0].mxu0
      %v632 = vadd.f32 0.0, %v631
      %v633 = vpop.f32.mrb[0].mxu0
      %634 = vmatprep.mubr.bf16.mxu0 0
      %635 = vmatmul.mubr.bf16.gmra.mrb[0].mxu0 %v462
      %v636 = vpop.f32.mrb[0].mxu0
      %v637 = vadd.f32 0.0, %v636
      %v638 = vpop.f32.mrb[0].mxu0
      %v639 = vpop.f32.mrb[0].mxu0
      %v640 = vadd.f32 0.0, %v639
      %v641 = vpop.f32.mrb[0].mxu0
      %642 = vmatprep.mubr.bf16.mxu0 0
      %643 = vmatmul.mubr.bf16.gmra.mrb[0].mxu0 %v465
      %v644 = vpop.f32.mrb[0].mxu0
      %v645 = vadd.f32 0.0, %v644
      %v646 = vpop.f32.mrb[0].mxu0
      %v647 = vpop.f32.mrb[0].mxu0
      %v648 = vadd.f32 0.0, %v647
      %v649 = vpop.f32.mrb[0].mxu0
      %650 = vmatprep.mubr.bf16.mxu0 0
      %651 = vmatmul.mubr.bf16.gmra.mrb[0].mxu0 %v468
      %v652 = vpop.f32.mrb[0].mxu0
      %v653 = vadd.f32 0.0, %v652
      %v654 = vpop.f32.mrb[0].mxu0
      %v655 = vpop.f32.mrb[0].mxu0
      %v656 = vadd.f32 0.0, %v655
      %v657 = vpop.f32.mrb[0].mxu0
      %658 = vmatprep.mubr.bf16.mxu0 0
      %659 = vmatmul.mubr.bf16.gmra.mrb[0].mxu0 %v471
      %v660 = vpop.f32.mrb[0].mxu0
      %v661 = vadd.f32 0.0, %v660
      %v662 = vpop.f32.mrb[0].mxu0
      %v663 = vpop.f32.mrb[0].mxu0
      %v664 = vadd.f32 0.0, %v663
      %v665 = vpop.f32.mrb[0].mxu0
      %666 = vmatprep.mubr.bf16.mxu0 0
      %667 = vmatmul.mubr.bf16.gmra.mrb[0].mxu0 %v474
      %v668 = vpop.f32.mrb[0].mxu0
      %v669 = vadd.f32 0.0, %v668
      %v670 = vpop.f32.mrb[0].mxu0
      %v671 = vpop.f32.mrb[0].mxu0
      %v672 = vadd.f32 0.0, %v671
      %v673 = vpop.f32.mrb[0].mxu0
      %674 = vmatprep.mubr.bf16.mxu0 0
      %675 = vmatmul.mubr.bf16.gmra.mrb[0].mxu0 %v477
      %v676 = vpop.f32.mrb[0].mxu0
      %v677 = vadd.f32 0.0, %v676
      %v678 = vpop.f32.mrb[0].mxu0
      %v679 = vpop.f32.mrb[0].mxu0
      %v680 = vadd.f32 0.0, %v679
      %v681 = vpop.f32.mrb[0].mxu0
      %682 = vmatprep.mubr.bf16.mxu0 0
      %683 = vmatmul.mubr.bf16.gmra.mrb[0].mxu0 %v480
      %v684 = vpop.f32.mrb[0].mxu0
      %v685 = vadd.f32 0.0, %v684
      %v686 = vpop.f32.mrb[0].mxu0
      %v687 = vpop.f32.mrb[0].mxu0
      %v688 = vadd.f32 0.0, %v687
      %v689 = vpop.f32.mrb[0].mxu0
      %690 = vmatprep.mubr.bf16.mxu0 0
      %691 = vmatmul.mubr.bf16.gmra.mrb[0].mxu0 %v483
      %v692 = vpop.f32.mrb[0].mxu0
      %v693 = vadd.f32 0.0, %v692
      %v694 = vpop.f32.mrb[0].mxu0
      %v695 = vpop.f32.mrb[0].mxu0
      %v696 = vadd.f32 0.0, %v695
      %v697 = vpop.f32.mrb[0].mxu0
      %698 = vmatprep.mubr.bf16.mxu0 0
      %699 = vmatmul.mubr.bf16.gmra.mrb[0].mxu0 %v486
      %v700 = vpop.f32.mrb[0].mxu0
      %v701 = vadd.f32 0.0, %v700
      %v702 = vpop.f32.mrb[0].mxu0
      %v703 = vpop.f32.mrb[0].mxu0
      %v704 = vadd.f32 0.0, %v703
      %v705 = vpop.f32.mrb[0].mxu0
      %706 = vmatprep.mubr.bf16.mxu0 0
      %707 = vmatmul.mubr.bf16.gmra.mrb[0].mxu0 %v489
      %v708 = vpop.f32.mrb[0].mxu0
      %v709 = vadd.f32 0.0, %v708
      %v710 = vpop.f32.mrb[0].mxu0
      %v711 = vpop.f32.mrb[0].mxu0
      %v712 = vadd.f32 0.0, %v711
      %v713 = vpop.f32.mrb[0].mxu0
      %714 = vmatprep.mubr.bf16.mxu0 0
      %715 = vmatmul.mubr.bf16.gmra.mrb[0].mxu0 %v492
      %v716 = vpop.f32.mrb[0].mxu0
      %v717 = vadd.f32 0.0, %v716
      %v718 = vpop.f32.mrb[0].mxu0
      %v719 = vpop.f32.mrb[0].mxu0
      %v720 = vadd.f32 0.0, %v719
      %v721 = vpop.f32.mrb[0].mxu0
      %722 = vmatprep.mubr.bf16.mxu0 0
      %723 = vmatmul.mubr.bf16.gmra.mrb[0].mxu0 %v495
      %v724 = vpop.f32.mrb[0].mxu0
      %v725 = vadd.f32 0.0, %v724
      %v726 = vpop.f32.mrb[0].mxu0
      %v727 = vpop.f32.mrb[0].mxu0
      %v728 = vadd.f32 0.0, %v727
      %v729 = vpop.f32.mrb[0].mxu0
      %730 = vmatprep.mubr.bf16.mxu0 0
      %731 = vmatmul.mubr.bf16.gmra.mrb[0].mxu0 %v498
      %v732 = vpop.f32.mrb[0].mxu0
      %v733 = vadd.f32 0.0, %v732
      %v734 = vpop.f32.mrb[0].mxu0
      %v735 = vpop.f32.mrb[0].mxu0
      %v736 = vadd.f32 0.0, %v735
      %v737 = vpop.f32.mrb[0].mxu0
      %738 = vmatprep.mubr.bf16.mxu0 0
      %739 = vmatmul.mubr.bf16.gmra.mrb[0].mxu0 %v501
      %v740 = vpop.f32.mrb[0].mxu0
      %v741 = vadd.f32 0.0, %v740
      %v742 = vpop.f32.mrb[0].mxu0
      %v743 = vpop.f32.mrb[0].mxu0
      %v744 = vadd.f32 0.0, %v743
      %v745 = vpop.f32.mrb[0].mxu0
      %746 = vmatprep.mubr.bf16.mxu0 0
      %747 = vmatmul.mubr.bf16.gmra.mrb[0].mxu0 %v504
      %v748 = vpop.f32.mrb[0].mxu0
      %v749 = vadd.f32 0.0, %v748
      %v750 = vpop.f32.mrb[0].mxu0
      %v751 = vpop.f32.mrb[0].mxu0
      %v752 = vadd.f32 0.0, %v751
      %v753 = vpop.f32.mrb[0].mxu0
      %754 = vmatprep.mubr.bf16.mxu0 0
      %755 = vmatmul.mubr.bf16.gmra.mrb[0].mxu0 %v507
      %v756 = vpop.f32.mrb[0].mxu0
      %v757 = vadd.f32 0.0, %v756
      %v758 = vpop.f32.mrb[0].mxu0
      %v759 = vpop.f32.mrb[0].mxu0
      %v760 = vadd.f32 0.0, %v759
      %v761 = vpop.f32.mrb[0].mxu0
      %762 = vmatprep.mubr.bf16.mxu0 0
      %763 = vmatmul.mubr.bf16.gmra.mrb[0].mxu0 %v510
      %v764 = vpop.f32.mrb[0].mxu0
      %v765 = vadd.f32 0.0, %v764
      %v766 = vpop.f32.mrb[0].mxu0
      %v767 = vpop.f32.mrb[0].mxu0
      %v768 = vadd.f32 0.0, %v767
      %v769 = vpop.f32.mrb[0].mxu0
      %770 = vmatprep.mubr.bf16.mxu0 0
      %771 = vmatmul.mubr.bf16.gmra.mrb[0].mxu0 %v513
      %v772 = vpop.f32.mrb[0].mxu0
      %v773 = vadd.f32 0.0, %v772
      %v774 = vpop.f32.mrb[0].mxu0
      %v775 = vpop.f32.mrb[0].mxu0
      %v776 = vadd.f32 0.0, %v775
      %v777 = vpop.f32.mrb[0].mxu0
      %778 = vmatprep.mubr.bf16.mxu0 0
      %779 = vmatmul.mubr.bf16.gmra.mrb[0].mxu0 %v516
      %v780 = vpop.f32.mrb[0].mxu0
      %v781 = vadd.f32 0.0, %v780
      %v782 = vpop.f32.mrb[0].mxu0
      %v783 = vpop.f32.mrb[0].mxu0
      %v784 = vadd.f32 0.0, %v783
      %v785 = vpop.f32.mrb[0].mxu0
      %786 = vmatprep.mubr.bf16.mxu0 0
      %787 = vmatmul.mubr.bf16.gmra.mrb[0].mxu0 %v519
      %v788 = vpop.f32.mrb[0].mxu0
      %v789 = vadd.f32 0.0, %v788
      %v790 = vpop.f32.mrb[0].mxu0
      %v791 = vpop.f32.mrb[0].mxu0
      %v792 = vadd.f32 0.0, %v791
      %v793 = vpop.f32.mrb[0].mxu0
      %794 = vmatprep.mubr.bf16.mxu0 0
      %795 = vmatmul.mubr.bf16.gmra.mrb[0].mxu0 %v522
      %v796 = vpop.f32.mrb[0].mxu0
      %v797 = vadd.f32 0.0, %v796
      %v798 = vpop.f32.mrb[0].mxu0
      %v799 = vpop.f32.mrb[0].mxu0
      %v800 = vadd.f32 0.0, %v799
      %v801 = vpop.f32.mrb[0].mxu0
      %802 = vmatprep.mubr.bf16.mxu0 0
      %803 = vmatmul.mubr.bf16.gmra.mrb[0].mxu0 %v525
      %v804 = vpop.f32.mrb[0].mxu0
      %v805 = vadd.f32 0.0, %v804
      %v806 = vpop.f32.mrb[0].mxu0
      %v807 = vpop.f32.mrb[0].mxu0
      %v808 = vadd.f32 0.0, %v807
      %v809 = vpop.f32.mrb[0].mxu0
      %810 = vmatprep.mubr.bf16.mxu0 0
      %811 = vmatmul.mubr.bf16.gmra.mrb[0].mxu0 %v528
      %v812 = vpop.f32.mrb[0].mxu0
      %v813 = vadd.f32 0.0, %v812
      %v814 = vpop.f32.mrb[0].mxu0
      %v815 = vpop.f32.mrb[0].mxu0
      %v816 = vadd.f32 0.0, %v815
      %v817 = vpop.f32.mrb[0].mxu0
      %818 = vdwg.mxu0
      %vm819 = vcmp.ge.f32.partialorder %v565, 0.0
      %vm820 = vcmp.ge.f32.partialorder %v568, 0.0
      %vm821 = vcmp.ge.f32.partialorder %v573, 0.0
      %vm822 = vcmp.ge.f32.partialorder %v576, 0.0
      %vm823 = vcmp.ge.f32.partialorder %v581, 0.0
      %vm824 = vcmp.ge.f32.partialorder %v584, 0.0
      %vm825 = vcmp.ge.f32.partialorder %v589, 0.0
      %vm826 = vcmp.ge.f32.partialorder %v592, 0.0
      %vm827 = vcmp.ge.f32.partialorder %v597, 0.0
      %vm828 = vcmp.ge.f32.partialorder %v600, 0.0
      %vm829 = vcmp.ge.f32.partialorder %v605, 0.0
      %vm830 = vcmp.ge.f32.partialorder %v608, 0.0
      %vm831 = vcmp.ge.f32.partialorder %v613, 0.0
      %vm832 = vcmp.ge.f32.partialorder %v616, 0.0
      %vm833 = vcmp.ge.f32.partialorder %v621, 0.0
      %vm834 = vcmp.ge.f32.partialorder %v624, 0.0
      %vm835 = vcmp.ge.f32.partialorder %v629, 0.0
      %vm836 = vcmp.ge.f32.partialorder %v632, 0.0
      %vm837 = vcmp.ge.f32.partialorder %v637, 0.0
      %vm838 = vcmp.ge.f32.partialorder %v640, 0.0
      %vm839 = vcmp.ge.f32.partialorder %v645, 0.0
      %vm840 = vcmp.ge.f32.partialorder %v648, 0.0
      %vm841 = vcmp.ge.f32.partialorder %v653, 0.0
      %vm842 = vcmp.ge.f32.partialorder %v656, 0.0
      %vm843 = vcmp.ge.f32.partialorder %v661, 0.0
      %vm844 = vcmp.ge.f32.partialorder %v664, 0.0
      %vm845 = vcmp.ge.f32.partialorder %v669, 0.0
      %vm846 = vcmp.ge.f32.partialorder %v672, 0.0
      %vm847 = vcmp.ge.f32.partialorder %v677, 0.0
      %vm848 = vcmp.ge.f32.partialorder %v680, 0.0
      %vm849 = vcmp.ge.f32.partialorder %v685, 0.0
      %vm850 = vcmp.ge.f32.partialorder %v688, 0.0
      %vm851 = vcmp.ge.f32.partialorder %v693, 0.0
      %vm852 = vcmp.ge.f32.partialorder %v696, 0.0
      %vm853 = vcmp.ge.f32.partialorder %v701, 0.0
      %vm854 = vcmp.ge.f32.partialorder %v704, 0.0
      %vm855 = vcmp.ge.f32.partialorder %v709, 0.0
      %vm856 = vcmp.ge.f32.partialorder %v712, 0.0
      %vm857 = vcmp.ge.f32.partialorder %v717, 0.0
      %vm858 = vcmp.ge.f32.partialorder %v720, 0.0
      %vm859 = vcmp.ge.f32.partialorder %v725, 0.0
      %vm860 = vcmp.ge.f32.partialorder %v728, 0.0
      %vm861 = vcmp.ge.f32.partialorder %v733, 0.0
      %vm862 = vcmp.ge.f32.partialorder %v736, 0.0
      %vm863 = vcmp.ge.f32.partialorder %v741, 0.0
      %vm864 = vcmp.ge.f32.partialorder %v744, 0.0
      %vm865 = vcmp.ge.f32.partialorder %v749, 0.0
      %vm866 = vcmp.ge.f32.partialorder %v752, 0.0
      %vm867 = vcmp.ge.f32.partialorder %v757, 0.0
      %vm868 = vcmp.ge.f32.partialorder %v760, 0.0
      %vm869 = vcmp.ge.f32.partialorder %v765, 0.0
      %vm870 = vcmp.ge.f32.partialorder %v768, 0.0
      %vm871 = vcmp.ge.f32.partialorder %v773, 0.0
      %vm872 = vcmp.ge.f32.partialorder %v776, 0.0
      %vm873 = vcmp.ge.f32.partialorder %v781, 0.0
      %vm874 = vcmp.ge.f32.partialorder %v784, 0.0
      %vm875 = vcmp.ge.f32.partialorder %v789, 0.0
      %vm876 = vcmp.ge.f32.partialorder %v792, 0.0
      %vm877 = vcmp.ge.f32.partialorder %v797, 0.0
      %vm878 = vcmp.ge.f32.partialorder %v800, 0.0
      %vm879 = vcmp.ge.f32.partialorder %v805, 0.0
      %vm880 = vcmp.ge.f32.partialorder %v808, 0.0
      %vm881 = vcmp.ge.f32.partialorder %v813, 0.0
      %vm882 = vcmp.ge.f32.partialorder %v816, 0.0
      %v883 = vmul.f32 %v565, 0.2
      %v884 = vmul.f32 %v568, 0.2
      %v885 = vmul.f32 %v573, 0.2
      %v886 = vmul.f32 %v576, 0.2
      %v887 = vmul.f32 %v581, 0.2
      %v888 = vmul.f32 %v584, 0.2
      %v889 = vmul.f32 %v589, 0.2
      %v890 = vmul.f32 %v592, 0.2
      %v891 = vmul.f32 %v597, 0.2
      %v892 = vmul.f32 %v600, 0.2
      %v893 = vmul.f32 %v605, 0.2
      %v894 = vmul.f32 %v608, 0.2
      %v895 = vmul.f32 %v613, 0.2
      %v896 = vmul.f32 %v616, 0.2
      %v897 = vmul.f32 %v621, 0.2
      %v898 = vmul.f32 %v624, 0.2
      %v899 = vmul.f32 %v629, 0.2
      %v900 = vmul.f32 %v632, 0.2
      %v901 = vmul.f32 %v637, 0.2
      %v902 = vmul.f32 %v640, 0.2
      %v903 = vmul.f32 %v645, 0.2
      %v904 = vmul.f32 %v648, 0.2
      %v905 = vmul.f32 %v653, 0.2
      %v906 = vmul.f32 %v656, 0.2
      %v907 = vmul.f32 %v661, 0.2
      %v908 = vmul.f32 %v664, 0.2
      %v909 = vmul.f32 %v669, 0.2
      %v910 = vmul.f32 %v672, 0.2
      %v911 = vmul.f32 %v677, 0.2
      %v912 = vmul.f32 %v680, 0.2
      %v913 = vmul.f32 %v685, 0.2
      %v914 = vmul.f32 %v688, 0.2
      %v915 = vmul.f32 %v693, 0.2
      %v916 = vmul.f32 %v696, 0.2
      %v917 = vmul.f32 %v701, 0.2
      %v918 = vmul.f32 %v704, 0.2
      %v919 = vmul.f32 %v709, 0.2
      %v920 = vmul.f32 %v712, 0.2
      %v921 = vmul.f32 %v717, 0.2
      %v922 = vmul.f32 %v720, 0.2
      %v923 = vmul.f32 %v725, 0.2
      %v924 = vmul.f32 %v728, 0.2
      %v925 = vmul.f32 %v733, 0.2
      %v926 = vmul.f32 %v736, 0.2
      %v927 = vmul.f32 %v741, 0.2
      %v928 = vmul.f32 %v744, 0.2
      %v929 = vmul.f32 %v749, 0.2
      %v930 = vmul.f32 %v752, 0.2
      %v931 = vmul.f32 %v757, 0.2
      %v932 = vmul.f32 %v760, 0.2
      %v933 = vmul.f32 %v765, 0.2
      %v934 = vmul.f32 %v768, 0.2
      %v935 = vmul.f32 %v773, 0.2
      %v936 = vmul.f32 %v776, 0.2
      %v937 = vmul.f32 %v781, 0.2
      %v938 = vmul.f32 %v784, 0.2
      %v939 = vmul.f32 %v789, 0.2
      %v940 = vmul.f32 %v792, 0.2
      %v941 = vmul.f32 %v797, 0.2
      %v942 = vmul.f32 %v800, 0.2
      %v943 = vmul.f32 %v805, 0.2
      %v944 = vmul.f32 %v808, 0.2
      %v945 = vmul.f32 %v813, 0.2
      %v946 = vmul.f32 %v816, 0.2
      %v947 = vsel %vm819, %v565, %v883
      %v948 = vsel %vm820, %v568, %v884
      %v949 = vsel %vm821, %v573, %v885
      %v950 = vsel %vm822, %v576, %v886
      %v951 = vsel %vm823, %v581, %v887
      %v952 = vsel %vm824, %v584, %v888
      %v953 = vsel %vm825, %v589, %v889
      %v954 = vsel %vm826, %v592, %v890
      %v955 = vsel %vm827, %v597, %v891
      %v956 = vsel %vm828, %v600, %v892
      %v957 = vsel %vm829, %v605, %v893
      %v958 = vsel %vm830, %v608, %v894
      %v959 = vsel %vm831, %v613, %v895
      %v960 = vsel %vm832, %v616, %v896
      %v961 = vsel %vm833, %v621, %v897
      %v962 = vsel %vm834, %v624, %v898
      %v963 = vsel %vm835, %v629, %v899
      %v964 = vsel %vm836, %v632, %v900
      %v965 = vsel %vm837, %v637, %v901
      %v966 = vsel %vm838, %v640, %v902
      %v967 = vsel %vm839, %v645, %v903
      %v968 = vsel %vm840, %v648, %v904
      %v969 = vsel %vm841, %v653, %v905
      %v970 = vsel %vm842, %v656, %v906
      %v971 = vsel %vm843, %v661, %v907
      %v972 = vsel %vm844, %v664, %v908
      %v973 = vsel %vm845, %v669, %v909
      %v974 = vsel %vm846, %v672, %v910
      %v975 = vsel %vm847, %v677, %v911
      %v976 = vsel %vm848, %v680, %v912
      %v977 = vsel %vm849, %v685, %v913
      %v978 = vsel %vm850, %v688, %v914
      %v979 = vsel %vm851, %v693, %v915
      %v980 = vsel %vm852, %v696, %v916
      %v981 = vsel %vm853, %v701, %v917
      %v982 = vsel %vm854, %v704, %v918
      %v983 = vsel %vm855, %v709, %v919
      %v984 = vsel %vm856, %v712, %v920
      %v985 = vsel %vm857, %v717, %v921
      %v986 = vsel %vm858, %v720, %v922
      %v987 = vsel %vm859, %v725, %v923
      %v988 = vsel %vm860, %v728, %v924
      %v989 = vsel %vm861, %v733, %v925
      %v990 = vsel %vm862, %v736, %v926
      %v991 = vsel %vm863, %v741, %v927
      %v992 = vsel %vm864, %v744, %v928
      %v993 = vsel %vm865, %v749, %v929
      %v994 = vsel %vm866, %v752, %v930
      %v995 = vsel %vm867, %v757, %v931
      %v996 = vsel %vm868, %v760, %v932
      %v997 = vsel %vm869, %v765, %v933
      %v998 = vsel %vm870, %v768, %v934
      %v999 = vsel %vm871, %v773, %v935
      %v1000 = vsel %vm872, %v776, %v936
      %v1001 = vsel %vm873, %v781, %v937
      %v1002 = vsel %vm874, %v784, %v938
      %v1003 = vsel %vm875, %v789, %v939
      %v1004 = vsel %vm876, %v792, %v940
      %v1005 = vsel %vm877, %v797, %v941
      %v1006 = vsel %vm878, %v800, %v942
      %v1007 = vsel %vm879, %v805, %v943
      %v1008 = vsel %vm880, %v808, %v944
      %v1009 = vsel %vm881, %v813, %v945
      %v1010 = vsel %vm882, %v816, %v946
      %v1011 = vpack.c.bf16 %v948, %v947
      %v1012 = vpack.c.bf16 %v950, %v949
      %v1013 = vpack.c.bf16 %v952, %v951
      %v1014 = vpack.c.bf16 %v954, %v953
      %v1015 = vpack.c.bf16 %v956, %v955
      %v1016 = vpack.c.bf16 %v958, %v957
      %v1017 = vpack.c.bf16 %v960, %v959
      %v1018 = vpack.c.bf16 %v962, %v961
      %v1019 = vpack.c.bf16 %v964, %v963
      %v1020 = vpack.c.bf16 %v966, %v965
      %v1021 = vpack.c.bf16 %v968, %v967
      %v1022 = vpack.c.bf16 %v970, %v969
      %v1023 = vpack.c.bf16 %v972, %v971
      %v1024 = vpack.c.bf16 %v974, %v973
      %v1025 = vpack.c.bf16 %v976, %v975
      %v1026 = vpack.c.bf16 %v978, %v977
      %v1027 = vpack.c.bf16 %v980, %v979
      %v1028 = vpack.c.bf16 %v982, %v981
      %v1029 = vpack.c.bf16 %v984, %v983
      %v1030 = vpack.c.bf16 %v986, %v985
      %v1031 = vpack.c.bf16 %v988, %v987
      %v1032 = vpack.c.bf16 %v990, %v989
      %v1033 = vpack.c.bf16 %v992, %v991
      %v1034 = vpack.c.bf16 %v994, %v993
      %v1035 = vpack.c.bf16 %v996, %v995
      %v1036 = vpack.c.bf16 %v998, %v997
      %v1037 = vpack.c.bf16 %v1000, %v999
      %v1038 = vpack.c.bf16 %v1002, %v1001
      %v1039 = vpack.c.bf16 %v1004, %v1003
      %v1040 = vpack.c.bf16 %v1006, %v1005
      %v1041 = vpack.c.bf16 %v1008, %v1007
      %v1042 = vpack.c.bf16 %v1010, %v1009
      %v1075 = vunpack.c.l.b16 %v1011
      %v1076 = vunpack.c.h.b16 %v1011
      %v1077 = vunpack.c.l.b16 %v1012
      %v1078 = vunpack.c.h.b16 %v1012
      %v1079 = vunpack.c.l.b16 %v1013
      %v1080 = vunpack.c.h.b16 %v1013
      %v1081 = vunpack.c.l.b16 %v1014
      %v1082 = vunpack.c.h.b16 %v1014
      %v1083 = vunpack.c.l.b16 %v1015
      %v1084 = vunpack.c.h.b16 %v1015
      %v1085 = vunpack.c.l.b16 %v1016
      %v1086 = vunpack.c.h.b16 %v1016
      %v1087 = vunpack.c.l.b16 %v1017
      %v1088 = vunpack.c.h.b16 %v1017
      %v1089 = vunpack.c.l.b16 %v1018
      %v1090 = vunpack.c.h.b16 %v1018
      %v1091 = vunpack.c.l.b16 %v1019
      %v1092 = vunpack.c.h.b16 %v1019
      %v1093 = vunpack.c.l.b16 %v1020
      %v1094 = vunpack.c.h.b16 %v1020
      %v1095 = vunpack.c.l.b16 %v1021
      %v1096 = vunpack.c.h.b16 %v1021
      %v1097 = vunpack.c.l.b16 %v1022
      %v1098 = vunpack.c.h.b16 %v1022
      %v1099 = vunpack.c.l.b16 %v1023
      %v1100 = vunpack.c.h.b16 %v1023
      %v1101 = vunpack.c.l.b16 %v1024
      %v1102 = vunpack.c.h.b16 %v1024
      %v1103 = vunpack.c.l.b16 %v1025
      %v1104 = vunpack.c.h.b16 %v1025
      %v1105 = vunpack.c.l.b16 %v1026
      %v1106 = vunpack.c.h.b16 %v1026
      %v1107 = vunpack.c.l.b16 %v1027
      %v1108 = vunpack.c.h.b16 %v1027
      %v1109 = vunpack.c.l.b16 %v1028
      %v1110 = vunpack.c.h.b16 %v1028
      %v1111 = vunpack.c.l.b16 %v1029
      %v1112 = vunpack.c.h.b16 %v1029
      %v1113 = vunpack.c.l.b16 %v1030
      %v1114 = vunpack.c.h.b16 %v1030
      %v1115 = vunpack.c.l.b16 %v1031
      %v1116 = vunpack.c.h.b16 %v1031
      %v1117 = vunpack.c.l.b16 %v1032
      %v1118 = vunpack.c.h.b16 %v1032
      %v1119 = vunpack.c.l.b16 %v1033
      %v1120 = vunpack.c.h.b16 %v1033
      %v1121 = vunpack.c.l.b16 %v1034
      %v1122 = vunpack.c.h.b16 %v1034
      %v1123 = vunpack.c.l.b16 %v1035
      %v1124 = vunpack.c.h.b16 %v1035
      %v1125 = vunpack.c.l.b16 %v1036
      %v1126 = vunpack.c.h.b16 %v1036
      %v1127 = vunpack.c.l.b16 %v1037
      %v1128 = vunpack.c.h.b16 %v1037
      %v1129 = vunpack.c.l.b16 %v1038
      %v1130 = vunpack.c.h.b16 %v1038
      %v1131 = vunpack.c.l.b16 %v1039
      %v1132 = vunpack.c.h.b16 %v1039
      %v1133 = vunpack.c.l.b16 %v1040
      %v1134 = vunpack.c.h.b16 %v1040
      %v1135 = vunpack.c.l.b16 %v1041
      %v1136 = vunpack.c.h.b16 %v1041
      %v1137 = vunpack.c.l.b16 %v1042
      %v1138 = vunpack.c.h.b16 %v1042
      %v1139 = vpack.c.b16 %v1075, %v1075
      %v1140 = vpack.c.b16 %v1076, %v1076
      %v1141 = vpack.c.b16 %v1077, %v1077
      %v1142 = vpack.c.b16 %v1078, %v1078
      %v1143 = vpack.c.b16 %v1079, %v1079
      %v1144 = vpack.c.b16 %v1080, %v1080
      %v1145 = vpack.c.b16 %v1081, %v1081
      %v1146 = vpack.c.b16 %v1082, %v1082
      %v1147 = vpack.c.b16 %v1083, %v1083
      %v1148 = vpack.c.b16 %v1084, %v1084
      %v1149 = vpack.c.b16 %v1085, %v1085
      %v1150 = vpack.c.b16 %v1086, %v1086
      %v1151 = vpack.c.b16 %v1087, %v1087
      %v1152 = vpack.c.b16 %v1088, %v1088
      %v1153 = vpack.c.b16 %v1089, %v1089
      %v1154 = vpack.c.b16 %v1090, %v1090
      %v1155 = vpack.c.b16 %v1091, %v1091
      %v1156 = vpack.c.b16 %v1092, %v1092
      %v1157 = vpack.c.b16 %v1093, %v1093
      %v1158 = vpack.c.b16 %v1094, %v1094
      %v1159 = vpack.c.b16 %v1095, %v1095
      %v1160 = vpack.c.b16 %v1096, %v1096
      %v1161 = vpack.c.b16 %v1097, %v1097
      %v1162 = vpack.c.b16 %v1098, %v1098
      %v1163 = vpack.c.b16 %v1099, %v1099
      %v1164 = vpack.c.b16 %v1100, %v1100
      %v1165 = vpack.c.b16 %v1101, %v1101
      %v1166 = vpack.c.b16 %v1102, %v1102
      %v1167 = vpack.c.b16 %v1103, %v1103
      %v1168 = vpack.c.b16 %v1104, %v1104
      %v1169 = vpack.c.b16 %v1105, %v1105
      %v1170 = vpack.c.b16 %v1106, %v1106
      %v1171 = vpack.c.b16 %v1107, %v1107
      %v1172 = vpack.c.b16 %v1108, %v1108
      %v1173 = vpack.c.b16 %v1109, %v1109
      %v1174 = vpack.c.b16 %v1110, %v1110
      %v1175 = vpack.c.b16 %v1111, %v1111
      %v1176 = vpack.c.b16 %v1112, %v1112
      %v1177 = vpack.c.b16 %v1113, %v1113
      %v1178 = vpack.c.b16 %v1114, %v1114
      %v1179 = vpack.c.b16 %v1115, %v1115
      %v1180 = vpack.c.b16 %v1116, %v1116
      %v1181 = vpack.c.b16 %v1117, %v1117
      %v1182 = vpack.c.b16 %v1118, %v1118
      %v1183 = vpack.c.b16 %v1119, %v1119
      %v1184 = vpack.c.b16 %v1120, %v1120
      %v1185 = vpack.c.b16 %v1121, %v1121
      %v1186 = vpack.c.b16 %v1122, %v1122
      %v1187 = vpack.c.b16 %v1123, %v1123
      %v1188 = vpack.c.b16 %v1124, %v1124
      %v1189 = vpack.c.b16 %v1125, %v1125
      %v1190 = vpack.c.b16 %v1126, %v1126
      %v1191 = vpack.c.b16 %v1127, %v1127
      %v1192 = vpack.c.b16 %v1128, %v1128
      %v1193 = vpack.c.b16 %v1129, %v1129
      %v1194 = vpack.c.b16 %v1130, %v1130
      %v1195 = vpack.c.b16 %v1131, %v1131
      %v1196 = vpack.c.b16 %v1132, %v1132
      %v1197 = vpack.c.b16 %v1133, %v1133
      %v1198 = vpack.c.b16 %v1134, %v1134
      %v1199 = vpack.c.b16 %v1135, %v1135
      %v1200 = vpack.c.b16 %v1136, %v1136
      %v1201 = vpack.c.b16 %v1137, %v1137
      %v1202 = vpack.c.b16 %v1138, %v1138
      %vm1267 = vcmask 60416
      %1268 = vst.msk [vmem:[%s182] sm:$0xf] %vm1267, %v1139
      %1269 = vst.msk [vmem:[%s182 + $0x4] sm:$0xf] %vm1267, %v1140
      %1270 = vst.msk [vmem:[%s182 + $0x8] sm:$0xf] %vm1267, %v1141
      %1271 = vst.msk [vmem:[%s182 + $0xc] sm:$0xf] %vm1267, %v1142
      %1272 = vst.msk [vmem:[%s182 + $0x10] sm:$0xf] %vm1267, %v1143
      %1273 = vst.msk [vmem:[%s182 + $0x14] sm:$0xf] %vm1267, %v1144
      %1274 = vst.msk [vmem:[%s182 + $0x18] sm:$0xf] %vm1267, %v1145
      %1275 = vst.msk [vmem:[%s182 + $0x1c] sm:$0xf] %vm1267, %v1146
      %1276 = vst.msk [vmem:[%s182 + $0x20] sm:$0xf] %vm1267, %v1147
      %1277 = vst.msk [vmem:[%s182 + $0x24] sm:$0xf] %vm1267, %v1148
      %1278 = vst.msk [vmem:[%s182 + $0x28] sm:$0xf] %vm1267, %v1149
      %1279 = vst.msk [vmem:[%s182 + $0x2c] sm:$0xf] %vm1267, %v1150
      %1280 = vst.msk [vmem:[%s182 + $0x30] sm:$0xf] %vm1267, %v1151
      %1281 = vst.msk [vmem:[%s182 + $0x34] sm:$0xf] %vm1267, %v1152
      %1282 = vst.msk [vmem:[%s182 + $0x38] sm:$0xf] %vm1267, %v1153
      %1283 = vst.msk [vmem:[%s182 + $0x3c] sm:$0xf] %vm1267, %v1154
      %1284 = vst.msk [vmem:[%s182 + $0x40] sm:$0xf] %vm1267, %v1155
      %1285 = vst.msk [vmem:[%s182 + $0x44] sm:$0xf] %vm1267, %v1156
      %1286 = vst.msk [vmem:[%s182 + $0x48] sm:$0xf] %vm1267, %v1157
      %1287 = vst.msk [vmem:[%s182 + $0x4c] sm:$0xf] %vm1267, %v1158
      %1288 = vst.msk [vmem:[%s182 + $0x50] sm:$0xf] %vm1267, %v1159
      %1289 = vst.msk [vmem:[%s182 + $0x54] sm:$0xf] %vm1267, %v1160
      %1290 = vst.msk [vmem:[%s182 + $0x58] sm:$0xf] %vm1267, %v1161
      %1291 = vst.msk [vmem:[%s182 + $0x5c] sm:$0xf] %vm1267, %v1162
      %1292 = vst.msk [vmem:[%s182 + $0x60] sm:$0xf] %vm1267, %v1163
      %1293 = vst.msk [vmem:[%s182 + $0x64] sm:$0xf] %vm1267, %v1164
      %1294 = vst.msk [vmem:[%s182 + $0x68] sm:$0xf] %vm1267, %v1165
      %1295 = vst.msk [vmem:[%s182 + $0x6c] sm:$0xf] %vm1267, %v1166
      %1296 = vst.msk [vmem:[%s182 + $0x70] sm:$0xf] %vm1267, %v1167
      %1297 = vst.msk [vmem:[%s182 + $0x74] sm:$0xf] %vm1267, %v1168
      %1298 = vst.msk [vmem:[%s182 + $0x78] sm:$0xf] %vm1267, %v1169
      %1299 = vst.msk [vmem:[%s182 + $0x7c] sm:$0xf] %vm1267, %v1170
      %1300 = vst.msk [vmem:[%s182 + $0x80] sm:$0xf] %vm1267, %v1171
      %1301 = vst.msk [vmem:[%s182 + $0x84] sm:$0xf] %vm1267, %v1172
      %1302 = vst.msk [vmem:[%s182 + $0x88] sm:$0xf] %vm1267, %v1173
      %1303 = vst.msk [vmem:[%s182 + $0x8c] sm:$0xf] %vm1267, %v1174
      %1304 = vst.msk [vmem:[%s182 + $0x90] sm:$0xf] %vm1267, %v1175
      %1305 = vst.msk [vmem:[%s182 + $0x94] sm:$0xf] %vm1267, %v1176
      %1306 = vst.msk [vmem:[%s182 + $0x98] sm:$0xf] %vm1267, %v1177
      %1307 = vst.msk [vmem:[%s182 + $0x9c] sm:$0xf] %vm1267, %v1178
      %1308 = vst.msk [vmem:[%s182 + $0xa0] sm:$0xf] %vm1267, %v1179
      %1309 = vst.msk [vmem:[%s182 + $0xa4] sm:$0xf] %vm1267, %v1180
      %1310 = vst.msk [vmem:[%s182 + $0xa8] sm:$0xf] %vm1267, %v1181
      %1311 = vst.msk [vmem:[%s182 + $0xac] sm:$0xf] %vm1267, %v1182
      %1312 = vst.msk [vmem:[%s182 + $0xb0] sm:$0xf] %vm1267, %v1183
      %1313 = vst.msk [vmem:[%s182 + $0xb4] sm:$0xf] %vm1267, %v1184
      %1314 = vst.msk [vmem:[%s182 + $0xb8] sm:$0xf] %vm1267, %v1185
      %1315 = vst.msk [vmem:[%s182 + $0xbc] sm:$0xf] %vm1267, %v1186
      %1316 = vst.msk [vmem:[%s182 + $0xc0] sm:$0xf] %vm1267, %v1187
      %1317 = vst.msk [vmem:[%s182 + $0xc4] sm:$0xf] %vm1267, %v1188
      %1318 = vst.msk [vmem:[%s182 + $0xc8] sm:$0xf] %vm1267, %v1189
      %1319 = vst.msk [vmem:[%s182 + $0xcc] sm:$0xf] %vm1267, %v1190
      %1320 = vst.msk [vmem:[%s182 + $0xd0] sm:$0xf] %vm1267, %v1191
      %1321 = vst.msk [vmem:[%s182 + $0xd4] sm:$0xf] %vm1267, %v1192
      %1322 = vst.msk [vmem:[%s182 + $0xd8] sm:$0xf] %vm1267, %v1193
      %1323 = vst.msk [vmem:[%s182 + $0xdc] sm:$0xf] %vm1267, %v1194
      %1324 = vst.msk [vmem:[%s182 + $0xe0] sm:$0xf] %vm1267, %v1195
      %1325 = vst.msk [vmem:[%s182 + $0xe4] sm:$0xf] %vm1267, %v1196
      %1326 = vst.msk [vmem:[%s182 + $0xe8] sm:$0xf] %vm1267, %v1197
      %1327 = vst.msk [vmem:[%s182 + $0xec] sm:$0xf] %vm1267, %v1198
      %1328 = vst.msk [vmem:[%s182 + $0xf0] sm:$0xf] %vm1267, %v1199
      %1329 = vst.msk [vmem:[%s182 + $0xf4] sm:$0xf] %vm1267, %v1200
      %1330 = vst.msk [vmem:[%s182 + $0xf8] sm:$0xf] %vm1267, %v1201
      %1331 = vst.msk [vmem:[%s182 + $0xfc] sm:$0xf] %vm1267, %v1202
      %s1332 = smul.u32 64, %s17
      %p1333 = scmp.lt.s32.totalorder %s1332, 255
      %s1334 = scalar_select %p1333, %s1332, 255
      %p1335 = scmp.lt.s32.totalorder %s18, 0
      %s1336 = scalar_select %p1335, %s18, 0
      %s1337 = sadd.s32 %s1336, %s1334
      %s1338 = smul.addr %s1337, 4
      %s1339 = scalar_lea.vmem %s2, %s1338
      // Predicated region
      $region29: #{discriminator_forward.4} parent=27 // pred_check
        %p1340 = pneg %p97
      $region30: #{discriminator_forward.4} parent=27 // pred_check_branch
        %1342 = sbr.rel (%p1340) target = $region32
      $region31: #{discriminator_forward.4} parent=27 // pred_region
        %s1343 = smul.u32 64, %s17
      $region32: #{discriminator_forward.4} parent=27 // pred_fallthru
        _
    $region28: #{discriminator_forward.4} parent=5 // pred_fallthru
      _
    %p1344 = scmp.le.s32.totalorder 2, %s8
    // Predicated region
    $region33: #{discriminator_forward.4} parent=5 // pred_check
      %p1345 = pneg %p1344
    $region34: #{discriminator_forward.4} parent=5 // pred_check_branch
      %1347 = sbr.rel (%p1345) target = $region36
    $region35: #{discriminator_forward.4} parent=5 // pred_region
      %s1348 = ssub.s32 %s8, 2
      // Predicated region
      $region37: #{discriminator_forward.4} parent=35 // pred_check
        %p1349 = pneg %p103
      $region38: #{discriminator_forward.4} parent=35 // pred_check_branch
        %1351 = sbr.rel (%p1349) target = $region40
      $region39: #{discriminator_forward.4} parent=35 // pred_region
        %s1352 = smul.u32 64, %s19
        %p1353 = scmp.lt.s32.totalorder %s1352, 255
        %s1354 = scalar_select %p1353, %s1352, 255
        %p1355 = scmp.lt.s32.totalorder %s20, 0
        %s1356 = scalar_select %p1355, %s20, 0
        %s1357 = sadd.s32 %s1356, %s1354
        %s1358 = smul.addr %s1357, 4
        %s1359 = scalar_lea.vmem %s2, %s1358
      $region40: #{discriminator_forward.4} parent=35 // pred_fallthru
        _
    $region36: #{discriminator_forward.4} parent=5 // pred_fallthru
      _
  $region6: #{discriminator_forward.4} parent=0 // loop_footer
    %s12 = sadd.s32 1, %s8
  $region7: #{discriminator_forward.4} parent=0 // loop_footer_branch
    %7 = sbr.rel target = $region3
  $region8: #{discriminator_forward.4} parent=0 // loop_exit
    _

// kernel: discriminator_forward.5
$region0: #{discriminator_forward.5}
  #allocation0 [shape = 'u32[]', space=smem, size = 0x4, offset = 0x4, fixed_abs, tag = 'smem constant byte address 0x4 - core index']
  #allocation1 [shape = 'u32[144,128]{1,0:T(1,128)}', space=vmem, size = 0x12000, scoped, tag = 'internal scratch']
  %s0 = inlined_call_operand.vmem [shape: bf16[512,128], index: 0, kind: input, shape index: {}]
  %s1 = inlined_call_operand.vmem [shape: bf16[128,16], index: 1, kind: input, shape index: {}]
  %s2 = inlined_call_operand.vmem [shape: f32[1,16], index: 2, kind: input, shape index: {}]
  %s3 = inlined_call_operand.vmem [shape: f32[1,16], index: 3, kind: input, shape index: {}]
  %s4 = inlined_call_operand.vmem [shape: bf16[512,16], index: 4, kind: output, shape index: {}]
  %s5 = sld [smem:[#allocation0]]
  $region26: #{discriminator_forward.5} parent=0
    _
  %s7 = ssub.s32 1, %s5
  %s8 = scalar_select 0, %s7, %s5
  // Predicated region
  $region2: #{discriminator_forward.5} parent=0 // pred_check
    _
  $region3: #{discriminator_forward.5} parent=0 // pred_check_branch
    %10 = sbr.rel (0) target = $region5
  $region4: #{discriminator_forward.5} parent=0 // pred_region
    _
  $region5: #{discriminator_forward.5} parent=0 // pred_fallthru
    _
  // Predicated region
  $region6: #{discriminator_forward.5} parent=0 // pred_check
    _
  $region7: #{discriminator_forward.5} parent=0 // pred_check_branch
    %12 = sbr.rel (0) target = $region9
  $region8: #{discriminator_forward.5} parent=0 // pred_region
    _
  $region9: #{discriminator_forward.5} parent=0 // pred_fallthru
    _
  // Predicated region
  $region10: #{discriminator_forward.5} parent=0 // pred_check
    _
  $region11: #{discriminator_forward.5} parent=0 // pred_check_branch
    %14 = sbr.rel (0) target = $region13
  $region12: #{discriminator_forward.5} parent=0 // pred_region
    _
  $region13: #{discriminator_forward.5} parent=0 // pred_fallthru
    _
  // Predicated region
  $region14: #{discriminator_forward.5} parent=0 // pred_check
    _
  $region15: #{discriminator_forward.5} parent=0 // pred_check_branch
    %16 = sbr.rel (0) target = $region17
  $region16: #{discriminator_forward.5} parent=0 // pred_region
    _
  $region17: #{discriminator_forward.5} parent=0 // pred_fallthru
    _
  %v18 = vld [vmem:[%s0] sm:$0xf]
  %v19 = vld [vmem:[%s0 + $0x4] sm:$0xf]
  %v20 = vld [vmem:[%s0 + $0x8] sm:$0xf]
  %v21 = vld [vmem:[%s0 + $0xc] sm:$0xf]
  %v22 = vld [vmem:[%s0 + $0x10] sm:$0xf]
  %v23 = vld [vmem:[%s0 + $0x14] sm:$0xf]
  %v24 = vld [vmem:[%s0 + $0x18] sm:$0xf]
  %v25 = vld [vmem:[%s0 + $0x1c] sm:$0xf]
  %v26 = vld [vmem:[%s0 + $0x20] sm:$0xf]
  %v27 = vld [vmem:[%s0 + $0x24] sm:$0xf]
  %v28 = vld [vmem:[%s0 + $0x28] sm:$0xf]
  %v29 = vld [vmem:[%s0 + $0x2c] sm:$0xf]
  %v30 = vld [vmem:[%s0 + $0x30] sm:$0xf]
  %v31 = vld [vmem:[%s0 + $0x34] sm:$0xf]
  %v32 = vld [vmem:[%s0 + $0x38] sm:$0xf]
  %v33 = vld [vmem:[%s0 + $0x3c] sm:$0xf]
  %v34 = vld [vmem:[%s0 + $0x40] sm:$0xf]
  %v35 = vld [vmem:[%s0 + $0x44] sm:$0xf]
  %v36 = vld [vmem:[%s0 + $0x48] sm:$0xf]
  %v37 = vld [vmem:[%s0 + $0x4c] sm:$0xf]
  %v38 = vld [vmem:[%s0 + $0x50] sm:$0xf]
  %v39 = vld [vmem:[%s0 + $0x54] sm:$0xf]
  %v40 = vld [vmem:[%s0 + $0x58] sm:$0xf]
  %v41 = vld [vmem:[%s0 + $0x5c] sm:$0xf]
  %v42 = vld [vmem:[%s0 + $0x60] sm:$0xf]
  %v43 = vld [vmem:[%s0 + $0x64] sm:$0xf]
  %v44 = vld [vmem:[%s0 + $0x68] sm:$0xf]
  %v45 = vld [vmem:[%s0 + $0x6c] sm:$0xf]
  %v46 = vld [vmem:[%s0 + $0x70] sm:$0xf]
  %v47 = vld [vmem:[%s0 + $0x74] sm:$0xf]
  %v48 = vld [vmem:[%s0 + $0x78] sm:$0xf]
  %v49 = vld [vmem:[%s0 + $0x7c] sm:$0xf]
  %v50 = vld [vmem:[%s0 + $0x80] sm:$0xf]
  %v51 = vld [vmem:[%s0 + $0x84] sm:$0xf]
  %v52 = vld [vmem:[%s0 + $0x88] sm:$0xf]
  %v53 = vld [vmem:[%s0 + $0x8c] sm:$0xf]
  %v54 = vld [vmem:[%s0 + $0x90] sm:$0xf]
  %v55 = vld [vmem:[%s0 + $0x94] sm:$0xf]
  %v56 = vld [vmem:[%s0 + $0x98] sm:$0xf]
  %v57 = vld [vmem:[%s0 + $0x9c] sm:$0xf]
  %v58 = vld [vmem:[%s0 + $0xa0] sm:$0xf]
  %v59 = vld [vmem:[%s0 + $0xa4] sm:$0xf]
  %v60 = vld [vmem:[%s0 + $0xa8] sm:$0xf]
  %v61 = vld [vmem:[%s0 + $0xac] sm:$0xf]
  %v62 = vld [vmem:[%s0 + $0xb0] sm:$0xf]
  %v63 = vld [vmem:[%s0 + $0xb4] sm:$0xf]
  %v64 = vld [vmem:[%s0 + $0xb8] sm:$0xf]
  %v65 = vld [vmem:[%s0 + $0xbc] sm:$0xf]
  %v66 = vld [vmem:[%s0 + $0xc0] sm:$0xf]
  %v67 = vld [vmem:[%s0 + $0xc4] sm:$0xf]
  %v68 = vld [vmem:[%s0 + $0xc8] sm:$0xf]
  %v69 = vld [vmem:[%s0 + $0xcc] sm:$0xf]
  %v70 = vld [vmem:[%s0 + $0xd0] sm:$0xf]
  %v71 = vld [vmem:[%s0 + $0xd4] sm:$0xf]
  %v72 = vld [vmem:[%s0 + $0xd8] sm:$0xf]
  %v73 = vld [vmem:[%s0 + $0xdc] sm:$0xf]
  %v74 = vld [vmem:[%s0 + $0xe0] sm:$0xf]
  %v75 = vld [vmem:[%s0 + $0xe4] sm:$0xf]
  %v76 = vld [vmem:[%s0 + $0xe8] sm:$0xf]
  %v77 = vld [vmem:[%s0 + $0xec] sm:$0xf]
  %v78 = vld [vmem:[%s0 + $0xf0] sm:$0xf]
  %v79 = vld [vmem:[%s0 + $0xf4] sm:$0xf]
  %v80 = vld [vmem:[%s0 + $0xf8] sm:$0xf]
  %v81 = vld [vmem:[%s0 + $0xfc] sm:$0xf]
  %v82 = vld [vmem:[%s1] sm:$0xf]
  %v83 = vld [vmem:[%s1 + $0x4] sm:$0xf]
  %v84 = vld [vmem:[%s1 + $0x8] sm:$0xf]
  %v85 = vld [vmem:[%s1 + $0xc] sm:$0xf]
  %v86 = vld [vmem:[%s1 + $0x10] sm:$0xf]
  %v87 = vld [vmem:[%s1 + $0x14] sm:$0xf]
  %v88 = vld [vmem:[%s1 + $0x18] sm:$0xf]
  %v89 = vld [vmem:[%s1 + $0x1c] sm:$0xf]
  %v90 = vld [vmem:[%s1 + $0x20] sm:$0xf]
  %v91 = vld [vmem:[%s1 + $0x24] sm:$0xf]
  %v92 = vld [vmem:[%s1 + $0x28] sm:$0xf]
  %v93 = vld [vmem:[%s1 + $0x2c] sm:$0xf]
  %v94 = vld [vmem:[%s1 + $0x30] sm:$0xf]
  %v95 = vld [vmem:[%s1 + $0x34] sm:$0xf]
  %v96 = vld [vmem:[%s1 + $0x38] sm:$0xf]
  %v97 = vld [vmem:[%s1 + $0x3c] sm:$0xf]
  %v162 = vunpack.c.l.b16 %v18
  %v163 = vunpack.c.l.b16 %v19
  %v164 = vunpack.c.l.b16 %v20
  %v165 = vunpack.c.l.b16 %v21
  %v166 = vunpack.c.l.b16 %v22
  %v167 = vunpack.c.l.b16 %v23
  %v168 = vunpack.c.l.b16 %v24
  %v169 = vunpack.c.l.b16 %v25
  %v170 = vunpack.c.l.b16 %v26
  %v171 = vunpack.c.l.b16 %v27
  %v172 = vunpack.c.l.b16 %v28
  %v173 = vunpack.c.l.b16 %v29
  %v174 = vunpack.c.l.b16 %v30
  %v175 = vunpack.c.l.b16 %v31
  %v176 = vunpack.c.l.b16 %v32
  %v177 = vunpack.c.l.b16 %v33
  %v178 = vunpack.c.l.b16 %v34
  %v179 = vunpack.c.l.b16 %v35
  %v180 = vunpack.c.l.b16 %v36
  %v181 = vunpack.c.l.b16 %v37
  %v182 = vunpack.c.l.b16 %v38
  %v183 = vunpack.c.l.b16 %v39
  %v184 = vunpack.c.l.b16 %v40
  %v185 = vunpack.c.l.b16 %v41
  %v186 = vunpack.c.l.b16 %v42
  %v187 = vunpack.c.l.b16 %v43
  %v188 = vunpack.c.l.b16 %v44
  %v189 = vunpack.c.l.b16 %v45
  %v190 = vunpack.c.l.b16 %v46
  %v191 = vunpack.c.l.b16 %v47
  %v192 = vunpack.c.l.b16 %v48
  %v193 = vunpack.c.l.b16 %v49
  %v194 = vunpack.c.l.b16 %v50
  %v195 = vunpack.c.l.b16 %v51
  %v196 = vunpack.c.l.b16 %v52
  %v197 = vunpack.c.l.b16 %v53
  %v198 = vunpack.c.l.b16 %v54
  %v199 = vunpack.c.l.b16 %v55
  %v200 = vunpack.c.l.b16 %v56
  %v201 = vunpack.c.l.b16 %v57
  %v202 = vunpack.c.l.b16 %v58
  %v203 = vunpack.c.l.b16 %v59
  %v204 = vunpack.c.l.b16 %v60
  %v205 = vunpack.c.l.b16 %v61
  %v206 = vunpack.c.l.b16 %v62
  %v207 = vunpack.c.l.b16 %v63
  %v208 = vunpack.c.l.b16 %v64
  %v209 = vunpack.c.l.b16 %v65
  %v210 = vunpack.c.l.b16 %v66
  %v211 = vunpack.c.l.b16 %v67
  %v212 = vunpack.c.l.b16 %v68
  %v213 = vunpack.c.l.b16 %v69
  %v214 = vunpack.c.l.b16 %v70
  %v215 = vunpack.c.l.b16 %v71
  %v216 = vunpack.c.l.b16 %v72
  %v217 = vunpack.c.l.b16 %v73
  %v218 = vunpack.c.l.b16 %v74
  %v219 = vunpack.c.l.b16 %v75
  %v220 = vunpack.c.l.b16 %v76
  %v221 = vunpack.c.l.b16 %v77
  %v222 = vunpack.c.l.b16 %v78
  %v223 = vunpack.c.l.b16 %v79
  %v224 = vunpack.c.l.b16 %v80
  %v225 = vunpack.c.l.b16 %v81
  %v226 = vpack.c.b16 %v163, %v162
  %v227 = vpack.c.b16 %v165, %v164
  %v228 = vpack.c.b16 %v167, %v166
  %v229 = vpack.c.b16 %v169, %v168
  %v230 = vpack.c.b16 %v171, %v170
  %v231 = vpack.c.b16 %v173, %v172
  %v232 = vpack.c.b16 %v175, %v174
  %v233 = vpack.c.b16 %v177, %v176
  %v234 = vpack.c.b16 %v179, %v178
  %v235 = vpack.c.b16 %v181, %v180
  %v236 = vpack.c.b16 %v183, %v182
  %v237 = vpack.c.b16 %v185, %v184
  %v238 = vpack.c.b16 %v187, %v186
  %v239 = vpack.c.b16 %v189, %v188
  %v240 = vpack.c.b16 %v191, %v190
  %v241 = vpack.c.b16 %v193, %v192
  %v242 = vpack.c.b16 %v195, %v194
  %v243 = vpack.c.b16 %v197, %v196
  %v244 = vpack.c.b16 %v199, %v198
  %v245 = vpack.c.b16 %v201, %v200
  %v246 = vpack.c.b16 %v203, %v202
  %v247 = vpack.c.b16 %v205, %v204
  %v248 = vpack.c.b16 %v207, %v206
  %v249 = vpack.c.b16 %v209, %v208
  %v250 = vpack.c.b16 %v211, %v210
  %v251 = vpack.c.b16 %v213, %v212
  %v252 = vpack.c.b16 %v215, %v214
  %v253 = vpack.c.b16 %v217, %v216
  %v254 = vpack.c.b16 %v219, %v218
  %v255 = vpack.c.b16 %v221, %v220
  %v256 = vpack.c.b16 %v223, %v222
  %v257 = vpack.c.b16 %v225, %v224
  %v306 = vunpack.c.l.b16 %v82
  %v307 = vunpack.c.l.b16 %v83
  %v308 = vunpack.c.l.b16 %v84
  %v309 = vunpack.c.l.b16 %v85
  %v310 = vunpack.c.l.b16 %v86
  %v311 = vunpack.c.l.b16 %v87
  %v312 = vunpack.c.l.b16 %v88
  %v313 = vunpack.c.l.b16 %v89
  %v314 = vunpack.c.l.b16 %v90
  %v315 = vunpack.c.l.b16 %v91
  %v316 = vunpack.c.l.b16 %v92
  %v317 = vunpack.c.l.b16 %v93
  %v318 = vunpack.c.l.b16 %v94
  %v319 = vunpack.c.l.b16 %v95
  %v320 = vunpack.c.l.b16 %v96
  %v321 = vunpack.c.l.b16 %v97
  %v322 = vpack.c.b16 %v307, %v306
  %v323 = vpack.c.b16 %v309, %v308
  %v324 = vpack.c.b16 %v311, %v310
  %v325 = vpack.c.b16 %v313, %v312
  %v326 = vpack.c.b16 %v315, %v314
  %v327 = vpack.c.b16 %v317, %v316
  %v328 = vpack.c.b16 %v319, %v318
  %v329 = vpack.c.b16 %v321, %v320
  %338 = vmatprep.subr.bf16.mxu0 0
  %339 = vmatpush1.bf16.msra.mxu0 %v322
  %340 = vmatprep.subr.bf16.mxu0 0
  %341 = vmatpush1.bf16.msra.mxu0 %v323
  %342 = vmatprep.subr.bf16.mxu0 0
  %343 = vmatpush1.bf16.msra.mxu0 %v324
  %344 = vmatprep.subr.bf16.mxu0 0
  %345 = vmatpush1.bf16.msra.mxu0 %v325
  %346 = vmatprep.subr.bf16.mxu0 0
  %347 = vmatpush1.bf16.msra.mxu0 %v326
  %348 = vmatprep.subr.bf16.mxu0 0
  %349 = vmatpush1.bf16.msra.mxu0 %v327
  %350 = vmatprep.subr.bf16.mxu0 0
  %351 = vmatpush1.bf16.msra.mxu0 %v328
  %352 = vmatprep.subr.bf16.mxu0 0
  %353 = vmatpush1.bf16.msra.mxu0 %v329
  %354 = vmatprep.subr.bf16.mxu0 0
  %355 = vmatpush1.bf16.msra.mxu0 0
  %356 = vmatprep.subr.bf16.mxu0 0
  %357 = vmatpush1.bf16.msra.mxu0 0
  %358 = vmatprep.subr.bf16.mxu0 0
  %359 = vmatpush1.bf16.msra.mxu0 0
  %360 = vmatprep.subr.bf16.mxu0 0
  %361 = vmatpush1.bf16.msra.mxu0 0
  %362 = vmatprep.subr.bf16.mxu0 0
  %363 = vmatpush1.bf16.msra.mxu0 0
  %364 = vmatprep.subr.bf16.mxu0 0
  %365 = vmatpush1.bf16.msra.mxu0 0
  %366 = vmatprep.subr.bf16.mxu0 0
  %367 = vmatpush1.bf16.msra.mxu0 0
  %368 = vmatprep.subr.bf16.mxu0 0
  %369 = vmatpush1.bf16.msra.mxu0 0
  %370 = vmatprep.mubr.bf16.mxu0 0
  %371 = vmatmul.mubr.bf16.gmra.mrb[0].mxu0 %v226
  %v372 = vpop.f32.mrb[0].mxu0
  %v373 = vadd.f32 0.0, %v372
  %v374 = vpop.f32.mrb[0].mxu0
  %v375 = vpop.f32.mrb[0].mxu0
  %v376 = vadd.f32 0.0, %v375
  %v377 = vpop.f32.mrb[0].mxu0
  %378 = vmatprep.mubr.bf16.mxu0 0
  %379 = vmatmul.mubr.bf16.gmra.mrb[0].mxu0 %v227
  %v380 = vpop.f32.mrb[0].mxu0
  %v381 = vadd.f32 0.0, %v380
  %v382 = vpop.f32.mrb[0].mxu0
  %v383 = vpop.f32.mrb[0].mxu0
  %v384 = vadd.f32 0.0, %v383
  %v385 = vpop.f32.mrb[0].mxu0
  %386 = vmatprep.mubr.bf16.mxu0 0
  %387 = vmatmul.mubr.bf16.gmra.mrb[0].mxu0 %v228
  %v388 = vpop.f32.mrb[0].mxu0
  %v389 = vadd.f32 0.0, %v388
  %v390 = vpop.f32.mrb[0].mxu0
  %v391 = vpop.f32.mrb[0].mxu0
  %v392 = vadd.f32 0.0, %v391
  %v393 = vpop.f32.mrb[0].mxu0
  %394 = vmatprep.mubr.bf16.mxu0 0
  %395 = vmatmul.mubr.bf16.gmra.mrb[0].mxu0 %v229
  %v396 = vpop.f32.mrb[0].mxu0
  %v397 = vadd.f32 0.0, %v396
  %v398 = vpop.f32.mrb[0].mxu0
  %v399 = vpop.f32.mrb[0].mxu0
  %v400 = vadd.f32 0.0, %v399
  %v401 = vpop.f32.mrb[0].mxu0
  %402 = vmatprep.mubr.bf16.mxu0 0
  %403 = vmatmul.mubr.bf16.gmra.mrb[0].mxu0 %v230
  %v404 = vpop.f32.mrb[0].mxu0
  %v405 = vadd.f32 0.0, %v404
  %v406 = vpop.f32.mrb[0].mxu0
  %v407 = vpop.f32.mrb[0].mxu0
  %v408 = vadd.f32 0.0, %v407
  %v409 = vpop.f32.mrb[0].mxu0
  %410 = vmatprep.mubr.bf16.mxu0 0
  %411 = vmatmul.mubr.bf16.gmra.mrb[0].mxu0 %v231
  %v412 = vpop.f32.mrb[0].mxu0
  %v413 = vadd.f32 0.0, %v412
  %v414 = vpop.f32.mrb[0].mxu0
  %v415 = vpop.f32.mrb[0].mxu0
  %v416 = vadd.f32 0.0, %v415
  %v417 = vpop.f32.mrb[0].mxu0
  %418 = vmatprep.mubr.bf16.mxu0 0
  %419 = vmatmul.mubr.bf16.gmra.mrb[0].mxu0 %v232
  %v420 = vpop.f32.mrb[0].mxu0
  %v421 = vadd.f32 0.0, %v420
  %v422 = vpop.f32.mrb[0].mxu0
  %v423 = vpop.f32.mrb[0].mxu0
  %v424 = vadd.f32 0.0, %v423
  %v425 = vpop.f32.mrb[0].mxu0
  %426 = vmatprep.mubr.bf16.mxu0 0
  %427 = vmatmul.mubr.bf16.gmra.mrb[0].mxu0 %v233
  %v428 = vpop.f32.mrb[0].mxu0
  %v429 = vadd.f32 0.0, %v428
  %v430 = vpop.f32.mrb[0].mxu0
  %v431 = vpop.f32.mrb[0].mxu0
  %v432 = vadd.f32 0.0, %v431
  %v433 = vpop.f32.mrb[0].mxu0
  %434 = vmatprep.mubr.bf16.mxu0 0
  %435 = vmatmul.mubr.bf16.gmra.mrb[0].mxu0 %v234
  %v436 = vpop.f32.mrb[0].mxu0
  %v437 = vadd.f32 0.0, %v436
  %v438 = vpop.f32.mrb[0].mxu0
  %v439 = vpop.f32.mrb[0].mxu0
  %v440 = vadd.f32 0.0, %v439
  %v441 = vpop.f32.mrb[0].mxu0
  %442 = vmatprep.mubr.bf16.mxu0 0
  %443 = vmatmul.mubr.bf16.gmra.mrb[0].mxu0 %v235
  %v444 = vpop.f32.mrb[0].mxu0
  %v445 = vadd.f32 0.0, %v444
  %v446 = vpop.f32.mrb[0].mxu0
  %v447 = vpop.f32.mrb[0].mxu0
  %v448 = vadd.f32 0.0, %v447
  %v449 = vpop.f32.mrb[0].mxu0
  %450 = vmatprep.mubr.bf16.mxu0 0
  %451 = vmatmul.mubr.bf16.gmra.mrb[0].mxu0 %v236
  %v452 = vpop.f32.mrb[0].mxu0
  %v453 = vadd.f32 0.0, %v452
  %v454 = vpop.f32.mrb[0].mxu0
  %v455 = vpop.f32.mrb[0].mxu0
  %v456 = vadd.f32 0.0, %v455
  %v457 = vpop.f32.mrb[0].mxu0
  %458 = vmatprep.mubr.bf16.mxu0 0
  %459 = vmatmul.mubr.bf16.gmra.mrb[0].mxu0 %v237
  %v460 = vpop.f32.mrb[0].mxu0
  %v461 = vadd.f32 0.0, %v460
  %v462 = vpop.f32.mrb[0].mxu0
  %v463 = vpop.f32.mrb[0].mxu0
  %v464 = vadd.f32 0.0, %v463
  %v465 = vpop.f32.mrb[0].mxu0
  %466 = vmatprep.mubr.bf16.mxu0 0
  %467 = vmatmul.mubr.bf16.gmra.mrb[0].mxu0 %v238
  %v468 = vpop.f32.mrb[0].mxu0
  %v469 = vadd.f32 0.0, %v468
  %v470 = vpop.f32.mrb[0].mxu0
  %v471 = vpop.f32.mrb[0].mxu0
  %v472 = vadd.f32 0.0, %v471
  %v473 = vpop.f32.mrb[0].mxu0
  %474 = vmatprep.mubr.bf16.mxu0 0
  %475 = vmatmul.mubr.bf16.gmra.mrb[0].mxu0 %v239
  %v476 = vpop.f32.mrb[0].mxu0
  %v477 = vadd.f32 0.0, %v476
  %v478 = vpop.f32.mrb[0].mxu0
  %v479 = vpop.f32.mrb[0].mxu0
  %v480 = vadd.f32 0.0, %v479
  %v481 = vpop.f32.mrb[0].mxu0
  %482 = vmatprep.mubr.bf16.mxu0 0
  %483 = vmatmul.mubr.bf16.gmra.mrb[0].mxu0 %v240
  %v484 = vpop.f32.mrb[0].mxu0
  %v485 = vadd.f32 0.0, %v484
  %v486 = vpop.f32.mrb[0].mxu0
  %v487 = vpop.f32.mrb[0].mxu0
  %v488 = vadd.f32 0.0, %v487
  %v489 = vpop.f32.mrb[0].mxu0
  %490 = vmatprep.mubr.bf16.mxu0 0
  %491 = vmatmul.mubr.bf16.gmra.mrb[0].mxu0 %v241
  %v492 = vpop.f32.mrb[0].mxu0
  %v493 = vadd.f32 0.0, %v492
  %v494 = vpop.f32.mrb[0].mxu0
  %v495 = vpop.f32.mrb[0].mxu0
  %v496 = vadd.f32 0.0, %v495
  %v497 = vpop.f32.mrb[0].mxu0
  %498 = vmatprep.mubr.bf16.mxu0 0
  %499 = vmatmul.mubr.bf16.gmra.mrb[0].mxu0 %v242
  %v500 = vpop.f32.mrb[0].mxu0
  %v501 = vadd.f32 0.0, %v500
  %v502 = vpop.f32.mrb[0].mxu0
  %v503 = vpop.f32.mrb[0].mxu0
  %v504 = vadd.f32 0.0, %v503
  %v505 = vpop.f32.mrb[0].mxu0
  %506 = vmatprep.mubr.bf16.mxu0 0
  %507 = vmatmul.mubr.bf16.gmra.mrb[0].mxu0 %v243
  %v508 = vpop.f32.mrb[0].mxu0
  %v509 = vadd.f32 0.0, %v508
  %v510 = vpop.f32.mrb[0].mxu0
  %v511 = vpop.f32.mrb[0].mxu0
  %v512 = vadd.f32 0.0, %v511
  %v513 = vpop.f32.mrb[0].mxu0
  %514 = vmatprep.mubr.bf16.mxu0 0
  %515 = vmatmul.mubr.bf16.gmra.mrb[0].mxu0 %v244
  %v516 = vpop.f32.mrb[0].mxu0
  %v517 = vadd.f32 0.0, %v516
  %v518 = vpop.f32.mrb[0].mxu0
  %v519 = vpop.f32.mrb[0].mxu0
  %v520 = vadd.f32 0.0, %v519
  %v521 = vpop.f32.mrb[0].mxu0
  %522 = vmatprep.mubr.bf16.mxu0 0
  %523 = vmatmul.mubr.bf16.gmra.mrb[0].mxu0 %v245
  %v524 = vpop.f32.mrb[0].mxu0
  %v525 = vadd.f32 0.0, %v524
  %v526 = vpop.f32.mrb[0].mxu0
  %v527 = vpop.f32.mrb[0].mxu0
  %v528 = vadd.f32 0.0, %v527
  %v529 = vpop.f32.mrb[0].mxu0
  %530 = vmatprep.mubr.bf16.mxu0 0
  %531 = vmatmul.mubr.bf16.gmra.mrb[0].mxu0 %v246
  %v532 = vpop.f32.mrb[0].mxu0
  %v533 = vadd.f32 0.0, %v532
  %v534 = vpop.f32.mrb[0].mxu0
  %v535 = vpop.f32.mrb[0].mxu0
  %v536 = vadd.f32 0.0, %v535
  %v537 = vpop.f32.mrb[0].mxu0
  %538 = vmatprep.mubr.bf16.mxu0 0
  %539 = vmatmul.mubr.bf16.gmra.mrb[0].mxu0 %v247
  %v540 = vpop.f32.mrb[0].mxu0
  %v541 = vadd.f32 0.0, %v540
  %v542 = vpop.f32.mrb[0].mxu0
  %v543 = vpop.f32.mrb[0].mxu0
  %v544 = vadd.f32 0.0, %v543
  %v545 = vpop.f32.mrb[0].mxu0
  %546 = vmatprep.mubr.bf16.mxu0 0
  %547 = vmatmul.mubr.bf16.gmra.mrb[0].mxu0 %v248
  %v548 = vpop.f32.mrb[0].mxu0
  %v549 = vadd.f32 0.0, %v548
  %v550 = vpop.f32.mrb[0].mxu0
  %v551 = vpop.f32.mrb[0].mxu0
  %v552 = vadd.f32 0.0, %v551
  %v553 = vpop.f32.mrb[0].mxu0
  %554 = vmatprep.mubr.bf16.mxu0 0
  %555 = vmatmul.mubr.bf16.gmra.mrb[0].mxu0 %v249
  %v556 = vpop.f32.mrb[0].mxu0
  %v557 = vadd.f32 0.0, %v556
  %v558 = vpop.f32.mrb[0].mxu0
  %v559 = vpop.f32.mrb[0].mxu0
  %v560 = vadd.f32 0.0, %v559
  %v561 = vpop.f32.mrb[0].mxu0
  %562 = vmatprep.mubr.bf16.mxu0 0
  %563 = vmatmul.mubr.bf16.gmra.mrb[0].mxu0 %v250
  %v564 = vpop.f32.mrb[0].mxu0
  %v565 = vadd.f32 0.0, %v564
  %v566 = vpop.f32.mrb[0].mxu0
  %v567 = vpop.f32.mrb[0].mxu0
  %v568 = vadd.f32 0.0, %v567
  %v569 = vpop.f32.mrb[0].mxu0
  %570 = vmatprep.mubr.bf16.mxu0 0
  %571 = vmatmul.mubr.bf16.gmra.mrb[0].mxu0 %v251
  %v572 = vpop.f32.mrb[0].mxu0
  %v573 = vadd.f32 0.0, %v572
  %v574 = vpop.f32.mrb[0].mxu0
  %v575 = vpop.f32.mrb[0].mxu0
  %v576 = vadd.f32 0.0, %v575
  %v577 = vpop.f32.mrb[0].mxu0
  %578 = vmatprep.mubr.bf16.mxu0 0
  %579 = vmatmul.mubr.bf16.gmra.mrb[0].mxu0 %v252
  %v580 = vpop.f32.mrb[0].mxu0
  %v581 = vadd.f32 0.0, %v580
  %v582 = vpop.f32.mrb[0].mxu0
  %v583 = vpop.f32.mrb[0].mxu0
  %v584 = vadd.f32 0.0, %v583
  %v585 = vpop.f32.mrb[0].mxu0
  %586 = vmatprep.mubr.bf16.mxu0 0
  %587 = vmatmul.mubr.bf16.gmra.mrb[0].mxu0 %v253
  %v588 = vpop.f32.mrb[0].mxu0
  %v589 = vadd.f32 0.0, %v588
  %v590 = vpop.f32.mrb[0].mxu0
  %v591 = vpop.f32.mrb[0].mxu0
  %v592 = vadd.f32 0.0, %v591
  %v593 = vpop.f32.mrb[0].mxu0
  %594 = vmatprep.mubr.bf16.mxu0 0
  %595 = vmatmul.mubr.bf16.gmra.mrb[0].mxu0 %v254
  %v596 = vpop.f32.mrb[0].mxu0
  %v597 = vadd.f32 0.0, %v596
  %v598 = vpop.f32.mrb[0].mxu0
  %v599 = vpop.f32.mrb[0].mxu0
  %v600 = vadd.f32 0.0, %v599
  %v601 = vpop.f32.mrb[0].mxu0
  %602 = vmatprep.mubr.bf16.mxu0 0
  %603 = vmatmul.mubr.bf16.gmra.mrb[0].mxu0 %v255
  %v604 = vpop.f32.mrb[0].mxu0
  %v605 = vadd.f32 0.0, %v604
  %v606 = vpop.f32.mrb[0].mxu0
  %v607 = vpop.f32.mrb[0].mxu0
  %v608 = vadd.f32 0.0, %v607
  %v609 = vpop.f32.mrb[0].mxu0
  %610 = vmatprep.mubr.bf16.mxu0 0
  %611 = vmatmul.mubr.bf16.gmra.mrb[0].mxu0 %v256
  %v612 = vpop.f32.mrb[0].mxu0
  %v613 = vadd.f32 0.0, %v612
  %v614 = vpop.f32.mrb[0].mxu0
  %v615 = vpop.f32.mrb[0].mxu0
  %v616 = vadd.f32 0.0, %v615
  %v617 = vpop.f32.mrb[0].mxu0
  %618 = vmatprep.mubr.bf16.mxu0 0
  %619 = vmatmul.mubr.bf16.gmra.mrb[0].mxu0 %v257
  %v620 = vpop.f32.mrb[0].mxu0
  %v621 = vadd.f32 0.0, %v620
  %v622 = vpop.f32.mrb[0].mxu0
  %v623 = vpop.f32.mrb[0].mxu0
  %v624 = vadd.f32 0.0, %v623
  %v625 = vpop.f32.mrb[0].mxu0
  %626 = vdwg.mxu0
  %vm627 = vcmask 130048
  %v628 = vsel %vm627, %v373, 0.0
  %v629 = vsel %vm627, %v376, 0.0
  %v630 = vadd.f32 %v628, %v629
  %v631 = vsel %vm627, %v381, 0.0
  %v632 = vadd.f32 %v630, %v631
  %v633 = vsel %vm627, %v384, 0.0
  %v634 = vadd.f32 %v632, %v633
  %v635 = vsel %vm627, %v389, 0.0
  %v636 = vadd.f32 %v634, %v635
  %v637 = vsel %vm627, %v392, 0.0
  %v638 = vadd.f32 %v636, %v637
  %v639 = vsel %vm627, %v397, 0.0
  %v640 = vadd.f32 %v638, %v639
  %v641 = vsel %vm627, %v400, 0.0
  %v642 = vadd.f32 %v640, %v641
  %v643 = vsel %vm627, %v405, 0.0
  %v644 = vadd.f32 %v642, %v643
  %v645 = vsel %vm627, %v408, 0.0
  %v646 = vadd.f32 %v644, %v645
  %v647 = vsel %vm627, %v413, 0.0
  %v648 = vadd.f32 %v646, %v647
  %v649 = vsel %vm627, %v416, 0.0
  %v650 = vadd.f32 %v648, %v649
  %v651 = vsel %vm627, %v421, 0.0
  %v652 = vadd.f32 %v650, %v651
  %v653 = vsel %vm627, %v424, 0.0
  %v654 = vadd.f32 %v652, %v653
  %v655 = vsel %vm627, %v429, 0.0
  %v656 = vadd.f32 %v654, %v655
  %v657 = vsel %vm627, %v432, 0.0
  %v658 = vadd.f32 %v656, %v657
  %v659 = vsel %vm627, %v437, 0.0
  %v660 = vadd.f32 %v658, %v659
  %v661 = vsel %vm627, %v440, 0.0
  %v662 = vadd.f32 %v660, %v661
  %v663 = vsel %vm627, %v445, 0.0
  %v664 = vadd.f32 %v662, %v663
  %v665 = vsel %vm627, %v448, 0.0
  %v666 = vadd.f32 %v664, %v665
  %v667 = vsel %vm627, %v453, 0.0
  %v668 = vadd.f32 %v666, %v667
  %v669 = vsel %vm627, %v456, 0.0
  %v670 = vadd.f32 %v668, %v669
  %v671 = vsel %vm627, %v461, 0.0
  %v672 = vadd.f32 %v670, %v671
  %v673 = vsel %vm627, %v464, 0.0
  %v674 = vadd.f32 %v672, %v673
  %v675 = vsel %vm627, %v469, 0.0
  %v676 = vadd.f32 %v674, %v675
  %v677 = vsel %vm627, %v472, 0.0
  %v678 = vadd.f32 %v676, %v677
  %v679 = vsel %vm627, %v477, 0.0
  %v680 = vadd.f32 %v678, %v679
  %v681 = vsel %vm627, %v480, 0.0
  %v682 = vadd.f32 %v680, %v681
  %v683 = vsel %vm627, %v485, 0.0
  %v684 = vadd.f32 %v682, %v683
  %v685 = vsel %vm627, %v488, 0.0
  %v686 = vadd.f32 %v684, %v685
  %v687 = vsel %vm627, %v493, 0.0
  %v688 = vadd.f32 %v686, %v687
  %v689 = vsel %vm627, %v496, 0.0
  %v690 = vadd.f32 %v688, %v689
  %v691 = vsel %vm627, %v501, 0.0
  %v692 = vadd.f32 %v690, %v691
  %v693 = vsel %vm627, %v504, 0.0
  %v694 = vadd.f32 %v692, %v693
  %v695 = vsel %vm627, %v509, 0.0
  %v696 = vadd.f32 %v694, %v695
  %v697 = vsel %vm627, %v512, 0.0
  %v698 = vadd.f32 %v696, %v697
  %v699 = vsel %vm627, %v517, 0.0
  %v700 = vadd.f32 %v698, %v699
  %v701 = vsel %vm627, %v520, 0.0
  %v702 = vadd.f32 %v700, %v701
  %v703 = vsel %vm627, %v525, 0.0
  %v704 = vadd.f32 %v702, %v703
  %v705 = vsel %vm627, %v528, 0.0
  %v706 = vadd.f32 %v704, %v705
  %v707 = vsel %vm627, %v533, 0.0
  %v708 = vadd.f32 %v706, %v707
  %v709 = vsel %vm627, %v536, 0.0
  %v710 = vadd.f32 %v708, %v709
  %v711 = vsel %vm627, %v541, 0.0
  %v712 = vadd.f32 %v710, %v711
  %v713 = vsel %vm627, %v544, 0.0
  %v714 = vadd.f32 %v712, %v713
  %v715 = vsel %vm627, %v549, 0.0
  %v716 = vadd.f32 %v714, %v715
  %v717 = vsel %vm627, %v552, 0.0
  %v718 = vadd.f32 %v716, %v717
  %v719 = vsel %vm627, %v557, 0.0
  %v720 = vadd.f32 %v718, %v719
  %v721 = vsel %vm627, %v560, 0.0
  %v722 = vadd.f32 %v720, %v721
  %v723 = vsel %vm627, %v565, 0.0
  %v724 = vadd.f32 %v722, %v723
  %v725 = vsel %vm627, %v568, 0.0
  %v726 = vadd.f32 %v724, %v725
  %v727 = vsel %vm627, %v573, 0.0
  %v728 = vadd.f32 %v726, %v727
  %v729 = vsel %vm627, %v576, 0.0
  %v730 = vadd.f32 %v728, %v729
  %v731 = vsel %vm627, %v581, 0.0
  %v732 = vadd.f32 %v730, %v731
  %v733 = vsel %vm627, %v584, 0.0
  %v734 = vadd.f32 %v732, %v733
  %v735 = vsel %vm627, %v589, 0.0
  %v736 = vadd.f32 %v734, %v735
  %v737 = vsel %vm627, %v592, 0.0
  %v738 = vadd.f32 %v736, %v737
  %v739 = vsel %vm627, %v597, 0.0
  %v740 = vadd.f32 %v738, %v739
  %v741 = vsel %vm627, %v600, 0.0
  %v742 = vadd.f32 %v740, %v741
  %v743 = vsel %vm627, %v605, 0.0
  %v744 = vadd.f32 %v742, %v743
  %v745 = vsel %vm627, %v608, 0.0
  %v746 = vadd.f32 %v744, %v745
  %v747 = vsel %vm627, %v613, 0.0
  %v748 = vadd.f32 %v746, %v747
  %v749 = vsel %vm627, %v616, 0.0
  %v750 = vadd.f32 %v748, %v749
  %v751 = vsel %vm627, %v621, 0.0
  %v752 = vadd.f32 %v750, %v751
  %v753 = vsel %vm627, %v624, 0.0
  %v754 = vadd.f32 %v752, %v753
  %v755 = vrot.slane %v754, 4
  %v756 = vadd.f32 %v754, %v755
  %v757 = vrot.slane %v756, 2
  %v758 = vadd.f32 %v756, %v757
  %v759 = vrot.slane %v758, 1
  %v760 = vadd.f32 %v758, %v759
  %v761 = vmul.f32 %v760, 0.001953125
  %v762 = vmul.f32 %v373, %v373
  %v763 = vmul.f32 %v376, %v376
  %v764 = vmul.f32 %v381, %v381
  %v765 = vmul.f32 %v384, %v384
  %v766 = vmul.f32 %v389, %v389
  %v767 = vmul.f32 %v392, %v392
  %v768 = vmul.f32 %v397, %v397
  %v769 = vmul.f32 %v400, %v400
  %v770 = vmul.f32 %v405, %v405
  %v771 = vmul.f32 %v408, %v408
  %v772 = vmul.f32 %v413, %v413
  %v773 = vmul.f32 %v416, %v416
  %v774 = vmul.f32 %v421, %v421
  %v775 = vmul.f32 %v424, %v424
  %v776 = vmul.f32 %v429, %v429
  %v777 = vmul.f32 %v432, %v432
  %v778 = vmul.f32 %v437, %v437
  %v779 = vmul.f32 %v440, %v440
  %v780 = vmul.f32 %v445, %v445
  %v781 = vmul.f32 %v448, %v448
  %v782 = vmul.f32 %v453, %v453
  %v783 = vmul.f32 %v456, %v456
  %v784 = vmul.f32 %v461, %v461
  %v785 = vmul.f32 %v464, %v464
  %v786 = vmul.f32 %v469, %v469
  %v787 = vmul.f32 %v472, %v472
  %v788 = vmul.f32 %v477, %v477
  %v789 = vmul.f32 %v480, %v480
  %v790 = vmul.f32 %v485, %v485
  %v791 = vmul.f32 %v488, %v488
  %v792 = vmul.f32 %v493, %v493
  %v793 = vmul.f32 %v496, %v496
  %v794 = vmul.f32 %v501, %v501
  %v795 = vmul.f32 %v504, %v504
  %v796 = vmul.f32 %v509, %v509
  %v797 = vmul.f32 %v512, %v512
  %v798 = vmul.f32 %v517, %v517
  %v799 = vmul.f32 %v520, %v520
  %v800 = vmul.f32 %v525, %v525
  %v801 = vmul.f32 %v528, %v528
  %v802 = vmul.f32 %v533, %v533
  %v803 = vmul.f32 %v536, %v536
  %v804 = vmul.f32 %v541, %v541
  %v805 = vmul.f32 %v544, %v544
  %v806 = vmul.f32 %v549, %v549
  %v807 = vmul.f32 %v552, %v552
  %v808 = vmul.f32 %v557, %v557
  %v809 = vmul.f32 %v560, %v560
  %v810 = vmul.f32 %v565, %v565
  %v811 = vmul.f32 %v568, %v568
  %v812 = vmul.f32 %v573, %v573
  %v813 = vmul.f32 %v576, %v576
  %v814 = vmul.f32 %v581, %v581
  %v815 = vmul.f32 %v584, %v584
  %v816 = vmul.f32 %v589, %v589
  %v817 = vmul.f32 %v592, %v592
  %v818 = vmul.f32 %v597, %v597
  %v819 = vmul.f32 %v600, %v600
  %v820 = vmul.f32 %v605, %v605
  %v821 = vmul.f32 %v608, %v608
  %v822 = vmul.f32 %v613, %v613
  %v823 = vmul.f32 %v616, %v616
  %v824 = vmul.f32 %v621, %v621
  %v825 = vmul.f32 %v624, %v624
  %v826 = vsel %vm627, %v762, 0.0
  %v827 = vsel %vm627, %v763, 0.0
  %v828 = vadd.f32 %v826, %v827
  %v829 = vsel %vm627, %v764, 0.0
  %v830 = vadd.f32 %v828, %v829
  %v831 = vsel %vm627, %v765, 0.0
  %v832 = vadd.f32 %v830, %v831
  %v833 = vsel %vm627, %v766, 0.0
  %v834 = vadd.f32 %v832, %v833
  %v835 = vsel %vm627, %v767, 0.0
  %v836 = vadd.f32 %v834, %v835
  %v837 = vsel %vm627, %v768, 0.0
  %v838 = vadd.f32 %v836, %v837
  %v839 = vsel %vm627, %v769, 0.0
  %v840 = vadd.f32 %v838, %v839
  %v841 = vsel %vm627, %v770, 0.0
  %v842 = vadd.f32 %v840, %v841
  %v843 = vsel %vm627, %v771, 0.0
  %v844 = vadd.f32 %v842, %v843
  %v845 = vsel %vm627, %v772, 0.0
  %v846 = vadd.f32 %v844, %v845
  %v847 = vsel %vm627, %v773, 0.0
  %v848 = vadd.f32 %v846, %v847
  %v849 = vsel %vm627, %v774, 0.0
  %v850 = vadd.f32 %v848, %v849
  %v851 = vsel %vm627, %v775, 0.0
  %v852 = vadd.f32 %v850, %v851
  %v853 = vsel %vm627, %v776, 0.0
  %v854 = vadd.f32 %v852, %v853
  %v855 = vsel %vm627, %v777, 0.0
  %v856 = vadd.f32 %v854, %v855
  %v857 = vsel %vm627, %v778, 0.0
  %v858 = vadd.f32 %v856, %v857
  %v859 = vsel %vm627, %v779, 0.0
  %v860 = vadd.f32 %v858, %v859
  %v861 = vsel %vm627, %v780, 0.0
  %v862 = vadd.f32 %v860, %v861
  %v863 = vsel %vm627, %v781, 0.0
  %v864 = vadd.f32 %v862, %v863
  %v865 = vsel %vm627, %v782, 0.0
  %v866 = vadd.f32 %v864, %v865
  %v867 = vsel %vm627, %v783, 0.0
  %v868 = vadd.f32 %v866, %v867
  %v869 = vsel %vm627, %v784, 0.0
  %v870 = vadd.f32 %v868, %v869
  %v871 = vsel %vm627, %v785, 0.0
  %v872 = vadd.f32 %v870, %v871
  %v873 = vsel %vm627, %v786, 0.0
  %v874 = vadd.f32 %v872, %v873
  %v875 = vsel %vm627, %v787, 0.0
  %v876 = vadd.f32 %v874, %v875
  %v877 = vsel %vm627, %v788, 0.0
  %v878 = vadd.f32 %v876, %v877
  %v879 = vsel %vm627, %v789, 0.0
  %v880 = vadd.f32 %v878, %v879
  %v881 = vsel %vm627, %v790, 0.0
  %v882 = vadd.f32 %v880, %v881
  %v883 = vsel %vm627, %v791, 0.0
  %v884 = vadd.f32 %v882, %v883
  %v885 = vsel %vm627, %v792, 0.0
  %v886 = vadd.f32 %v884, %v885
  %v887 = vsel %vm627, %v793, 0.0
  %v888 = vadd.f32 %v886, %v887
  %v889 = vsel %vm627, %v794, 0.0
  %v890 = vadd.f32 %v888, %v889
  %v891 = vsel %vm627, %v795, 0.0
  %v892 = vadd.f32 %v890, %v891
  %v893 = vsel %vm627, %v796, 0.0
  %v894 = vadd.f32 %v892, %v893
  %v895 = vsel %vm627, %v797, 0.0
  %v896 = vadd.f32 %v894, %v895
  %v897 = vsel %vm627, %v798, 0.0
  %v898 = vadd.f32 %v896, %v897
  %v899 = vsel %vm627, %v799, 0.0
  %v900 = vadd.f32 %v898, %v899
  %v901 = vsel %vm627, %v800, 0.0
  %v902 = vadd.f32 %v900, %v901
  %v903 = vsel %vm627, %v801, 0.0
  %v904 = vadd.f32 %v902, %v903
  %v905 = vsel %vm627, %v802, 0.0
  %v906 = vadd.f32 %v904, %v905
  %v907 = vsel %vm627, %v803, 0.0
  %v908 = vadd.f32 %v906, %v907
  %v909 = vsel %vm627, %v804, 0.0
  %v910 = vadd.f32 %v908, %v909
  %v911 = vsel %vm627, %v805, 0.0
  %v912 = vadd.f32 %v910, %v911
  %v913 = vsel %vm627, %v806, 0.0
  %v914 = vadd.f32 %v912, %v913
  %v915 = vsel %vm627, %v807, 0.0
  %v916 = vadd.f32 %v914, %v915
  %v917 = vsel %vm627, %v808, 0.0
  %v918 = vadd.f32 %v916, %v917
  %v919 = vsel %vm627, %v809, 0.0
  %v920 = vadd.f32 %v918, %v919
  %v921 = vsel %vm627, %v810, 0.0
  %v922 = vadd.f32 %v920, %v921
  %v923 = vsel %vm627, %v811, 0.0
  %v924 = vadd.f32 %v922, %v923
  %v925 = vsel %vm627, %v812, 0.0
  %v926 = vadd.f32 %v924, %v925
  %v927 = vsel %vm627, %v813, 0.0
  %v928 = vadd.f32 %v926, %v927
  %v929 = vsel %vm627, %v814, 0.0
  %v930 = vadd.f32 %v928, %v929
  %v931 = vsel %vm627, %v815, 0.0
  %v932 = vadd.f32 %v930, %v931
  %v933 = vsel %vm627, %v816, 0.0
  %v934 = vadd.f32 %v932, %v933
  %v935 = vsel %vm627, %v817, 0.0
  %v936 = vadd.f32 %v934, %v935
  %v937 = vsel %vm627, %v818, 0.0
  %v938 = vadd.f32 %v936, %v937
  %v939 = vsel %vm627, %v819, 0.0
  %v940 = vadd.f32 %v938, %v939
  %v941 = vsel %vm627, %v820, 0.0
  %v942 = vadd.f32 %v940, %v941
  %v943 = vsel %vm627, %v821, 0.0
  %v944 = vadd.f32 %v942, %v943
  %v945 = vsel %vm627, %v822, 0.0
  %v946 = vadd.f32 %v944, %v945
  %v947 = vsel %vm627, %v823, 0.0
  %v948 = vadd.f32 %v946, %v947
  %v949 = vsel %vm627, %v824, 0.0
  %v950 = vadd.f32 %v948, %v949
  %v951 = vsel %vm627, %v825, 0.0
  %v952 = vadd.f32 %v950, %v951
  %v953 = vrot.slane %v952, 4
  %v954 = vadd.f32 %v952, %v953
  %v955 = vrot.slane %v954, 2
  %v956 = vadd.f32 %v954, %v955
  %v957 = vrot.slane %v956, 1
  %v958 = vadd.f32 %v956, %v957
  %v959 = vmul.f32 %v958, 0.001953125
  %v960 = vmul.f32 %v761, %v761
  %v961 = vsub.f32 %v959, %v960
  %v962 = vmax.f32 %v961, 0.0
  %v963 = vld [vmem:[%s2] sm:$0x1]
  %v964 = vadd.f32 %v962, 1e-05
  %v965 = vrsqrt.pop %v964
  %v966 = vmul.f32 %v963, %v965
  %v967 = vld [vmem:[%s3] sm:$0x1]
  %v968 = vmul.f32 %v761, %v966
  %v969 = vsub.f32 %v967, %v968
  %v971 = vlaneseq
  %v972 = vshrl.u32 %v971, 7
  %v973 = vsub.s32 0, %v972
  %v974 = vrot.slane %v966, %v973
  %v976 = vmul.f32 %v373, %v974
  %v977 = vmul.f32 %v376, %v974
  %v978 = vmul.f32 %v381, %v974
  %v979 = vmul.f32 %v384, %v974
  %v980 = vmul.f32 %v389, %v974
  %v981 = vmul.f32 %v392, %v974
  %v982 = vmul.f32 %v397, %v974
  %v983 = vmul.f32 %v400, %v974
  %v984 = vmul.f32 %v405, %v974
  %v985 = vmul.f32 %v408, %v974
  %v986 = vmul.f32 %v413, %v974
  %v987 = vmul.f32 %v416, %v974
  %v988 = vmul.f32 %v421, %v974
  %v989 = vmul.f32 %v424, %v974
  %v990 = vmul.f32 %v429, %v974
  %v991 = vmul.f32 %v432, %v974
  %v992 = vmul.f32 %v437, %v974
  %v993 = vmul.f32 %v440, %v974
  %v994 = vmul.f32 %v445, %v974
  %v995 = vmul.f32 %v448, %v974
  %v996 = vmul.f32 %v453, %v974
  %v997 = vmul.f32 %v456, %v974
  %v998 = vmul.f32 %v461, %v974
  %v999 = vmul.f32 %v464, %v974
  %v1000 = vmul.f32 %v469, %v974
  %v1001 = vmul.f32 %v472, %v974
  %v1002 = vmul.f32 %v477, %v974
  %v1003 = vmul.f32 %v480, %v974
  %v1004 = vmul.f32 %v485, %v974
  %v1005 = vmul.f32 %v488, %v974
  %v1006 = vmul.f32 %v493, %v974
  %v1007 = vmul.f32 %v496, %v974
  %v1008 = vmul.f32 %v501, %v974
  %v1009 = vmul.f32 %v504, %v974
  %v1010 = vmul.f32 %v509, %v974
  %v1011 = vmul.f32 %v512, %v974
  %v1012 = vmul.f32 %v517, %v974
  %v1013 = vmul.f32 %v520, %v974
  %v1014 = vmul.f32 %v525, %v974
  %v1015 = vmul.f32 %v528, %v974
  %v1016 = vmul.f32 %v533, %v974
  %v1017 = vmul.f32 %v536, %v974
  %v1018 = vmul.f32 %v541, %v974
  %v1019 = vmul.f32 %v544, %v974
  %v1020 = vmul.f32 %v549, %v974
  %v1021 = vmul.f32 %v552, %v974
  %v1022 = vmul.f32 %v557, %v974
  %v1023 = vmul.f32 %v560, %v974
  %v1024 = vmul.f32 %v565, %v974
  %v1025 = vmul.f32 %v568, %v974
  %v1026 = vmul.f32 %v573, %v974
  %v1027 = vmul.f32 %v576, %v974
  %v1028 = vmul.f32 %v581, %v974
  %v1029 = vmul.f32 %v584, %v974
  %v1030 = vmul.f32 %v589, %v974
  %v1031 = vmul.f32 %v592, %v974
  %v1032 = vmul.f32 %v597, %v974
  %v1033 = vmul.f32 %v600, %v974
  %v1034 = vmul.f32 %v605, %v974
  %v1035 = vmul.f32 %v608, %v974
  %v1036 = vmul.f32 %v613, %v974
  %v1037 = vmul.f32 %v616, %v974
  %v1038 = vmul.f32 %v621, %v974
  %v1039 = vmul.f32 %v624, %v974
  %v1041 = vlaneseq
  %v1042 = vshrl.u32 %v1041, 7
  %v1043 = vsub.s32 0, %v1042
  %v1044 = vrot.slane %v969, %v1043
  %v1046 = vadd.f32 %v976, %v1044
  %v1047 = vadd.f32 %v977, %v1044
  %v1048 = vadd.f32 %v978, %v1044
  %v1049 = vadd.f32 %v979, %v1044
  %v1050 = vadd.f32 %v980, %v1044
  %v1051 = vadd.f32 %v981, %v1044
  %v1052 = vadd.f32 %v982, %v1044
  %v1053 = vadd.f32 %v983, %v1044
  %v1054 = vadd.f32 %v984, %v1044
  %v1055 = vadd.f32 %v985, %v1044
  %v1056 = vadd.f32 %v986, %v1044
  %v1057 = vadd.f32 %v987, %v1044
  %v1058 = vadd.f32 %v988, %v1044
  %v1059 = vadd.f32 %v989, %v1044
  %v1060 = vadd.f32 %v990, %v1044
  %v1061 = vadd.f32 %v991, %v1044
  %v1062 = vadd.f32 %v992, %v1044
  %v1063 = vadd.f32 %v993, %v1044
  %v1064 = vadd.f32 %v994, %v1044
  %v1065 = vadd.f32 %v995, %v1044
  %v1066 = vadd.f32 %v996, %v1044
  %v1067 = vadd.f32 %v997, %v1044
  %v1068 = vadd.f32 %v998, %v1044
  %v1069 = vadd.f32 %v999, %v1044
  %v1070 = vadd.f32 %v1000, %v1044
  %v1071 = vadd.f32 %v1001, %v1044
  %v1072 = vadd.f32 %v1002, %v1044
  %v1073 = vadd.f32 %v1003, %v1044
  %v1074 = vadd.f32 %v1004, %v1044
  %v1075 = vadd.f32 %v1005, %v1044
  %v1076 = vadd.f32 %v1006, %v1044
  %v1077 = vadd.f32 %v1007, %v1044
  %v1078 = vadd.f32 %v1008, %v1044
  %v1079 = vadd.f32 %v1009, %v1044
  %v1080 = vadd.f32 %v1010, %v1044
  %v1081 = vadd.f32 %v1011, %v1044
  %v1082 = vadd.f32 %v1012, %v1044
  %v1083 = vadd.f32 %v1013, %v1044
  %v1084 = vadd.f32 %v1014, %v1044
  %v1085 = vadd.f32 %v1015, %v1044
  %v1086 = vadd.f32 %v1016, %v1044
  %v1087 = vadd.f32 %v1017, %v1044
  %v1088 = vadd.f32 %v1018, %v1044
  %v1089 = vadd.f32 %v1019, %v1044
  %v1090 = vadd.f32 %v1020, %v1044
  %v1091 = vadd.f32 %v1021, %v1044
  %v1092 = vadd.f32 %v1022, %v1044
  %v1093 = vadd.f32 %v1023, %v1044
  %v1094 = vadd.f32 %v1024, %v1044
  %v1095 = vadd.f32 %v1025, %v1044
  %v1096 = vadd.f32 %v1026, %v1044
  %v1097 = vadd.f32 %v1027, %v1044
  %v1098 = vadd.f32 %v1028, %v1044
  %v1099 = vadd.f32 %v1029, %v1044
  %v1100 = vadd.f32 %v1030, %v1044
  %v1101 = vadd.f32 %v1031, %v1044
  %v1102 = vadd.f32 %v1032, %v1044
  %v1103 = vadd.f32 %v1033, %v1044
  %v1104 = vadd.f32 %v1034, %v1044
  %v1105 = vadd.f32 %v1035, %v1044
  %v1106 = vadd.f32 %v1036, %v1044
  %v1107 = vadd.f32 %v1037, %v1044
  %v1108 = vadd.f32 %v1038, %v1044
  %v1109 = vadd.f32 %v1039, %v1044
  %vm1110 = vcmp.ge.f32.partialorder %v1046, 0.0
  %vm1111 = vcmp.ge.f32.partialorder %v1047, 0.0
  %vm1112 = vcmp.ge.f32.partialorder %v1048, 0.0
  %vm1113 = vcmp.ge.f32.partialorder %v1049, 0.0
  %vm1114 = vcmp.ge.f32.partialorder %v1050, 0.0
  %vm1115 = vcmp.ge.f32.partialorder %v1051, 0.0
  %vm1116 = vcmp.ge.f32.partialorder %v1052, 0.0
  %vm1117 = vcmp.ge.f32.partialorder %v1053, 0.0
  %vm1118 = vcmp.ge.f32.partialorder %v1054, 0.0
  %vm1119 = vcmp.ge.f32.partialorder %v1055, 0.0
  %vm1120 = vcmp.ge.f32.partialorder %v1056, 0.0
  %vm1121 = vcmp.ge.f32.partialorder %v1057, 0.0
  %vm1122 = vcmp.ge.f32.partialorder %v1058, 0.0
  %vm1123 = vcmp.ge.f32.partialorder %v1059, 0.0
  %vm1124 = vcmp.ge.f32.partialorder %v1060, 0.0
  %vm1125 = vcmp.ge.f32.partialorder %v1061, 0.0
  %vm1126 = vcmp.ge.f32.partialorder %v1062, 0.0
  %vm1127 = vcmp.ge.f32.partialorder %v1063, 0.0
  %vm1128 = vcmp.ge.f32.partialorder %v1064, 0.0
  %vm1129 = vcmp.ge.f32.partialorder %v1065, 0.0
  %vm1130 = vcmp.ge.f32.partialorder %v1066, 0.0
  %vm1131 = vcmp.ge.f32.partialorder %v1067, 0.0
  %vm1132 = vcmp.ge.f32.partialorder %v1068, 0.0
  %vm1133 = vcmp.ge.f32.partialorder %v1069, 0.0
  %vm1134 = vcmp.ge.f32.partialorder %v1070, 0.0
  %vm1135 = vcmp.ge.f32.partialorder %v1071, 0.0
  %vm1136 = vcmp.ge.f32.partialorder %v1072, 0.0
  %vm1137 = vcmp.ge.f32.partialorder %v1073, 0.0
  %vm1138 = vcmp.ge.f32.partialorder %v1074, 0.0
  %vm1139 = vcmp.ge.f32.partialorder %v1075, 0.0
  %vm1140 = vcmp.ge.f32.partialorder %v1076, 0.0
  %vm1141 = vcmp.ge.f32.partialorder %v1077, 0.0
  %vm1142 = vcmp.ge.f32.partialorder %v1078, 0.0
  %vm1143 = vcmp.ge.f32.partialorder %v1079, 0.0
  %vm1144 = vcmp.ge.f32.partialorder %v1080, 0.0
  %vm1145 = vcmp.ge.f32.partialorder %v1081, 0.0
  %vm1146 = vcmp.ge.f32.partialorder %v1082, 0.0
  %vm1147 = vcmp.ge.f32.partialorder %v1083, 0.0
  %vm1148 = vcmp.ge.f32.partialorder %v1084, 0.0
  %vm1149 = vcmp.ge.f32.partialorder %v1085, 0.0
  %vm1150 = vcmp.ge.f32.partialorder %v1086, 0.0
  %vm1151 = vcmp.ge.f32.partialorder %v1087, 0.0
  %vm1152 = vcmp.ge.f32.partialorder %v1088, 0.0
  %vm1153 = vcmp.ge.f32.partialorder %v1089, 0.0
  %vm1154 = vcmp.ge.f32.partialorder %v1090, 0.0
  %vm1155 = vcmp.ge.f32.partialorder %v1091, 0.0
  %vm1156 = vcmp.ge.f32.partialorder %v1092, 0.0
  %vm1157 = vcmp.ge.f32.partialorder %v1093, 0.0
  %vm1158 = vcmp.ge.f32.partialorder %v1094, 0.0
  %vm1159 = vcmp.ge.f32.partialorder %v1095, 0.0
  %vm1160 = vcmp.ge.f32.partialorder %v1096, 0.0
  %vm1161 = vcmp.ge.f32.partialorder %v1097, 0.0
  %vm1162 = vcmp.ge.f32.partialorder %v1098, 0.0
  %vm1163 = vcmp.ge.f32.partialorder %v1099, 0.0
  %vm1164 = vcmp.ge.f32.partialorder %v1100, 0.0
  %vm1165 = vcmp.ge.f32.partialorder %v1101, 0.0
  %vm1166 = vcmp.ge.f32.partialorder %v1102, 0.0
  %vm1167 = vcmp.ge.f32.partialorder %v1103, 0.0
  %vm1168 = vcmp.ge.f32.partialorder %v1104, 0.0
  %vm1169 = vcmp.ge.f32.partialorder %v1105, 0.0
  %vm1170 = vcmp.ge.f32.partialorder %v1106, 0.0
  %vm1171 = vcmp.ge.f32.partialorder %v1107, 0.0
  %vm1172 = vcmp.ge.f32.partialorder %v1108, 0.0
  %vm1173 = vcmp.ge.f32.partialorder %v1109, 0.0
  %v1174 = vmul.f32 %v1046, 0.2
  %v1175 = vmul.f32 %v1047, 0.2
  %v1176 = vmul.f32 %v1048, 0.2
  %v1177 = vmul.f32 %v1049, 0.2
  %v1178 = vmul.f32 %v1050, 0.2
  %v1179 = vmul.f32 %v1051, 0.2
  %v1180 = vmul.f32 %v1052, 0.2
  %v1181 = vmul.f32 %v1053, 0.2
  %v1182 = vmul.f32 %v1054, 0.2
  %v1183 = vmul.f32 %v1055, 0.2
  %v1184 = vmul.f32 %v1056, 0.2
  %v1185 = vmul.f32 %v1057, 0.2
  %v1186 = vmul.f32 %v1058, 0.2
  %v1187 = vmul.f32 %v1059, 0.2
  %v1188 = vmul.f32 %v1060, 0.2
  %v1189 = vmul.f32 %v1061, 0.2
  %v1190 = vmul.f32 %v1062, 0.2
  %v1191 = vmul.f32 %v1063, 0.2
  %v1192 = vmul.f32 %v1064, 0.2
  %v1193 = vmul.f32 %v1065, 0.2
  %v1194 = vmul.f32 %v1066, 0.2
  %v1195 = vmul.f32 %v1067, 0.2
  %v1196 = vmul.f32 %v1068, 0.2
  %v1197 = vmul.f32 %v1069, 0.2
  %v1198 = vmul.f32 %v1070, 0.2
  %v1199 = vmul.f32 %v1071, 0.2
  %v1200 = vmul.f32 %v1072, 0.2
  %v1201 = vmul.f32 %v1073, 0.2
  %v1202 = vmul.f32 %v1074, 0.2
  %v1203 = vmul.f32 %v1075, 0.2
  %v1204 = vmul.f32 %v1076, 0.2
  %v1205 = vmul.f32 %v1077, 0.2
  %v1206 = vmul.f32 %v1078, 0.2
  %v1207 = vmul.f32 %v1079, 0.2
  %v1208 = vmul.f32 %v1080, 0.2
  %v1209 = vmul.f32 %v1081, 0.2
  %v1210 = vmul.f32 %v1082, 0.2
  %v1211 = vmul.f32 %v1083, 0.2
  %v1212 = vmul.f32 %v1084, 0.2
  %v1213 = vmul.f32 %v1085, 0.2
  %v1214 = vmul.f32 %v1086, 0.2
  %v1215 = vmul.f32 %v1087, 0.2
  %v1216 = vmul.f32 %v1088, 0.2
  %v1217 = vmul.f32 %v1089, 0.2
  %v1218 = vmul.f32 %v1090, 0.2
  %v1219 = vmul.f32 %v1091, 0.2
  %v1220 = vmul.f32 %v1092, 0.2
  %v1221 = vmul.f32 %v1093, 0.2
  %v1222 = vmul.f32 %v1094, 0.2
  %v1223 = vmul.f32 %v1095, 0.2
  %v1224 = vmul.f32 %v1096, 0.2
  %v1225 = vmul.f32 %v1097, 0.2
  %v1226 = vmul.f32 %v1098, 0.2
  %v1227 = vmul.f32 %v1099, 0.2
  %v1228 = vmul.f32 %v1100, 0.2
  %v1229 = vmul.f32 %v1101, 0.2
  %v1230 = vmul.f32 %v1102, 0.2
  %v1231 = vmul.f32 %v1103, 0.2
  %v1232 = vmul.f32 %v1104, 0.2
  %v1233 = vmul.f32 %v1105, 0.2
  %v1234 = vmul.f32 %v1106, 0.2
  %v1235 = vmul.f32 %v1107, 0.2
  %v1236 = vmul.f32 %v1108, 0.2
  %v1237 = vmul.f32 %v1109, 0.2
  %v1238 = vsel %vm1110, %v1046, %v1174
  %v1239 = vsel %vm1111, %v1047, %v1175
  %v1240 = vsel %vm1112, %v1048, %v1176
  %v1241 = vsel %vm1113, %v1049, %v1177
  %v1242 = vsel %vm1114, %v1050, %v1178
  %v1243 = vsel %vm1115, %v1051, %v1179
  %v1244 = vsel %vm1116, %v1052, %v1180
  %v1245 = vsel %vm1117, %v1053, %v1181
  %v1246 = vsel %vm1118, %v1054, %v1182
  %v1247 = vsel %vm1119, %v1055, %v1183
  %v1248 = vsel %vm1120, %v1056, %v1184
  %v1249 = vsel %vm1121, %v1057, %v1185
  %v1250 = vsel %vm1122, %v1058, %v1186
  %v1251 = vsel %vm1123, %v1059, %v1187
  %v1252 = vsel %vm1124, %v1060, %v1188
  %v1253 = vsel %vm1125, %v1061, %v1189
  %v1254 = vsel %vm1126, %v1062, %v1190
  %v1255 = vsel %vm1127, %v1063, %v1191
  %v1256 = vsel %vm1128, %v1064, %v1192
  %v1257 = vsel %vm1129, %v1065, %v1193
  %v1258 = vsel %vm1130, %v1066, %v1194
  %v1259 = vsel %vm1131, %v1067, %v1195
  %v1260 = vsel %vm1132, %v1068, %v1196
  %v1261 = vsel %vm1133, %v1069, %v1197
  %v1262 = vsel %vm1134, %v1070, %v1198
  %v1263 = vsel %vm1135, %v1071, %v1199
  %v1264 = vsel %vm1136, %v1072, %v1200
  %v1265 = vsel %vm1137, %v1073, %v1201
  %v1266 = vsel %vm1138, %v1074, %v1202
  %v1267 = vsel %vm1139, %v1075, %v1203
  %v1268 = vsel %vm1140, %v1076, %v1204
  %v1269 = vsel %vm1141, %v1077, %v1205
  %v1270 = vsel %vm1142, %v1078, %v1206
  %v1271 = vsel %vm1143, %v1079, %v1207
  %v1272 = vsel %vm1144, %v1080, %v1208
  %v1273 = vsel %vm1145, %v1081, %v1209
  %v1274 = vsel %vm1146, %v1082, %v1210
  %v1275 = vsel %vm1147, %v1083, %v1211
  %v1276 = vsel %vm1148, %v1084, %v1212
  %v1277 = vsel %vm1149, %v1085, %v1213
  %v1278 = vsel %vm1150, %v1086, %v1214
  %v1279 = vsel %vm1151, %v1087, %v1215
  %v1280 = vsel %vm1152, %v1088, %v1216
  %v1281 = vsel %vm1153, %v1089, %v1217
  %v1282 = vsel %vm1154, %v1090, %v1218
  %v1283 = vsel %vm1155, %v1091, %v1219
  %v1284 = vsel %vm1156, %v1092, %v1220
  %v1285 = vsel %vm1157, %v1093, %v1221
  %v1286 = vsel %vm1158, %v1094, %v1222
  %v1287 = vsel %vm1159, %v1095, %v1223
  %v1288 = vsel %vm1160, %v1096, %v1224
  %v1289 = vsel %vm1161, %v1097, %v1225
  %v1290 = vsel %vm1162, %v1098, %v1226
  %v1291 = vsel %vm1163, %v1099, %v1227
  %v1292 = vsel %vm1164, %v1100, %v1228
  %v1293 = vsel %vm1165, %v1101, %v1229
  %v1294 = vsel %vm1166, %v1102, %v1230
  %v1295 = vsel %vm1167, %v1103, %v1231
  %v1296 = vsel %vm1168, %v1104, %v1232
  %v1297 = vsel %vm1169, %v1105, %v1233
  %v1298 = vsel %vm1170, %v1106, %v1234
  %v1299 = vsel %vm1171, %v1107, %v1235
  %v1300 = vsel %vm1172, %v1108, %v1236
  %v1301 = vsel %vm1173, %v1109, %v1237
  %v1302 = vpack.c.bf16 %v1239, %v1238
  %v1303 = vpack.c.bf16 %v1241, %v1240
  %v1304 = vpack.c.bf16 %v1243, %v1242
  %v1305 = vpack.c.bf16 %v1245, %v1244
  %v1306 = vpack.c.bf16 %v1247, %v1246
  %v1307 = vpack.c.bf16 %v1249, %v1248
  %v1308 = vpack.c.bf16 %v1251, %v1250
  %v1309 = vpack.c.bf16 %v1253, %v1252
  %v1310 = vpack.c.bf16 %v1255, %v1254
  %v1311 = vpack.c.bf16 %v1257, %v1256
  %v1312 = vpack.c.bf16 %v1259, %v1258
  %v1313 = vpack.c.bf16 %v1261, %v1260
  %v1314 = vpack.c.bf16 %v1263, %v1262
  %v1315 = vpack.c.bf16 %v1265, %v1264
  %v1316 = vpack.c.bf16 %v1267, %v1266
  %v1317 = vpack.c.bf16 %v1269, %v1268
  %v1318 = vpack.c.bf16 %v1271, %v1270
  %v1319 = vpack.c.bf16 %v1273, %v1272
  %v1320 = vpack.c.bf16 %v1275, %v1274
  %v1321 = vpack.c.bf16 %v1277, %v1276
  %v1322 = vpack.c.bf16 %v1279, %v1278
  %v1323 = vpack.c.bf16 %v1281, %v1280
  %v1324 = vpack.c.bf16 %v1283, %v1282
  %v1325 = vpack.c.bf16 %v1285, %v1284
  %v1326 = vpack.c.bf16 %v1287, %v1286
  %v1327 = vpack.c.bf16 %v1289, %v1288
  %v1328 = vpack.c.bf16 %v1291, %v1290
  %v1329 = vpack.c.bf16 %v1293, %v1292
  %v1330 = vpack.c.bf16 %v1295, %v1294
  %v1331 = vpack.c.bf16 %v1297, %v1296
  %v1332 = vpack.c.bf16 %v1299, %v1298
  %v1333 = vpack.c.bf16 %v1301, %v1300
  %v1366 = vunpack.c.l.b16 %v1302
  %v1367 = vunpack.c.h.b16 %v1302
  %v1368 = vunpack.c.l.b16 %v1303
  %v1369 = vunpack.c.h.b16 %v1303
  %v1370 = vunpack.c.l.b16 %v1304
  %v1371 = vunpack.c.h.b16 %v1304
  %v1372 = vunpack.c.l.b16 %v1305
  %v1373 = vunpack.c.h.b16 %v1305
  %v1374 = vunpack.c.l.b16 %v1306
  %v1375 = vunpack.c.h.b16 %v1306
  %v1376 = vunpack.c.l.b16 %v1307
  %v1377 = vunpack.c.h.b16 %v1307
  %v1378 = vunpack.c.l.b16 %v1308
  %v1379 = vunpack.c.h.b16 %v1308
  %v1380 = vunpack.c.l.b16 %v1309
  %v1381 = vunpack.c.h.b16 %v1309
  %v1382 = vunpack.c.l.b16 %v1310
  %v1383 = vunpack.c.h.b16 %v1310
  %v1384 = vunpack.c.l.b16 %v1311
  %v1385 = vunpack.c.h.b16 %v1311
  %v1386 = vunpack.c.l.b16 %v1312
  %v1387 = vunpack.c.h.b16 %v1312
  %v1388 = vunpack.c.l.b16 %v1313
  %v1389 = vunpack.c.h.b16 %v1313
  %v1390 = vunpack.c.l.b16 %v1314
  %v1391 = vunpack.c.h.b16 %v1314
  %v1392 = vunpack.c.l.b16 %v1315
  %v1393 = vunpack.c.h.b16 %v1315
  %v1394 = vunpack.c.l.b16 %v1316
  %v1395 = vunpack.c.h.b16 %v1316
  %v1396 = vunpack.c.l.b16 %v1317
  %v1397 = vunpack.c.h.b16 %v1317
  %v1398 = vunpack.c.l.b16 %v1318
  %v1399 = vunpack.c.h.b16 %v1318
  %v1400 = vunpack.c.l.b16 %v1319
  %v1401 = vunpack.c.h.b16 %v1319
  %v1402 = vunpack.c.l.b16 %v1320
  %v1403 = vunpack.c.h.b16 %v1320
  %v1404 = vunpack.c.l.b16 %v1321
  %v1405 = vunpack.c.h.b16 %v1321
  %v1406 = vunpack.c.l.b16 %v1322
  %v1407 = vunpack.c.h.b16 %v1322
  %v1408 = vunpack.c.l.b16 %v1323
  %v1409 = vunpack.c.h.b16 %v1323
  %v1410 = vunpack.c.l.b16 %v1324
  %v1411 = vunpack.c.h.b16 %v1324
  %v1412 = vunpack.c.l.b16 %v1325
  %v1413 = vunpack.c.h.b16 %v1325
  %v1414 = vunpack.c.l.b16 %v1326
  %v1415 = vunpack.c.h.b16 %v1326
  %v1416 = vunpack.c.l.b16 %v1327
  %v1417 = vunpack.c.h.b16 %v1327
  %v1418 = vunpack.c.l.b16 %v1328
  %v1419 = vunpack.c.h.b16 %v1328
  %v1420 = vunpack.c.l.b16 %v1329
  %v1421 = vunpack.c.h.b16 %v1329
  %v1422 = vunpack.c.l.b16 %v1330
  %v1423 = vunpack.c.h.b16 %v1330
  %v1424 = vunpack.c.l.b16 %v1331
  %v1425 = vunpack.c.h.b16 %v1331
  %v1426 = vunpack.c.l.b16 %v1332
  %v1427 = vunpack.c.h.b16 %v1332
  %v1428 = vunpack.c.l.b16 %v1333
  %v1429 = vunpack.c.h.b16 %v1333
  %v1430 = vpack.c.b16 %v1366, %v1366
  %v1431 = vpack.c.b16 %v1367, %v1367
  %v1432 = vpack.c.b16 %v1368, %v1368
  %v1433 = vpack.c.b16 %v1369, %v1369
  %v1434 = vpack.c.b16 %v1370, %v1370
  %v1435 = vpack.c.b16 %v1371, %v1371
  %v1436 = vpack.c.b16 %v1372, %v1372
  %v1437 = vpack.c.b16 %v1373, %v1373
  %v1438 = vpack.c.b16 %v1374, %v1374
  %v1439 = vpack.c.b16 %v1375, %v1375
  %v1440 = vpack.c.b16 %v1376, %v1376
  %v1441 = vpack.c.b16 %v1377, %v1377
  %v1442 = vpack.c.b16 %v1378, %v1378
  %v1443 = vpack.c.b16 %v1379, %v1379
  %v1444 = vpack.c.b16 %v1380, %v1380
  %v1445 = vpack.c.b16 %v1381, %v1381
  %v1446 = vpack.c.b16 %v1382, %v1382
  %v1447 = vpack.c.b16 %v1383, %v1383
  %v1448 = vpack.c.b16 %v1384, %v1384
  %v1449 = vpack.c.b16 %v1385, %v1385
  %v1450 = vpack.c.b16 %v1386, %v1386
  %v1451 = vpack.c.b16 %v1387, %v1387
  %v1452 = vpack.c.b16 %v1388, %v1388
  %v1453 = vpack.c.b16 %v1389, %v1389
  %v1454 = vpack.c.b16 %v1390, %v1390
  %v1455 = vpack.c.b16 %v1391, %v1391
  %v1456 = vpack.c.b16 %v1392, %v1392
  %v1457 = vpack.c.b16 %v1393, %v1393
  %v1458 = vpack.c.b16 %v1394, %v1394
  %v1459 = vpack.c.b16 %v1395, %v1395
  %v1460 = vpack.c.b16 %v1396, %v1396
  %v1461 = vpack.c.b16 %v1397, %v1397
  %v1462 = vpack.c.b16 %v1398, %v1398
  %v1463 = vpack.c.b16 %v1399, %v1399
  %v1464 = vpack.c.b16 %v1400, %v1400
  %v1465 = vpack.c.b16 %v1401, %v1401
  %v1466 = vpack.c.b16 %v1402, %v1402
  %v1467 = vpack.c.b16 %v1403, %v1403
  %v1468 = vpack.c.b16 %v1404, %v1404
  %v1469 = vpack.c.b16 %v1405, %v1405
  %v1470 = vpack.c.b16 %v1406, %v1406
  %v1471 = vpack.c.b16 %v1407, %v1407
  %v1472 = vpack.c.b16 %v1408, %v1408
  %v1473 = vpack.c.b16 %v1409, %v1409
  %v1474 = vpack.c.b16 %v1410, %v1410
  %v1475 = vpack.c.b16 %v1411, %v1411
  %v1476 = vpack.c.b16 %v1412, %v1412
  %v1477 = vpack.c.b16 %v1413, %v1413
  %v1478 = vpack.c.b16 %v1414, %v1414
  %v1479 = vpack.c.b16 %v1415, %v1415
  %v1480 = vpack.c.b16 %v1416, %v1416
  %v1481 = vpack.c.b16 %v1417, %v1417
  %v1482 = vpack.c.b16 %v1418, %v1418
  %v1483 = vpack.c.b16 %v1419, %v1419
  %v1484 = vpack.c.b16 %v1420, %v1420
  %v1485 = vpack.c.b16 %v1421, %v1421
  %v1486 = vpack.c.b16 %v1422, %v1422
  %v1487 = vpack.c.b16 %v1423, %v1423
  %v1488 = vpack.c.b16 %v1424, %v1424
  %v1489 = vpack.c.b16 %v1425, %v1425
  %v1490 = vpack.c.b16 %v1426, %v1426
  %v1491 = vpack.c.b16 %v1427, %v1427
  %v1492 = vpack.c.b16 %v1428, %v1428
  %v1493 = vpack.c.b16 %v1429, %v1429
  %vm1558 = vcmask 125952
  %1559 = vst.msk [vmem:[%s4] sm:$0xf] %vm1558, %v1430
  %1560 = vst.msk [vmem:[%s4 + $0x4] sm:$0xf] %vm1558, %v1431
  %1561 = vst.msk [vmem:[%s4 + $0x8] sm:$0xf] %vm1558, %v1432
  %1562 = vst.msk [vmem:[%s4 + $0xc] sm:$0xf] %vm1558, %v1433
  %1563 = vst.msk [vmem:[%s4 + $0x10] sm:$0xf] %vm1558, %v1434
  %1564 = vst.msk [vmem:[%s4 + $0x14] sm:$0xf] %vm1558, %v1435
  %1565 = vst.msk [vmem:[%s4 + $0x18] sm:$0xf] %vm1558, %v1436
  %1566 = vst.msk [vmem:[%s4 + $0x1c] sm:$0xf] %vm1558, %v1437
  %1567 = vst.msk [vmem:[%s4 + $0x20] sm:$0xf] %vm1558, %v1438
  %1568 = vst.msk [vmem:[%s4 + $0x24] sm:$0xf] %vm1558, %v1439
  %1569 = vst.msk [vmem:[%s4 + $0x28] sm:$0xf] %vm1558, %v1440
  %1570 = vst.msk [vmem:[%s4 + $0x2c] sm:$0xf] %vm1558, %v1441
  %1571 = vst.msk [vmem:[%s4 + $0x30] sm:$0xf] %vm1558, %v1442
  %1572 = vst.msk [vmem:[%s4 + $0x34] sm:$0xf] %vm1558, %v1443
  %1573 = vst.msk [vmem:[%s4 + $0x38] sm:$0xf] %vm1558, %v1444
  %1574 = vst.msk [vmem:[%s4 + $0x3c] sm:$0xf] %vm1558, %v1445
  %1575 = vst.msk [vmem:[%s4 + $0x40] sm:$0xf] %vm1558, %v1446
  %1576 = vst.msk [vmem:[%s4 + $0x44] sm:$0xf] %vm1558, %v1447
  %1577 = vst.msk [vmem:[%s4 + $0x48] sm:$0xf] %vm1558, %v1448
  %1578 = vst.msk [vmem:[%s4 + $0x4c] sm:$0xf] %vm1558, %v1449
  %1579 = vst.msk [vmem:[%s4 + $0x50] sm:$0xf] %vm1558, %v1450
  %1580 = vst.msk [vmem:[%s4 + $0x54] sm:$0xf] %vm1558, %v1451
  %1581 = vst.msk [vmem:[%s4 + $0x58] sm:$0xf] %vm1558, %v1452
  %1582 = vst.msk [vmem:[%s4 + $0x5c] sm:$0xf] %vm1558, %v1453
  %1583 = vst.msk [vmem:[%s4 + $0x60] sm:$0xf] %vm1558, %v1454
  %1584 = vst.msk [vmem:[%s4 + $0x64] sm:$0xf] %vm1558, %v1455
  %1585 = vst.msk [vmem:[%s4 + $0x68] sm:$0xf] %vm1558, %v1456
  %1586 = vst.msk [vmem:[%s4 + $0x6c] sm:$0xf] %vm1558, %v1457
  %1587 = vst.msk [vmem:[%s4 + $0x70] sm:$0xf] %vm1558, %v1458
  %1588 = vst.msk [vmem:[%s4 + $0x74] sm:$0xf] %vm1558, %v1459
  %1589 = vst.msk [vmem:[%s4 + $0x78] sm:$0xf] %vm1558, %v1460
  %1590 = vst.msk [vmem:[%s4 + $0x7c] sm:$0xf] %vm1558, %v1461
  %1591 = vst.msk [vmem:[%s4 + $0x80] sm:$0xf] %vm1558, %v1462
  %1592 = vst.msk [vmem:[%s4 + $0x84] sm:$0xf] %vm1558, %v1463
  %1593 = vst.msk [vmem:[%s4 + $0x88] sm:$0xf] %vm1558, %v1464
  %1594 = vst.msk [vmem:[%s4 + $0x8c] sm:$0xf] %vm1558, %v1465
  %1595 = vst.msk [vmem:[%s4 + $0x90] sm:$0xf] %vm1558, %v1466
  %1596 = vst.msk [vmem:[%s4 + $0x94] sm:$0xf] %vm1558, %v1467
  %1597 = vst.msk [vmem:[%s4 + $0x98] sm:$0xf] %vm1558, %v1468
  %1598 = vst.msk [vmem:[%s4 + $0x9c] sm:$0xf] %vm1558, %v1469
  %1599 = vst.msk [vmem:[%s4 + $0xa0] sm:$0xf] %vm1558, %v1470
  %1600 = vst.msk [vmem:[%s4 + $0xa4] sm:$0xf] %vm1558, %v1471
  %1601 = vst.msk [vmem:[%s4 + $0xa8] sm:$0xf] %vm1558, %v1472
  %1602 = vst.msk [vmem:[%s4 + $0xac] sm:$0xf] %vm1558, %v1473
  %1603 = vst.msk [vmem:[%s4 + $0xb0] sm:$0xf] %vm1558, %v1474
  %1604 = vst.msk [vmem:[%s4 + $0xb4] sm:$0xf] %vm1558, %v1475
  %1605 = vst.msk [vmem:[%s4 + $0xb8] sm:$0xf] %vm1558, %v1476
  %1606 = vst.msk [vmem:[%s4 + $0xbc] sm:$0xf] %vm1558, %v1477
  %1607 = vst.msk [vmem:[%s4 + $0xc0] sm:$0xf] %vm1558, %v1478
  %1608 = vst.msk [vmem:[%s4 + $0xc4] sm:$0xf] %vm1558, %v1479
  %1609 = vst.msk [vmem:[%s4 + $0xc8] sm:$0xf] %vm1558, %v1480
  %1610 = vst.msk [vmem:[%s4 + $0xcc] sm:$0xf] %vm1558, %v1481
  %1611 = vst.msk [vmem:[%s4 + $0xd0] sm:$0xf] %vm1558, %v1482
  %1612 = vst.msk [vmem:[%s4 + $0xd4] sm:$0xf] %vm1558, %v1483
  %1613 = vst.msk [vmem:[%s4 + $0xd8] sm:$0xf] %vm1558, %v1484
  %1614 = vst.msk [vmem:[%s4 + $0xdc] sm:$0xf] %vm1558, %v1485
  %1615 = vst.msk [vmem:[%s4 + $0xe0] sm:$0xf] %vm1558, %v1486
  %1616 = vst.msk [vmem:[%s4 + $0xe4] sm:$0xf] %vm1558, %v1487
  %1617 = vst.msk [vmem:[%s4 + $0xe8] sm:$0xf] %vm1558, %v1488
  %1618 = vst.msk [vmem:[%s4 + $0xec] sm:$0xf] %vm1558, %v1489
  %1619 = vst.msk [vmem:[%s4 + $0xf0] sm:$0xf] %vm1558, %v1490
  %1620 = vst.msk [vmem:[%s4 + $0xf4] sm:$0xf] %vm1558, %v1491
  %1621 = vst.msk [vmem:[%s4 + $0xf8] sm:$0xf] %vm1558, %v1492
  %1622 = vst.msk [vmem:[%s4 + $0xfc] sm:$0xf] %vm1558, %v1493
  // Predicated region
  $region18: #{discriminator_forward.5} parent=0 // pred_check
    _
  $region19: #{discriminator_forward.5} parent=0 // pred_check_branch
    %1624 = sbr.rel (0) target = $region21
  $region20: #{discriminator_forward.5} parent=0 // pred_region
    _
  $region21: #{discriminator_forward.5} parent=0 // pred_fallthru
    _
  // Predicated region
  $region22: #{discriminator_forward.5} parent=0 // pred_check
    _
  $region23: #{discriminator_forward.5} parent=0 // pred_check_branch
    %1626 = sbr.rel (0) target = $region25
  $region24: #{discriminator_forward.5} parent=0 // pred_region
    _
  $region25: #{discriminator_forward.5} parent=0 // pred_fallthru
    _

// kernel: discriminator_forward.6
$region0: #{discriminator_forward.6}
  #allocation0 [shape = 'u32[]', space=smem, size = 0x4, offset = 0x4, fixed_abs, tag = 'smem constant byte address 0x4 - core index']
  #allocation1 [shape = 'u32[144,128]{1,0:T(1,128)}', space=vmem, size = 0x12000, scoped, tag = 'internal scratch']
  %s0 = inlined_call_operand.vmem [shape: bf16[128,256], index: 0, kind: input, shape index: {}]
  %s1 = inlined_call_operand.vmem [shape: bf16[256,32], index: 1, kind: input, shape index: {}]
  %s2 = inlined_call_operand.vmem [shape: f32[1,32], index: 2, kind: input, shape index: {}]
  %s3 = inlined_call_operand.vmem [shape: f32[1,32], index: 3, kind: input, shape index: {}]
  %s4 = inlined_call_operand.vmem [shape: bf16[128,32], index: 4, kind: output, shape index: {}]
  %s5 = sld [smem:[#allocation0]]
  $region26: #{discriminator_forward.6} parent=0
    _
  %s7 = ssub.s32 1, %s5
  %s8 = scalar_select 0, %s7, %s5
  // Predicated region
  $region2: #{discriminator_forward.6} parent=0 // pred_check
    _
  $region3: #{discriminator_forward.6} parent=0 // pred_check_branch
    %10 = sbr.rel (0) target = $region5
  $region4: #{discriminator_forward.6} parent=0 // pred_region
    _
  $region5: #{discriminator_forward.6} parent=0 // pred_fallthru
    _
  // Predicated region
  $region6: #{discriminator_forward.6} parent=0 // pred_check
    _
  $region7: #{discriminator_forward.6} parent=0 // pred_check_branch
    %12 = sbr.rel (0) target = $region9
  $region8: #{discriminator_forward.6} parent=0 // pred_region
    _
  $region9: #{discriminator_forward.6} parent=0 // pred_fallthru
    _
  // Predicated region
  $region10: #{discriminator_forward.6} parent=0 // pred_check
    _
  $region11: #{discriminator_forward.6} parent=0 // pred_check_branch
    %14 = sbr.rel (0) target = $region13
  $region12: #{discriminator_forward.6} parent=0 // pred_region
    _
  $region13: #{discriminator_forward.6} parent=0 // pred_fallthru
    _
  // Predicated region
  $region14: #{discriminator_forward.6} parent=0 // pred_check
    _
  $region15: #{discriminator_forward.6} parent=0 // pred_check_branch
    %16 = sbr.rel (0) target = $region17
  $region16: #{discriminator_forward.6} parent=0 // pred_region
    _
  $region17: #{discriminator_forward.6} parent=0 // pred_fallthru
    _
  %v18 = vld [vmem:[%s0] sm:$0xff]
  %v19 = vld [vmem:[%s0 + $0x8] sm:$0xff]
  %v20 = vld [vmem:[%s0 + $0x10] sm:$0xff]
  %v21 = vld [vmem:[%s0 + $0x18] sm:$0xff]
  %v22 = vld [vmem:[%s0 + $0x20] sm:$0xff]
  %v23 = vld [vmem:[%s0 + $0x28] sm:$0xff]
  %v24 = vld [vmem:[%s0 + $0x30] sm:$0xff]
  %v25 = vld [vmem:[%s0 + $0x38] sm:$0xff]
  %v26 = vld [vmem:[%s0 + $0x40] sm:$0xff]
  %v27 = vld [vmem:[%s0 + $0x48] sm:$0xff]
  %v28 = vld [vmem:[%s0 + $0x50] sm:$0xff]
  %v29 = vld [vmem:[%s0 + $0x58] sm:$0xff]
  %v30 = vld [vmem:[%s0 + $0x60] sm:$0xff]
  %v31 = vld [vmem:[%s0 + $0x68] sm:$0xff]
  %v32 = vld [vmem:[%s0 + $0x70] sm:$0xff]
  %v33 = vld [vmem:[%s0 + $0x78] sm:$0xff]
  %v34 = vld [vmem:[%s1] sm:$0xf]
  %v35 = vld [vmem:[%s1 + $0x4] sm:$0xf]
  %v36 = vld [vmem:[%s1 + $0x8] sm:$0xf]
  %v37 = vld [vmem:[%s1 + $0xc] sm:$0xf]
  %v38 = vld [vmem:[%s1 + $0x10] sm:$0xf]
  %v39 = vld [vmem:[%s1 + $0x14] sm:$0xf]
  %v40 = vld [vmem:[%s1 + $0x18] sm:$0xf]
  %v41 = vld [vmem:[%s1 + $0x1c] sm:$0xf]
  %v42 = vld [vmem:[%s1 + $0x20] sm:$0xf]
  %v43 = vld [vmem:[%s1 + $0x24] sm:$0xf]
  %v44 = vld [vmem:[%s1 + $0x28] sm:$0xf]
  %v45 = vld [vmem:[%s1 + $0x2c] sm:$0xf]
  %v46 = vld [vmem:[%s1 + $0x30] sm:$0xf]
  %v47 = vld [vmem:[%s1 + $0x34] sm:$0xf]
  %v48 = vld [vmem:[%s1 + $0x38] sm:$0xf]
  %v49 = vld [vmem:[%s1 + $0x3c] sm:$0xf]
  %v50 = vld [vmem:[%s1 + $0x40] sm:$0xf]
  %v51 = vld [vmem:[%s1 + $0x44] sm:$0xf]
  %v52 = vld [vmem:[%s1 + $0x48] sm:$0xf]
  %v53 = vld [vmem:[%s1 + $0x4c] sm:$0xf]
  %v54 = vld [vmem:[%s1 + $0x50] sm:$0xf]
  %v55 = vld [vmem:[%s1 + $0x54] sm:$0xf]
  %v56 = vld [vmem:[%s1 + $0x58] sm:$0xf]
  %v57 = vld [vmem:[%s1 + $0x5c] sm:$0xf]
  %v58 = vld [vmem:[%s1 + $0x60] sm:$0xf]
  %v59 = vld [vmem:[%s1 + $0x64] sm:$0xf]
  %v60 = vld [vmem:[%s1 + $0x68] sm:$0xf]
  %v61 = vld [vmem:[%s1 + $0x6c] sm:$0xf]
  %v62 = vld [vmem:[%s1 + $0x70] sm:$0xf]
  %v63 = vld [vmem:[%s1 + $0x74] sm:$0xf]
  %v64 = vld [vmem:[%s1 + $0x78] sm:$0xf]
  %v65 = vld [vmem:[%s1 + $0x7c] sm:$0xf]
  %v82 = vunpack.c.l.b16 %v18
  %v83 = vunpack.c.h.b16 %v18
  %v84 = vunpack.c.l.b16 %v19
  %v85 = vunpack.c.h.b16 %v19
  %v86 = vunpack.c.l.b16 %v20
  %v87 = vunpack.c.h.b16 %v20
  %v88 = vunpack.c.l.b16 %v21
  %v89 = vunpack.c.h.b16 %v21
  %v90 = vunpack.c.l.b16 %v22
  %v91 = vunpack.c.h.b16 %v22
  %v92 = vunpack.c.l.b16 %v23
  %v93 = vunpack.c.h.b16 %v23
  %v94 = vunpack.c.l.b16 %v24
  %v95 = vunpack.c.h.b16 %v24
  %v96 = vunpack.c.l.b16 %v25
  %v97 = vunpack.c.h.b16 %v25
  %v98 = vunpack.c.l.b16 %v26
  %v99 = vunpack.c.h.b16 %v26
  %v100 = vunpack.c.l.b16 %v27
  %v101 = vunpack.c.h.b16 %v27
  %v102 = vunpack.c.l.b16 %v28
  %v103 = vunpack.c.h.b16 %v28
  %v104 = vunpack.c.l.b16 %v29
  %v105 = vunpack.c.h.b16 %v29
  %v106 = vunpack.c.l.b16 %v30
  %v107 = vunpack.c.h.b16 %v30
  %v108 = vunpack.c.l.b16 %v31
  %v109 = vunpack.c.h.b16 %v31
  %v110 = vunpack.c.l.b16 %v32
  %v111 = vunpack.c.h.b16 %v32
  %v112 = vunpack.c.l.b16 %v33
  %v113 = vunpack.c.h.b16 %v33
  %v114 = vpack.c.b16 %v84, %v82
  %v115 = vpack.c.b16 %v85, %v83
  %v116 = vpack.c.b16 %v88, %v86
  %v117 = vpack.c.b16 %v89, %v87
  %v118 = vpack.c.b16 %v92, %v90
  %v119 = vpack.c.b16 %v93, %v91
  %v120 = vpack.c.b16 %v96, %v94
  %v121 = vpack.c.b16 %v97, %v95
  %v122 = vpack.c.b16 %v100, %v98
  %v123 = vpack.c.b16 %v101, %v99
  %v124 = vpack.c.b16 %v104, %v102
  %v125 = vpack.c.b16 %v105, %v103
  %v126 = vpack.c.b16 %v108, %v106
  %v127 = vpack.c.b16 %v109, %v107
  %v128 = vpack.c.b16 %v112, %v110
  %v129 = vpack.c.b16 %v113, %v111
  %v178 = vunpack.c.l.b16 %v34
  %v179 = vunpack.c.l.b16 %v35
  %v180 = vunpack.c.l.b16 %v36
  %v181 = vunpack.c.l.b16 %v37
  %v182 = vunpack.c.l.b16 %v38
  %v183 = vunpack.c.l.b16 %v39
  %v184 = vunpack.c.l.b16 %v40
  %v185 = vunpack.c.l.b16 %v41
  %v186 = vunpack.c.l.b16 %v42
  %v187 = vunpack.c.l.b16 %v43
  %v188 = vunpack.c.l.b16 %v44
  %v189 = vunpack.c.l.b16 %v45
  %v190 = vunpack.c.l.b16 %v46
  %v191 = vunpack.c.l.b16 %v47
  %v192 = vunpack.c.l.b16 %v48
  %v193 = vunpack.c.l.b16 %v49
  %v194 = vunpack.c.l.b16 %v50
  %v195 = vunpack.c.l.b16 %v51
  %v196 = vunpack.c.l.b16 %v52
  %v197 = vunpack.c.l.b16 %v53
  %v198 = vunpack.c.l.b16 %v54
  %v199 = vunpack.c.l.b16 %v55
  %v200 = vunpack.c.l.b16 %v56
  %v201 = vunpack.c.l.b16 %v57
  %v202 = vunpack.c.l.b16 %v58
  %v203 = vunpack.c.l.b16 %v59
  %v204 = vunpack.c.l.b16 %v60
  %v205 = vunpack.c.l.b16 %v61
  %v206 = vunpack.c.l.b16 %v62
  %v207 = vunpack.c.l.b16 %v63
  %v208 = vunpack.c.l.b16 %v64
  %v209 = vunpack.c.l.b16 %v65
  %v210 = vpack.c.b16 %v179, %v178
  %v211 = vpack.c.b16 %v181, %v180
  %v212 = vpack.c.b16 %v183, %v182
  %v213 = vpack.c.b16 %v185, %v184
  %v214 = vpack.c.b16 %v187, %v186
  %v215 = vpack.c.b16 %v189, %v188
  %v216 = vpack.c.b16 %v191, %v190
  %v217 = vpack.c.b16 %v193, %v192
  %v218 = vpack.c.b16 %v195, %v194
  %v219 = vpack.c.b16 %v197, %v196
  %v220 = vpack.c.b16 %v199, %v198
  %v221 = vpack.c.b16 %v201, %v200
  %v222 = vpack.c.b16 %v203, %v202
  %v223 = vpack.c.b16 %v205, %v204
  %v224 = vpack.c.b16 %v207, %v206
  %v225 = vpack.c.b16 %v209, %v208
  %242 = vmatprep.subr.bf16.mxu0 0
  %243 = vmatpush1.bf16.msra.mxu0 %v210
  %244 = vmatprep.subr.bf16.mxu0 0
  %245 = vmatpush1.bf16.msra.mxu0 %v211
  %246 = vmatprep.subr.bf16.mxu0 0
  %247 = vmatpush1.bf16.msra.mxu0 %v212
  %248 = vmatprep.subr.bf16.mxu0 0
  %249 = vmatpush1.bf16.msra.mxu0 %v213
  %250 = vmatprep.subr.bf16.mxu0 0
  %251 = vmatpush1.bf16.msra.mxu0 %v214
  %252 = vmatprep.subr.bf16.mxu0 0
  %253 = vmatpush1.bf16.msra.mxu0 %v215
  %254 = vmatprep.subr.bf16.mxu0 0
  %255 = vmatpush1.bf16.msra.mxu0 %v216
  %256 = vmatprep.subr.bf16.mxu0 0
  %257 = vmatpush1.bf16.msra.mxu0 %v217
  %258 = vmatprep.subr.bf16.mxu0 0
  %259 = vmatpush1.bf16.msra.mxu0 %v218
  %260 = vmatprep.subr.bf16.mxu0 0
  %261 = vmatpush1.bf16.msra.mxu0 %v219
  %262 = vmatprep.subr.bf16.mxu0 0
  %263 = vmatpush1.bf16.msra.mxu0 %v220
  %264 = vmatprep.subr.bf16.mxu0 0
  %265 = vmatpush1.bf16.msra.mxu0 %v221
  %266 = vmatprep.subr.bf16.mxu0 0
  %267 = vmatpush1.bf16.msra.mxu0 %v222
  %268 = vmatprep.subr.bf16.mxu0 0
  %269 = vmatpush1.bf16.msra.mxu0 %v223
  %270 = vmatprep.subr.bf16.mxu0 0
  %271 = vmatpush1.bf16.msra.mxu0 %v224
  %272 = vmatprep.subr.bf16.mxu0 0
  %273 = vmatpush1.bf16.msra.mxu0 %v225
  %274 = vmatprep.mubr.bf16.mxu0 %v115
  %275 = vmatmul.mubr.bf16.gmra.mrb[0].mxu0 %v114
  %v276 = vpop.f32.mrb[0].mxu0
  %v277 = vadd.f32 0.0, %v276
  %v278 = vpop.f32.mrb[0].mxu0
  %v279 = vpop.f32.mrb[0].mxu0
  %v280 = vadd.f32 0.0, %v279
  %v281 = vpop.f32.mrb[0].mxu0
  %282 = vmatprep.mubr.bf16.mxu0 %v117
  %283 = vmatmul.mubr.bf16.gmra.mrb[0].mxu0 %v116
  %v284 = vpop.f32.mrb[0].mxu0
  %v285 = vadd.f32 0.0, %v284
  %v286 = vpop.f32.mrb[0].mxu0
  %v287 = vpop.f32.mrb[0].mxu0
  %v288 = vadd.f32 0.0, %v287
  %v289 = vpop.f32.mrb[0].mxu0
  %290 = vmatprep.mubr.bf16.mxu0 %v119
  %291 = vmatmul.mubr.bf16.gmra.mrb[0].mxu0 %v118
  %v292 = vpop.f32.mrb[0].mxu0
  %v293 = vadd.f32 0.0, %v292
  %v294 = vpop.f32.mrb[0].mxu0
  %v295 = vpop.f32.mrb[0].mxu0
  %v296 = vadd.f32 0.0, %v295
  %v297 = vpop.f32.mrb[0].mxu0
  %298 = vmatprep.mubr.bf16.mxu0 %v121
  %299 = vmatmul.mubr.bf16.gmra.mrb[0].mxu0 %v120
  %v300 = vpop.f32.mrb[0].mxu0
  %v301 = vadd.f32 0.0, %v300
  %v302 = vpop.f32.mrb[0].mxu0
  %v303 = vpop.f32.mrb[0].mxu0
  %v304 = vadd.f32 0.0, %v303
  %v305 = vpop.f32.mrb[0].mxu0
  %306 = vmatprep.mubr.bf16.mxu0 %v123
  %307 = vmatmul.mubr.bf16.gmra.mrb[0].mxu0 %v122
  %v308 = vpop.f32.mrb[0].mxu0
  %v309 = vadd.f32 0.0, %v308
  %v310 = vpop.f32.mrb[0].mxu0
  %v311 = vpop.f32.mrb[0].mxu0
  %v312 = vadd.f32 0.0, %v311
  %v313 = vpop.f32.mrb[0].mxu0
  %314 = vmatprep.mubr.bf16.mxu0 %v125
  %315 = vmatmul.mubr.bf16.gmra.mrb[0].mxu0 %v124
  %v316 = vpop.f32.mrb[0].mxu0
  %v317 = vadd.f32 0.0, %v316
  %v318 = vpop.f32.mrb[0].mxu0
  %v319 = vpop.f32.mrb[0].mxu0
  %v320 = vadd.f32 0.0, %v319
  %v321 = vpop.f32.mrb[0].mxu0
  %322 = vmatprep.mubr.bf16.mxu0 %v127
  %323 = vmatmul.mubr.bf16.gmra.mrb[0].mxu0 %v126
  %v324 = vpop.f32.mrb[0].mxu0
  %v325 = vadd.f32 0.0, %v324
  %v326 = vpop.f32.mrb[0].mxu0
  %v327 = vpop.f32.mrb[0].mxu0
  %v328 = vadd.f32 0.0, %v327
  %v329 = vpop.f32.mrb[0].mxu0
  %330 = vmatprep.mubr.bf16.mxu0 %v129
  %331 = vmatmul.mubr.bf16.gmra.mrb[0].mxu0 %v128
  %v332 = vpop.f32.mrb[0].mxu0
  %v333 = vadd.f32 0.0, %v332
  %v334 = vpop.f32.mrb[0].mxu0
  %v335 = vpop.f32.mrb[0].mxu0
  %v336 = vadd.f32 0.0, %v335
  %v337 = vpop.f32.mrb[0].mxu0
  %338 = vdwg.mxu0
  %vm339 = vcmask 261120
  %v340 = vsel %vm339, %v277, 0.0
  %v341 = vsel %vm339, %v280, 0.0
  %v342 = vadd.f32 %v340, %v341
  %v343 = vsel %vm339, %v285, 0.0
  %v344 = vadd.f32 %v342, %v343
  %v345 = vsel %vm339, %v288, 0.0
  %v346 = vadd.f32 %v344, %v345
  %v347 = vsel %vm339, %v293, 0.0
  %v348 = vadd.f32 %v346, %v347
  %v349 = vsel %vm339, %v296, 0.0
  %v350 = vadd.f32 %v348, %v349
  %v351 = vsel %vm339, %v301, 0.0
  %v352 = vadd.f32 %v350, %v351
  %v353 = vsel %vm339, %v304, 0.0
  %v354 = vadd.f32 %v352, %v353
  %v355 = vsel %vm339, %v309, 0.0
  %v356 = vadd.f32 %v354, %v355
  %v357 = vsel %vm339, %v312, 0.0
  %v358 = vadd.f32 %v356, %v357
  %v359 = vsel %vm339, %v317, 0.0
  %v360 = vadd.f32 %v358, %v359
  %v361 = vsel %vm339, %v320, 0.0
  %v362 = vadd.f32 %v360, %v361
  %v363 = vsel %vm339, %v325, 0.0
  %v364 = vadd.f32 %v362, %v363
  %v365 = vsel %vm339, %v328, 0.0
  %v366 = vadd.f32 %v364, %v365
  %v367 = vsel %vm339, %v333, 0.0
  %v368 = vadd.f32 %v366, %v367
  %v369 = vsel %vm339, %v336, 0.0
  %v370 = vadd.f32 %v368, %v369
  %v371 = vrot.slane %v370, 4
  %v372 = vadd.f32 %v370, %v371
  %v373 = vrot.slane %v372, 2
  %v374 = vadd.f32 %v372, %v373
  %v375 = vrot.slane %v374, 1
  %v376 = vadd.f32 %v374, %v375
  %v377 = vmul.f32 %v376, 0.0078125
  %v378 = vmul.f32 %v277, %v277
  %v379 = vmul.f32 %v280, %v280
  %v380 = vmul.f32 %v285, %v285
  %v381 = vmul.f32 %v288, %v288
  %v382 = vmul.f32 %v293, %v293
  %v383 = vmul.f32 %v296, %v296
  %v384 = vmul.f32 %v301, %v301
  %v385 = vmul.f32 %v304, %v304
  %v386 = vmul.f32 %v309, %v309
  %v387 = vmul.f32 %v312, %v312
  %v388 = vmul.f32 %v317, %v317
  %v389 = vmul.f32 %v320, %v320
  %v390 = vmul.f32 %v325, %v325
  %v391 = vmul.f32 %v328, %v328
  %v392 = vmul.f32 %v333, %v333
  %v393 = vmul.f32 %v336, %v336
  %v394 = vsel %vm339, %v378, 0.0
  %v395 = vsel %vm339, %v379, 0.0
  %v396 = vadd.f32 %v394, %v395
  %v397 = vsel %vm339, %v380, 0.0
  %v398 = vadd.f32 %v396, %v397
  %v399 = vsel %vm339, %v381, 0.0
  %v400 = vadd.f32 %v398, %v399
  %v401 = vsel %vm339, %v382, 0.0
  %v402 = vadd.f32 %v400, %v401
  %v403 = vsel %vm339, %v383, 0.0
  %v404 = vadd.f32 %v402, %v403
  %v405 = vsel %vm339, %v384, 0.0
  %v406 = vadd.f32 %v404, %v405
  %v407 = vsel %vm339, %v385, 0.0
  %v408 = vadd.f32 %v406, %v407
  %v409 = vsel %vm339, %v386, 0.0
  %v410 = vadd.f32 %v408, %v409
  %v411 = vsel %vm339, %v387, 0.0
  %v412 = vadd.f32 %v410, %v411
  %v413 = vsel %vm339, %v388, 0.0
  %v414 = vadd.f32 %v412, %v413
  %v415 = vsel %vm339, %v389, 0.0
  %v416 = vadd.f32 %v414, %v415
  %v417 = vsel %vm339, %v390, 0.0
  %v418 = vadd.f32 %v416, %v417
  %v419 = vsel %vm339, %v391, 0.0
  %v420 = vadd.f32 %v418, %v419
  %v421 = vsel %vm339, %v392, 0.0
  %v422 = vadd.f32 %v420, %v421
  %v423 = vsel %vm339, %v393, 0.0
  %v424 = vadd.f32 %v422, %v423
  %v425 = vrot.slane %v424, 4
  %v426 = vadd.f32 %v424, %v425
  %v427 = vrot.slane %v426, 2
  %v428 = vadd.f32 %v426, %v427
  %v429 = vrot.slane %v428, 1
  %v430 = vadd.f32 %v428, %v429
  %v431 = vmul.f32 %v430, 0.0078125
  %v432 = vmul.f32 %v377, %v377
  %v433 = vsub.f32 %v431, %v432
  %v434 = vmax.f32 %v433, 0.0
  %v435 = vld [vmem:[%s2] sm:$0x1]
  %v436 = vadd.f32 %v434, 1e-05
  %v437 = vrsqrt.pop %v436
  %v438 = vmul.f32 %v435, %v437
  %v439 = vld [vmem:[%s3] sm:$0x1]
  %v440 = vmul.f32 %v377, %v438
  %v441 = vsub.f32 %v439, %v440
  %v443 = vlaneseq
  %v444 = vshrl.u32 %v443, 7
  %v445 = vsub.s32 0, %v444
  %v446 = vrot.slane %v438, %v445
  %v448 = vmul.f32 %v277, %v446
  %v449 = vmul.f32 %v280, %v446
  %v450 = vmul.f32 %v285, %v446
  %v451 = vmul.f32 %v288, %v446
  %v452 = vmul.f32 %v293, %v446
  %v453 = vmul.f32 %v296, %v446
  %v454 = vmul.f32 %v301, %v446
  %v455 = vmul.f32 %v304, %v446
  %v456 = vmul.f32 %v309, %v446
  %v457 = vmul.f32 %v312, %v446
  %v458 = vmul.f32 %v317, %v446
  %v459 = vmul.f32 %v320, %v446
  %v460 = vmul.f32 %v325, %v446
  %v461 = vmul.f32 %v328, %v446
  %v462 = vmul.f32 %v333, %v446
  %v463 = vmul.f32 %v336, %v446
  %v465 = vlaneseq
  %v466 = vshrl.u32 %v465, 7
  %v467 = vsub.s32 0, %v466
  %v468 = vrot.slane %v441, %v467
  %v470 = vadd.f32 %v448, %v468
  %v471 = vadd.f32 %v449, %v468
  %v472 = vadd.f32 %v450, %v468
  %v473 = vadd.f32 %v451, %v468
  %v474 = vadd.f32 %v452, %v468
  %v475 = vadd.f32 %v453, %v468
  %v476 = vadd.f32 %v454, %v468
  %v477 = vadd.f32 %v455, %v468
  %v478 = vadd.f32 %v456, %v468
  %v479 = vadd.f32 %v457, %v468
  %v480 = vadd.f32 %v458, %v468
  %v481 = vadd.f32 %v459, %v468
  %v482 = vadd.f32 %v460, %v468
  %v483 = vadd.f32 %v461, %v468
  %v484 = vadd.f32 %v462, %v468
  %v485 = vadd.f32 %v463, %v468
  %vm486 = vcmp.ge.f32.partialorder %v470, 0.0
  %vm487 = vcmp.ge.f32.partialorder %v471, 0.0
  %vm488 = vcmp.ge.f32.partialorder %v472, 0.0
  %vm489 = vcmp.ge.f32.partialorder %v473, 0.0
  %vm490 = vcmp.ge.f32.partialorder %v474, 0.0
  %vm491 = vcmp.ge.f32.partialorder %v475, 0.0
  %vm492 = vcmp.ge.f32.partialorder %v476, 0.0
  %vm493 = vcmp.ge.f32.partialorder %v477, 0.0
  %vm494 = vcmp.ge.f32.partialorder %v478, 0.0
  %vm495 = vcmp.ge.f32.partialorder %v479, 0.0
  %vm496 = vcmp.ge.f32.partialorder %v480, 0.0
  %vm497 = vcmp.ge.f32.partialorder %v481, 0.0
  %vm498 = vcmp.ge.f32.partialorder %v482, 0.0
  %vm499 = vcmp.ge.f32.partialorder %v483, 0.0
  %vm500 = vcmp.ge.f32.partialorder %v484, 0.0
  %vm501 = vcmp.ge.f32.partialorder %v485, 0.0
  %v502 = vmul.f32 %v470, 0.2
  %v503 = vmul.f32 %v471, 0.2
  %v504 = vmul.f32 %v472, 0.2
  %v505 = vmul.f32 %v473, 0.2
  %v506 = vmul.f32 %v474, 0.2
  %v507 = vmul.f32 %v475, 0.2
  %v508 = vmul.f32 %v476, 0.2
  %v509 = vmul.f32 %v477, 0.2
  %v510 = vmul.f32 %v478, 0.2
  %v511 = vmul.f32 %v479, 0.2
  %v512 = vmul.f32 %v480, 0.2
  %v513 = vmul.f32 %v481, 0.2
  %v514 = vmul.f32 %v482, 0.2
  %v515 = vmul.f32 %v483, 0.2
  %v516 = vmul.f32 %v484, 0.2
  %v517 = vmul.f32 %v485, 0.2
  %v518 = vsel %vm486, %v470, %v502
  %v519 = vsel %vm487, %v471, %v503
  %v520 = vsel %vm488, %v472, %v504
  %v521 = vsel %vm489, %v473, %v505
  %v522 = vsel %vm490, %v474, %v506
  %v523 = vsel %vm491, %v475, %v507
  %v524 = vsel %vm492, %v476, %v508
  %v525 = vsel %vm493, %v477, %v509
  %v526 = vsel %vm494, %v478, %v510
  %v527 = vsel %vm495, %v479, %v511
  %v528 = vsel %vm496, %v480, %v512
  %v529 = vsel %vm497, %v481, %v513
  %v530 = vsel %vm498, %v482, %v514
  %v531 = vsel %vm499, %v483, %v515
  %v532 = vsel %vm500, %v484, %v516
  %v533 = vsel %vm501, %v485, %v517
  %v534 = vpack.c.bf16 %v519, %v518
  %v535 = vpack.c.bf16 %v521, %v520
  %v536 = vpack.c.bf16 %v523, %v522
  %v537 = vpack.c.bf16 %v525, %v524
  %v538 = vpack.c.bf16 %v527, %v526
  %v539 = vpack.c.bf16 %v529, %v528
  %v540 = vpack.c.bf16 %v531, %v530
  %v541 = vpack.c.bf16 %v533, %v532
  %v550 = vunpack.c.l.b16 %v534
  %v551 = vunpack.c.h.b16 %v534
  %v552 = vunpack.c.l.b16 %v535
  %v553 = vunpack.c.h.b16 %v535
  %v554 = vunpack.c.l.b16 %v536
  %v555 = vunpack.c.h.b16 %v536
  %v556 = vunpack.c.l.b16 %v537
  %v557 = vunpack.c.h.b16 %v537
  %v558 = vunpack.c.l.b16 %v538
  %v559 = vunpack.c.h.b16 %v538
  %v560 = vunpack.c.l.b16 %v539
  %v561 = vunpack.c.h.b16 %v539
  %v562 = vunpack.c.l.b16 %v540
  %v563 = vunpack.c.h.b16 %v540
  %v564 = vunpack.c.l.b16 %v541
  %v565 = vunpack.c.h.b16 %v541
  %v566 = vpack.c.b16 %v550, %v550
  %v567 = vpack.c.b16 %v551, %v551
  %v568 = vpack.c.b16 %v552, %v552
  %v569 = vpack.c.b16 %v553, %v553
  %v570 = vpack.c.b16 %v554, %v554
  %v571 = vpack.c.b16 %v555, %v555
  %v572 = vpack.c.b16 %v556, %v556
  %v573 = vpack.c.b16 %v557, %v557
  %v574 = vpack.c.b16 %v558, %v558
  %v575 = vpack.c.b16 %v559, %v559
  %v576 = vpack.c.b16 %v560, %v560
  %v577 = vpack.c.b16 %v561, %v561
  %v578 = vpack.c.b16 %v562, %v562
  %v579 = vpack.c.b16 %v563, %v563
  %v580 = vpack.c.b16 %v564, %v564
  %v581 = vpack.c.b16 %v565, %v565
  %vm598 = vcmask 257024
  %599 = vst.msk [vmem:[%s4] sm:$0xf] %vm598, %v566
  %600 = vst.msk [vmem:[%s4 + $0x4] sm:$0xf] %vm598, %v567
  %601 = vst.msk [vmem:[%s4 + $0x8] sm:$0xf] %vm598, %v568
  %602 = vst.msk [vmem:[%s4 + $0xc] sm:$0xf] %vm598, %v569
  %603 = vst.msk [vmem:[%s4 + $0x10] sm:$0xf] %vm598, %v570
  %604 = vst.msk [vmem:[%s4 + $0x14] sm:$0xf] %vm598, %v571
  %605 = vst.msk [vmem:[%s4 + $0x18] sm:$0xf] %vm598, %v572
  %606 = vst.msk [vmem:[%s4 + $0x1c] sm:$0xf] %vm598, %v573
  %607 = vst.msk [vmem:[%s4 + $0x20] sm:$0xf] %vm598, %v574
  %608 = vst.msk [vmem:[%s4 + $0x24] sm:$0xf] %vm598, %v575
  %609 = vst.msk [vmem:[%s4 + $0x28] sm:$0xf] %vm598, %v576
  %610 = vst.msk [vmem:[%s4 + $0x2c] sm:$0xf] %vm598, %v577
  %611 = vst.msk [vmem:[%s4 + $0x30] sm:$0xf] %vm598, %v578
  %612 = vst.msk [vmem:[%s4 + $0x34] sm:$0xf] %vm598, %v579
  %613 = vst.msk [vmem:[%s4 + $0x38] sm:$0xf] %vm598, %v580
  %614 = vst.msk [vmem:[%s4 + $0x3c] sm:$0xf] %vm598, %v581
  // Predicated region
  $region18: #{discriminator_forward.6} parent=0 // pred_check
    _
  $region19: #{discriminator_forward.6} parent=0 // pred_check_branch
    %616 = sbr.rel (0) target = $region21
  $region20: #{discriminator_forward.6} parent=0 // pred_region
    _
  $region21: #{discriminator_forward.6} parent=0 // pred_fallthru
    _
  // Predicated region
  $region22: #{discriminator_forward.6} parent=0 // pred_check
    _
  $region23: #{discriminator_forward.6} parent=0 // pred_check_branch
    %618 = sbr.rel (0) target = $region25
  $region24: #{discriminator_forward.6} parent=0 // pred_region
    _
  $region25: #{discriminator_forward.6} parent=0 // pred_fallthru
    _

// kernel: discriminator_forward.7
$region0: #{discriminator_forward.7}
  #allocation0 [shape = 'u32[]', space=smem, size = 0x4, offset = 0x4, fixed_abs, tag = 'smem constant byte address 0x4 - core index']
  #allocation1 [shape = 'u32[144,128]{1,0:T(1,128)}', space=vmem, size = 0x12000, scoped, tag = 'internal scratch']
  %s0 = inlined_call_operand.vmem [shape: bf16[32,512], index: 0, kind: input, shape index: {}]
  %s1 = inlined_call_operand.vmem [shape: bf16[512,64], index: 1, kind: input, shape index: {}]
  %s2 = inlined_call_operand.vmem [shape: f32[1,64], index: 2, kind: input, shape index: {}]
  %s3 = inlined_call_operand.vmem [shape: f32[1,64], index: 3, kind: input, shape index: {}]
  %s4 = inlined_call_operand.vmem [shape: bf16[32,64], index: 4, kind: output, shape index: {}]
  %s5 = sld [smem:[#allocation0]]
  $region26: #{discriminator_forward.7} parent=0
    _
  %s7 = ssub.s32 1, %s5
  %s8 = scalar_select 0, %s7, %s5
  // Predicated region
  $region2: #{discriminator_forward.7} parent=0 // pred_check
    _
  $region3: #{discriminator_forward.7} parent=0 // pred_check_branch
    %10 = sbr.rel (0) target = $region5
  $region4: #{discriminator_forward.7} parent=0 // pred_region
    _
  $region5: #{discriminator_forward.7} parent=0 // pred_fallthru
    _
  // Predicated region
  $region6: #{discriminator_forward.7} parent=0 // pred_check
    _
  $region7: #{discriminator_forward.7} parent=0 // pred_check_branch
    %12 = sbr.rel (0) target = $region9
  $region8: #{discriminator_forward.7} parent=0 // pred_region
    _
  $region9: #{discriminator_forward.7} parent=0 // pred_fallthru
    _
  // Predicated region
  $region10: #{discriminator_forward.7} parent=0 // pred_check
    _
  $region11: #{discriminator_forward.7} parent=0 // pred_check_branch
    %14 = sbr.rel (0) target = $region13
  $region12: #{discriminator_forward.7} parent=0 // pred_region
    _
  $region13: #{discriminator_forward.7} parent=0 // pred_fallthru
    _
  // Predicated region
  $region14: #{discriminator_forward.7} parent=0 // pred_check
    _
  $region15: #{discriminator_forward.7} parent=0 // pred_check_branch
    %16 = sbr.rel (0) target = $region17
  $region16: #{discriminator_forward.7} parent=0 // pred_region
    _
  $region17: #{discriminator_forward.7} parent=0 // pred_fallthru
    _
  %v18 = vld [vmem:[%s0] sm:$0xff]
  %v19 = vld [vmem:[%s0 + $0x8] sm:$0xff]
  %v20 = vld [vmem:[%s0 + $0x10] sm:$0xff]
  %v21 = vld [vmem:[%s0 + $0x18] sm:$0xff]
  %v22 = vld [vmem:[%s0 + $0x20] sm:$0xff]
  %v23 = vld [vmem:[%s0 + $0x28] sm:$0xff]
  %v24 = vld [vmem:[%s0 + $0x30] sm:$0xff]
  %v25 = vld [vmem:[%s0 + $0x38] sm:$0xff]
  %v26 = vld [vmem:[%s1] sm:$0xf]
  %v27 = vld [vmem:[%s1 + $0x4] sm:$0xf]
  %v28 = vld [vmem:[%s1 + $0x8] sm:$0xf]
  %v29 = vld [vmem:[%s1 + $0xc] sm:$0xf]
  %v30 = vld [vmem:[%s1 + $0x10] sm:$0xf]
  %v31 = vld [vmem:[%s1 + $0x14] sm:$0xf]
  %v32 = vld [vmem:[%s1 + $0x18] sm:$0xf]
  %v33 = vld [vmem:[%s1 + $0x1c] sm:$0xf]
  %v34 = vld [vmem:[%s1 + $0x20] sm:$0xf]
  %v35 = vld [vmem:[%s1 + $0x24] sm:$0xf]
  %v36 = vld [vmem:[%s1 + $0x28] sm:$0xf]
  %v37 = vld [vmem:[%s1 + $0x2c] sm:$0xf]
  %v38 = vld [vmem:[%s1 + $0x30] sm:$0xf]
  %v39 = vld [vmem:[%s1 + $0x34] sm:$0xf]
  %v40 = vld [vmem:[%s1 + $0x38] sm:$0xf]
  %v41 = vld [vmem:[%s1 + $0x3c] sm:$0xf]
  %v42 = vld [vmem:[%s1 + $0x40] sm:$0xf]
  %v43 = vld [vmem:[%s1 + $0x44] sm:$0xf]
  %v44 = vld [vmem:[%s1 + $0x48] sm:$0xf]
  %v45 = vld [vmem:[%s1 + $0x4c] sm:$0xf]
  %v46 = vld [vmem:[%s1 + $0x50] sm:$0xf]
  %v47 = vld [vmem:[%s1 + $0x54] sm:$0xf]
  %v48 = vld [vmem:[%s1 + $0x58] sm:$0xf]
  %v49 = vld [vmem:[%s1 + $0x5c] sm:$0xf]
  %v50 = vld [vmem:[%s1 + $0x60] sm:$0xf]
  %v51 = vld [vmem:[%s1 + $0x64] sm:$0xf]
  %v52 = vld [vmem:[%s1 + $0x68] sm:$0xf]
  %v53 = vld [vmem:[%s1 + $0x6c] sm:$0xf]
  %v54 = vld [vmem:[%s1 + $0x70] sm:$0xf]
  %v55 = vld [vmem:[%s1 + $0x74] sm:$0xf]
  %v56 = vld [vmem:[%s1 + $0x78] sm:$0xf]
  %v57 = vld [vmem:[%s1 + $0x7c] sm:$0xf]
  %v58 = vld [vmem:[%s1 + $0x80] sm:$0xf]
  %v59 = vld [vmem:[%s1 + $0x84] sm:$0xf]
  %v60 = vld [vmem:[%s1 + $0x88] sm:$0xf]
  %v61 = vld [vmem:[%s1 + $0x8c] sm:$0xf]
  %v62 = vld [vmem:[%s1 + $0x90] sm:$0xf]
  %v63 = vld [vmem:[%s1 + $0x94] sm:$0xf]
  %v64 = vld [vmem:[%s1 + $0x98] sm:$0xf]
  %v65 = vld [vmem:[%s1 + $0x9c] sm:$0xf]
  %v66 = vld [vmem:[%s1 + $0xa0] sm:$0xf]
  %v67 = vld [vmem:[%s1 + $0xa4] sm:$0xf]
  %v68 = vld [vmem:[%s1 + $0xa8] sm:$0xf]
  %v69 = vld [vmem:[%s1 + $0xac] sm:$0xf]
  %v70 = vld [vmem:[%s1 + $0xb0] sm:$0xf]
  %v71 = vld [vmem:[%s1 + $0xb4] sm:$0xf]
  %v72 = vld [vmem:[%s1 + $0xb8] sm:$0xf]
  %v73 = vld [vmem:[%s1 + $0xbc] sm:$0xf]
  %v74 = vld [vmem:[%s1 + $0xc0] sm:$0xf]
  %v75 = vld [vmem:[%s1 + $0xc4] sm:$0xf]
  %v76 = vld [vmem:[%s1 + $0xc8] sm:$0xf]
  %v77 = vld [vmem:[%s1 + $0xcc] sm:$0xf]
  %v78 = vld [vmem:[%s1 + $0xd0] sm:$0xf]
  %v79 = vld [vmem:[%s1 + $0xd4] sm:$0xf]
  %v80 = vld [vmem:[%s1 + $0xd8] sm:$0xf]
  %v81 = vld [vmem:[%s1 + $0xdc] sm:$0xf]
  %v82 = vld [vmem:[%s1 + $0xe0] sm:$0xf]
  %v83 = vld [vmem:[%s1 + $0xe4] sm:$0xf]
  %v84 = vld [vmem:[%s1 + $0xe8] sm:$0xf]
  %v85 = vld [vmem:[%s1 + $0xec] sm:$0xf]
  %v86 = vld [vmem:[%s1 + $0xf0] sm:$0xf]
  %v87 = vld [vmem:[%s1 + $0xf4] sm:$0xf]
  %v88 = vld [vmem:[%s1 + $0xf8] sm:$0xf]
  %v89 = vld [vmem:[%s1 + $0xfc] sm:$0xf]
  %v98 = vunpack.c.l.b16 %v18
  %v99 = vunpack.c.h.b16 %v18
  %v100 = vunpack.c.l.b16 %v19
  %v101 = vunpack.c.h.b16 %v19
  %v102 = vunpack.c.l.b16 %v20
  %v103 = vunpack.c.h.b16 %v20
  %v104 = vunpack.c.l.b16 %v21
  %v105 = vunpack.c.h.b16 %v21
  %v106 = vunpack.c.l.b16 %v22
  %v107 = vunpack.c.h.b16 %v22
  %v108 = vunpack.c.l.b16 %v23
  %v109 = vunpack.c.h.b16 %v23
  %v110 = vunpack.c.l.b16 %v24
  %v111 = vunpack.c.h.b16 %v24
  %v112 = vunpack.c.l.b16 %v25
  %v113 = vunpack.c.h.b16 %v25
  %v114 = vpack.c.b16 %v102, %v98
  %v115 = vpack.c.b16 %v103, %v99
  %v116 = vpack.c.b16 %v104, %v100
  %v117 = vpack.c.b16 %v105, %v101
  %v118 = vpack.c.b16 %v110, %v106
  %v119 = vpack.c.b16 %v111, %v107
  %v120 = vpack.c.b16 %v112, %v108
  %v121 = vpack.c.b16 %v113, %v109
  %v194 = vunpack.c.l.b16 %v26
  %v195 = vunpack.c.l.b16 %v27
  %v196 = vunpack.c.l.b16 %v28
  %v197 = vunpack.c.l.b16 %v29
  %v198 = vunpack.c.l.b16 %v30
  %v199 = vunpack.c.l.b16 %v31
  %v200 = vunpack.c.l.b16 %v32
  %v201 = vunpack.c.l.b16 %v33
  %v202 = vunpack.c.l.b16 %v34
  %v203 = vunpack.c.l.b16 %v35
  %v204 = vunpack.c.l.b16 %v36
  %v205 = vunpack.c.l.b16 %v37
  %v206 = vunpack.c.l.b16 %v38
  %v207 = vunpack.c.l.b16 %v39
  %v208 = vunpack.c.l.b16 %v40
  %v209 = vunpack.c.l.b16 %v41
  %v210 = vunpack.c.l.b16 %v42
  %v211 = vunpack.c.l.b16 %v43
  %v212 = vunpack.c.l.b16 %v44
  %v213 = vunpack.c.l.b16 %v45
  %v214 = vunpack.c.l.b16 %v46
  %v215 = vunpack.c.l.b16 %v47
  %v216 = vunpack.c.l.b16 %v48
  %v217 = vunpack.c.l.b16 %v49
  %v218 = vunpack.c.l.b16 %v50
  %v219 = vunpack.c.l.b16 %v51
  %v220 = vunpack.c.l.b16 %v52
  %v221 = vunpack.c.l.b16 %v53
  %v222 = vunpack.c.l.b16 %v54
  %v223 = vunpack.c.l.b16 %v55
  %v224 = vunpack.c.l.b16 %v56
  %v225 = vunpack.c.l.b16 %v57
  %v226 = vunpack.c.l.b16 %v58
  %v227 = vunpack.c.l.b16 %v59
  %v228 = vunpack.c.l.b16 %v60
  %v229 = vunpack.c.l.b16 %v61
  %v230 = vunpack.c.l.b16 %v62
  %v231 = vunpack.c.l.b16 %v63
  %v232 = vunpack.c.l.b16 %v64
  %v233 = vunpack.c.l.b16 %v65
  %v234 = vunpack.c.l.b16 %v66
  %v235 = vunpack.c.l.b16 %v67
  %v236 = vunpack.c.l.b16 %v68
  %v237 = vunpack.c.l.b16 %v69
  %v238 = vunpack.c.l.b16 %v70
  %v239 = vunpack.c.l.b16 %v71
  %v240 = vunpack.c.l.b16 %v72
  %v241 = vunpack.c.l.b16 %v73
  %v242 = vunpack.c.l.b16 %v74
  %v243 = vunpack.c.l.b16 %v75
  %v244 = vunpack.c.l.b16 %v76
  %v245 = vunpack.c.l.b16 %v77
  %v246 = vunpack.c.l.b16 %v78
  %v247 = vunpack.c.l.b16 %v79
  %v248 = vunpack.c.l.b16 %v80
  %v249 = vunpack.c.l.b16 %v81
  %v250 = vunpack.c.l.b16 %v82
  %v251 = vunpack.c.l.b16 %v83
  %v252 = vunpack.c.l.b16 %v84
  %v253 = vunpack.c.l.b16 %v85
  %v254 = vunpack.c.l.b16 %v86
  %v255 = vunpack.c.l.b16 %v87
  %v256 = vunpack.c.l.b16 %v88
  %v257 = vunpack.c.l.b16 %v89
  %v258 = vpack.c.b16 %v195, %v194
  %v259 = vpack.c.b16 %v197, %v196
  %v260 = vpack.c.b16 %v199, %v198
  %v261 = vpack.c.b16 %v201, %v200
  %v262 = vpack.c.b16 %v203, %v202
  %v263 = vpack.c.b16 %v205, %v204
  %v264 = vpack.c.b16 %v207, %v206
  %v265 = vpack.c.b16 %v209, %v208
  %v266 = vpack.c.b16 %v211, %v210
  %v267 = vpack.c.b16 %v213, %v212
  %v268 = vpack.c.b16 %v215, %v214
  %v269 = vpack.c.b16 %v217, %v216
  %v270 = vpack.c.b16 %v219, %v218
  %v271 = vpack.c.b16 %v221, %v220
  %v272 = vpack.c.b16 %v223, %v222
  %v273 = vpack.c.b16 %v225, %v224
  %v274 = vpack.c.b16 %v227, %v226
  %v275 = vpack.c.b16 %v229, %v228
  %v276 = vpack.c.b16 %v231, %v230
  %v277 = vpack.c.b16 %v233, %v232
  %v278 = vpack.c.b16 %v235, %v234
  %v279 = vpack.c.b16 %v237, %v236
  %v280 = vpack.c.b16 %v239, %v238
  %v281 = vpack.c.b16 %v241, %v240
  %v282 = vpack.c.b16 %v243, %v242
  %v283 = vpack.c.b16 %v245, %v244
  %v284 = vpack.c.b16 %v247, %v246
  %v285 = vpack.c.b16 %v249, %v248
  %v286 = vpack.c.b16 %v251, %v250
  %v287 = vpack.c.b16 %v253, %v252
  %v288 = vpack.c.b16 %v255, %v254
  %v289 = vpack.c.b16 %v257, %v256
  %322 = vmatprep.subr.bf16.mxu0 0
  %323 = vmatpush1.bf16.msra.mxu0 %v258
  %324 = vmatprep.subr.bf16.mxu0 0
  %325 = vmatpush1.bf16.msra.mxu0 %v259
  %326 = vmatprep.subr.bf16.mxu0 0
  %327 = vmatpush1.bf16.msra.mxu0 %v260
  %328 = vmatprep.subr.bf16.mxu0 0
  %329 = vmatpush1.bf16.msra.mxu0 %v261
  %330 = vmatprep.subr.bf16.mxu0 0
  %331 = vmatpush1.bf16.msra.mxu0 %v262
  %332 = vmatprep.subr.bf16.mxu0 0
  %333 = vmatpush1.bf16.msra.mxu0 %v263
  %334 = vmatprep.subr.bf16.mxu0 0
  %335 = vmatpush1.bf16.msra.mxu0 %v264
  %336 = vmatprep.subr.bf16.mxu0 0
  %337 = vmatpush1.bf16.msra.mxu0 %v265
  %338 = vmatprep.subr.bf16.mxu0 0
  %339 = vmatpush1.bf16.msra.mxu0 %v266
  %340 = vmatprep.subr.bf16.mxu0 0
  %341 = vmatpush1.bf16.msra.mxu0 %v267
  %342 = vmatprep.subr.bf16.mxu0 0
  %343 = vmatpush1.bf16.msra.mxu0 %v268
  %344 = vmatprep.subr.bf16.mxu0 0
  %345 = vmatpush1.bf16.msra.mxu0 %v269
  %346 = vmatprep.subr.bf16.mxu0 0
  %347 = vmatpush1.bf16.msra.mxu0 %v270
  %348 = vmatprep.subr.bf16.mxu0 0
  %349 = vmatpush1.bf16.msra.mxu0 %v271
  %350 = vmatprep.subr.bf16.mxu0 0
  %351 = vmatpush1.bf16.msra.mxu0 %v272
  %352 = vmatprep.subr.bf16.mxu0 0
  %353 = vmatpush1.bf16.msra.mxu0 %v273
  %354 = vmatprep.mubr.bf16.mxu0 %v115
  %355 = vmatmul.mubr.bf16.gmra.mrb[0].mxu0 %v114
  %v356 = vpop.f32.mrb[0].mxu0
  %v357 = vadd.f32 0.0, %v356
  %v358 = vpop.f32.mrb[0].mxu0
  %v359 = vpop.f32.mrb[0].mxu0
  %v360 = vadd.f32 0.0, %v359
  %v361 = vpop.f32.mrb[0].mxu0
  %362 = vmatprep.mubr.bf16.mxu0 %v119
  %363 = vmatmul.mubr.bf16.gmra.mrb[0].mxu0 %v118
  %v364 = vpop.f32.mrb[0].mxu0
  %v365 = vadd.f32 0.0, %v364
  %v366 = vpop.f32.mrb[0].mxu0
  %v367 = vpop.f32.mrb[0].mxu0
  %v368 = vadd.f32 0.0, %v367
  %v369 = vpop.f32.mrb[0].mxu0
  %370 = vdwg.mxu0
  %371 = vmatprep.subr.bf16.mxu0 0
  %372 = vmatpush1.bf16.msra.mxu0 %v274
  %373 = vmatprep.subr.bf16.mxu0 0
  %374 = vmatpush1.bf16.msra.mxu0 %v275
  %375 = vmatprep.subr.bf16.mxu0 0
  %376 = vmatpush1.bf16.msra.mxu0 %v276
  %377 = vmatprep.subr.bf16.mxu0 0
  %378 = vmatpush1.bf16.msra.mxu0 %v277
  %379 = vmatprep.subr.bf16.mxu0 0
  %380 = vmatpush1.bf16.msra.mxu0 %v278
  %381 = vmatprep.subr.bf16.mxu0 0
  %382 = vmatpush1.bf16.msra.mxu0 %v279
  %383 = vmatprep.subr.bf16.mxu0 0
  %384 = vmatpush1.bf16.msra.mxu0 %v280
  %385 = vmatprep.subr.bf16.mxu0 0
  %386 = vmatpush1.bf16.msra.mxu0 %v281
  %387 = vmatprep.subr.bf16.mxu0 0
  %388 = vmatpush1.bf16.msra.mxu0 %v282
  %389 = vmatprep.subr.bf16.mxu0 0
  %390 = vmatpush1.bf16.msra.mxu0 %v283
  %391 = vmatprep.subr.bf16.mxu0 0
  %392 = vmatpush1.bf16.msra.mxu0 %v284
  %393 = vmatprep.subr.bf16.mxu0 0
  %394 = vmatpush1.bf16.msra.mxu0 %v285
  %395 = vmatprep.subr.bf16.mxu0 0
  %396 = vmatpush1.bf16.msra.mxu0 %v286
  %397 = vmatprep.subr.bf16.mxu0 0
  %398 = vmatpush1.bf16.msra.mxu0 %v287
  %399 = vmatprep.subr.bf16.mxu0 0
  %400 = vmatpush1.bf16.msra.mxu0 %v288
  %401 = vmatprep.subr.bf16.mxu0 0
  %402 = vmatpush1.bf16.msra.mxu0 %v289
  %403 = vmatprep.mubr.bf16.mxu0 %v117
  %404 = vmatmul.mubr.bf16.gmra.mrb[0].mxu0 %v116
  %v405 = vpop.f32.mrb[0].mxu0
  %v406 = vadd.f32 %v357, %v405
  %v407 = vpop.f32.mrb[0].mxu0
  %v408 = vpop.f32.mrb[0].mxu0
  %v409 = vadd.f32 %v360, %v408
  %v410 = vpop.f32.mrb[0].mxu0
  %411 = vmatprep.mubr.bf16.mxu0 %v121
  %412 = vmatmul.mubr.bf16.gmra.mrb[0].mxu0 %v120
  %v413 = vpop.f32.mrb[0].mxu0
  %v414 = vadd.f32 %v365, %v413
  %v415 = vpop.f32.mrb[0].mxu0
  %v416 = vpop.f32.mrb[0].mxu0
  %v417 = vadd.f32 %v368, %v416
  %v418 = vpop.f32.mrb[0].mxu0
  %419 = vdwg.mxu0
  %vm420 = vcmask 523264
  %v421 = vsel %vm420, %v406, 0.0
  %v422 = vsel %vm420, %v409, 0.0
  %v423 = vadd.f32 %v421, %v422
  %v424 = vsel %vm420, %v414, 0.0
  %v425 = vadd.f32 %v423, %v424
  %v426 = vsel %vm420, %v417, 0.0
  %v427 = vadd.f32 %v425, %v426
  %v428 = vrot.slane %v427, 4
  %v429 = vadd.f32 %v427, %v428
  %v430 = vrot.slane %v429, 2
  %v431 = vadd.f32 %v429, %v430
  %v432 = vrot.slane %v431, 1
  %v433 = vadd.f32 %v431, %v432
  %v434 = vmul.f32 %v433, 0.03125
  %v435 = vmul.f32 %v406, %v406
  %v436 = vmul.f32 %v409, %v409
  %v437 = vmul.f32 %v414, %v414
  %v438 = vmul.f32 %v417, %v417
  %v439 = vsel %vm420, %v435, 0.0
  %v440 = vsel %vm420, %v436, 0.0
  %v441 = vadd.f32 %v439, %v440
  %v442 = vsel %vm420, %v437, 0.0
  %v443 = vadd.f32 %v441, %v442
  %v444 = vsel %vm420, %v438, 0.0
  %v445 = vadd.f32 %v443, %v444
  %v446 = vrot.slane %v445, 4
  %v447 = vadd.f32 %v445, %v446
  %v448 = vrot.slane %v447, 2
  %v449 = vadd.f32 %v447, %v448
  %v450 = vrot.slane %v449, 1
  %v451 = vadd.f32 %v449, %v450
  %v452 = vmul.f32 %v451, 0.03125
  %v453 = vmul.f32 %v434, %v434
  %v454 = vsub.f32 %v452, %v453
  %v455 = vmax.f32 %v454, 0.0
  %v456 = vld [vmem:[%s2] sm:$0x1]
  %v457 = vadd.f32 %v455, 1e-05
  %v458 = vrsqrt.pop %v457
  %v459 = vmul.f32 %v456, %v458
  %v460 = vld [vmem:[%s3] sm:$0x1]
  %v461 = vmul.f32 %v434, %v459
  %v462 = vsub.f32 %v460, %v461
  %v464 = vlaneseq
  %v465 = vshrl.u32 %v464, 7
  %v466 = vsub.s32 0, %v465
  %v467 = vrot.slane %v459, %v466
  %v469 = vmul.f32 %v406, %v467
  %v470 = vmul.f32 %v409, %v467
  %v471 = vmul.f32 %v414, %v467
  %v472 = vmul.f32 %v417, %v467
  %v474 = vlaneseq
  %v475 = vshrl.u32 %v474, 7
  %v476 = vsub.s32 0, %v475
  %v477 = vrot.slane %v462, %v476
  %v479 = vadd.f32 %v469, %v477
  %v480 = vadd.f32 %v470, %v477
  %v481 = vadd.f32 %v471, %v477
  %v482 = vadd.f32 %v472, %v477
  %vm483 = vcmp.ge.f32.partialorder %v479, 0.0
  %vm484 = vcmp.ge.f32.partialorder %v480, 0.0
  %vm485 = vcmp.ge.f32.partialorder %v481, 0.0
  %vm486 = vcmp.ge.f32.partialorder %v482, 0.0
  %v487 = vmul.f32 %v479, 0.2
  %v488 = vmul.f32 %v480, 0.2
  %v489 = vmul.f32 %v481, 0.2
  %v490 = vmul.f32 %v482, 0.2
  %v491 = vsel %vm483, %v479, %v487
  %v492 = vsel %vm484, %v480, %v488
  %v493 = vsel %vm485, %v481, %v489
  %v494 = vsel %vm486, %v482, %v490
  %v495 = vpack.c.bf16 %v492, %v491
  %v496 = vpack.c.bf16 %v494, %v493
  %v499 = vunpack.c.l.b16 %v495
  %v500 = vunpack.c.h.b16 %v495
  %v501 = vunpack.c.l.b16 %v496
  %v502 = vunpack.c.h.b16 %v496
  %v503 = vpack.c.b16 %v499, %v499
  %v504 = vpack.c.b16 %v500, %v500
  %v505 = vpack.c.b16 %v501, %v501
  %v506 = vpack.c.b16 %v502, %v502
  %vm511 = vcmask 519168
  %512 = vst.msk [vmem:[%s4] sm:$0xf] %vm511, %v503
  %513 = vst.msk [vmem:[%s4 + $0x4] sm:$0xf] %vm511, %v504
  %514 = vst.msk [vmem:[%s4 + $0x8] sm:$0xf] %vm511, %v505
  %515 = vst.msk [vmem:[%s4 + $0xc] sm:$0xf] %vm511, %v506
  // Predicated region
  $region18: #{discriminator_forward.7} parent=0 // pred_check
    _
  $region19: #{discriminator_forward.7} parent=0 // pred_check_branch
    %517 = sbr.rel (0) target = $region21
  $region20: #{discriminator_forward.7} parent=0 // pred_region
    _
  $region21: #{discriminator_forward.7} parent=0 // pred_fallthru
    _
  // Predicated region
  $region22: #{discriminator_forward.7} parent=0 // pred_check
    _
  $region23: #{discriminator_forward.7} parent=0 // pred_check_branch
    %519 = sbr.rel (0) target = $region25
  $region24: #{discriminator_forward.7} parent=0 // pred_region
    _
  $region25: #{discriminator_forward.7} parent=0 // pred_fallthru
    _

</llo_original>
